<compile_context>
chip_gen: v5e
topology: v5e:2x2
jax: 0.10.0
libtpu: 0.0.40
codegen_flags: <defaults>
</compile_context>

<pallas_src>
import functools

import jax
import jax.numpy as jnp
from jax.experimental import pallas as pl
from jax.experimental.pallas import tpu as pltpu

LN_EPS = 1e-5

# compat shim: newer jax uses pltpu.CompilerParams, older used TPUCompilerParams
_CompilerParams = getattr(pltpu, "CompilerParams", None) or getattr(
    pltpu, "TPUCompilerParams", None)


def _tpu_params(**kw):
    return _CompilerParams(**kw) if _CompilerParams is not None else None


# ---------------------------------------------------------------------------
# Token embedding: row gather (scalar-prefetched ids, table resident in VMEM)
# ---------------------------------------------------------------------------
def _embed_gather_kernel(ids_ref, emb_ref, o_ref, *, n_tokens):
    # ids_ref: SMEM (N,) int32; emb_ref: VMEM (V, D); o_ref: VMEM (N, D)
    for i in range(n_tokens):  # small static trip count at these shapes
        o_ref[pl.ds(i, 1), :] = emb_ref[pl.ds(ids_ref[i], 1), :]


def embed_tokens(tokens, emb_table):
    n = tokens.size
    v, d = emb_table.shape
    flat = tokens.reshape(n).astype(jnp.int32)
    # TODO(synk): at realistic vocab sizes the table should stay in HBM
    # (memory_space=pl.ANY) with a manual DMA gather instead of a full VMEM block.
    return pl.pallas_call(
        functools.partial(_embed_gather_kernel, n_tokens=n),
        out_shape=jax.ShapeDtypeStruct((n, d), emb_table.dtype),
        grid_spec=pltpu.PrefetchScalarGridSpec(
            num_scalar_prefetch=1,
            grid=(1,),
            in_specs=[pl.BlockSpec((v, d), lambda i, ids: (0, 0))],
            out_specs=pl.BlockSpec((n, d), lambda i, ids: (0, 0)),
        ),
    )(flat, emb_table)


# ---------------------------------------------------------------------------
# Fused decoder layer kernel:
#   self-attn (fused QKV) + residual + LN -> cross-attn (fused KV) + residual + LN
#   -> FFN (linear/ReLU/linear).  One grid step per batch element.
# ---------------------------------------------------------------------------
def _decoder_layer_kernel(*refs, n_head, eps, has_cross):
    if has_cross:
        (x_ref, enc_ref, tmask_ref, smask_ref,
         wqkv_ref, bqkv_ref, wo1_ref, bo1_ref, g1_ref, b1_ref,
         wq2_ref, bq2_ref, wkv2_ref, bkv2_ref, wo2_ref, bo2_ref,
         g2_ref, b2_ref,
         fw1_ref, fb1_ref, fw2_ref, fb2_ref, o_ref) = refs
    else:
        (x_ref, tmask_ref,
         wqkv_ref, bqkv_ref, wo1_ref, bo1_ref, g1_ref, b1_ref,
         fw1_ref, fb1_ref, fw2_ref, fb2_ref, o_ref) = refs

    f32 = jnp.float32
    _, S, D = x_ref.shape
    H = n_head
    dh = D // H
    scale = dh ** -0.5

    def layer_norm(y, g_ref, b_ref):
        mu = jnp.mean(y, axis=-1, keepdims=True)
        var = jnp.mean((y - mu) ** 2, axis=-1, keepdims=True)
        return (y - mu) * jax.lax.rsqrt(var + eps) * g_ref[...] + b_ref[...]

    def attend(q, k, v, mask, wo_ref, bo_ref):
        # q: (Sq, D), k/v: (Sk, D), mask: (Sq, Sk) with 1=keep, 0=mask.
        # Heads stay packed in the lane dim; the per-head output is folded straight
        # into the Wo projection (mathematically identical to concat-heads @ Wo).
        wo = wo_ref[...]
        acc = jnp.zeros((q.shape[0], D), f32)
        for h in range(H):
            sl = slice(h * dh, (h + 1) * dh)
            qh, kh, vh = q[:, sl], k[:, sl], v[:, sl]
            s = jnp.einsum("qd,kd->qk", qh, kh,
                           preferred_element_type=f32) * scale
            s = jnp.where(mask == 0.0, -1e9, s)      # masked_fill(mask == 0, -inf-ish)
            s = s - jnp.max(s, axis=-1, keepdims=True)
            p = jnp.exp(s)
            p = p * pl.reciprocal(jnp.sum(p, axis=-1, keepdims=True), approx=True)
            oh = jnp.dot(p, vh, preferred_element_type=f32)          # (Sq, dh)
            acc = acc + jnp.dot(oh, wo[sl, :], preferred_element_type=f32)
        return acc + bo_ref[...]

    x = x_ref[0].astype(f32)           # (S, D)
    tmask = tmask_ref[0]               # (S, S)

    # ---- self attention + residual + LayerNorm (fused QKV projection) ----
    qkv = jnp.dot(x, wqkv_ref[...], preferred_element_type=f32) + bqkv_ref[...]
    a1 = attend(qkv[:, :D], qkv[:, D:2 * D], qkv[:, 2 * D:],
                tmask, wo1_ref, bo1_ref)
    x = layer_norm(a1 + x, g1_ref, b1_ref)

    # ---- cross attention + residual + LayerNorm (fused KV projection) ----
    if has_cross:
        enc = enc_ref[0].astype(f32)   # (Se, D)
        smask = smask_ref[0]           # (S, Se)
        q2 = jnp.dot(x, wq2_ref[...], preferred_element_type=f32) + bq2_ref[...]
        kv = jnp.dot(enc, wkv2_ref[...], preferred_element_type=f32) + bkv2_ref[...]
        a2 = attend(q2, kv[:, :D], kv[:, D:], smask, wo2_ref, bo2_ref)
        x = layer_norm(a2 + x, g2_ref, b2_ref)

    # ---- FFN -- reference returns ffn output directly (no norm3, no residual) ----
    h = jnp.maximum(jnp.dot(x, fw1_ref[...], preferred_element_type=f32)
                    + fb1_ref[...], 0.0)
    out = jnp.dot(h, fw2_ref[...], preferred_element_type=f32) + fb2_ref[...]
    o_ref[0] = out.astype(o_ref.dtype)


def decoder_layer(lp, x, enc, t_mask, s_mask, *, n_head, eps=LN_EPS):
    B, S, D = x.shape
    has_cross = enc is not None
    f32 = jnp.float32

    def per_b(shape):
        nd = len(shape)
        return pl.BlockSpec((1,) + tuple(shape[1:]),
                            lambda b, _n=nd: (b,) + (0,) * (_n - 1))

    def full(shape):
        nd = len(shape)
        return pl.BlockSpec(tuple(shape), lambda b, _n=nd: (0,) * _n)

    tm = jnp.broadcast_to(t_mask.astype(f32), (B, 1, S, S)).reshape(B, S, S)
    if has_cross:
        Se = enc.shape[1]
        sm = jnp.broadcast_to(s_mask.astype(f32), (B, 1, S, Se)).reshape(B, S, Se)
        args = [x, enc.astype(f32), tm, sm]
    else:
        args = [x, tm]
    specs = [per_b(a.shape) for a in args]

    a1 = lp["attn1"]
    weights = [a1["wqkv"], a1["bqkv"], a1["wo"], a1["bo"], lp["g1"], lp["b1"]]
    if has_cross:
        c = lp["cross"]
        weights += [c["wq"], c["bq"], c["wkv"], c["bkv"], c["wo"], c["bo"],
                    lp["g2"], lp["b2"]]
    weights += [lp["fw1"], lp["fb1"], lp["fw2"], lp["fb2"]]
    args += weights
    specs += [full(w.shape) for w in weights]

    kernel = functools.partial(_decoder_layer_kernel, n_head=n_head, eps=eps,
                               has_cross=has_cross)
    return pl.pallas_call(
        kernel,
        out_shape=jax.ShapeDtypeStruct((B, S, D), jnp.float32),
        grid=(B,),
        in_specs=specs,
        out_specs=per_b((B, S, D)),
        compiler_params=_tpu_params(dimension_semantics=("parallel",)),
    )(*args)


# ---------------------------------------------------------------------------
# Final vocab projection: tiled (M, N) matmul, lane dim padded to 128.
# ---------------------------------------------------------------------------
def _matmul_bias_kernel(x_ref, w_ref, b_ref, o_ref):
    o_ref[...] = (jnp.dot(x_ref[...], w_ref[...],
                          preferred_element_type=jnp.float32)
                  + b_ref[...]).astype(o_ref.dtype)


def vocab_projection(x2d, w, b, *, tm=256, tn=512):
    M, D = x2d.shape
    V = w.shape[1]
    vpad = ((V + 127) // 128) * 128          # lane-dense output stores
    if vpad != V:
        w = jnp.pad(w, ((0, 0), (0, vpad - V)))
        b = jnp.pad(b, ((0, 0), (0, vpad - V)))
    tm = min(tm, M)
    tn = min(tn, vpad)
    out = pl.pallas_call(
        _matmul_bias_kernel,
        out_shape=jax.ShapeDtypeStruct((M, vpad), jnp.float32),
        grid=(pl.cdiv(M, tm), pl.cdiv(vpad, tn)),
        in_specs=[pl.BlockSpec((tm, D), lambda i, j: (i, 0)),
                  pl.BlockSpec((D, tn), lambda i, j: (0, j)),
                  pl.BlockSpec((1, tn), lambda i, j: (0, j))],
        out_specs=pl.BlockSpec((tm, tn), lambda i, j: (i, j)),
        compiler_params=_tpu_params(
            dimension_semantics=("parallel", "parallel")),
    )(x2d, w, b)
    return out[:, :V] if vpad != V else out


# ---------------------------------------------------------------------------
# Full decoder forward
# ---------------------------------------------------------------------------
def decoder_forward(params, tokens, enc, t_mask, s_mask, *, n_head):
    B, S = tokens.shape
    D = params["emb"].shape[1]
    V = params["fc_w"].shape[1]

    x = embed_tokens(tokens, params["emb"]).reshape(B, S, D)
    for lp in params["layers"]:
        x = decoder_layer(lp, x, enc, t_mask, s_mask, n_head=n_head)
    logits = vocab_projection(x.reshape(B * S, D), params["fc_w"], params["fc_b"])
    return logits.reshape(B, S, V)


# ---------------------------------------------------------------------------
# Deterministic parameter init (QKV / KV weights stored pre-fused)
# ---------------------------------------------------------------------------
def init_params(key, vocab_size, d_model, n_layers, ffn_hidden):
    def dense(k, fi, fo):
        return (jax.random.normal(k, (fi, fo), jnp.float32) * 0.02,
                jnp.zeros((1, fo), jnp.float32))

    keys = iter(jax.random.split(key, 2 + 7 * n_layers))
    params = {"emb": jax.random.normal(next(keys), (vocab_size, d_model),
                                       jnp.float32) * 0.02,
              "layers": []}
    for _ in range(n_layers):
        lp = {}
        a = {}
        a["wqkv"], a["bqkv"] = dense(next(keys), d_model, 3 * d_model)
        a["wo"], a["bo"] = dense(next(keys), d_model, d_model)
        lp["attn1"] = a
        c = {}
        c["wq"], c["bq"] = dense(next(keys), d_model, d_model)
        c["wkv"], c["bkv"] = dense(next(keys), d_model, 2 * d_model)
        c["wo"], c["bo"] = dense(next(keys), d_model, d_model)
        lp["cross"] = c
        lp["g1"], lp["b1"] = jnp.ones((1, d_model)), jnp.zeros((1, d_model))
        lp["g2"], lp["b2"] = jnp.ones((1, d_model)), jnp.zeros((1, d_model))
        lp["fw1"], lp["fb1"] = dense(next(keys), d_model, ffn_hidden)
        lp["fw2"], lp["fb2"] = dense(next(keys), ffn_hidden, d_model)
        params["layers"].append(lp)
    params["fc_w"], params["fc_b"] = dense(next(keys), d_model, vocab_size)
    return params


# ---------------------------------------------------------------------------
if __name__ == "__main__":
    VOCAB, D_MODEL, N_LAYERS, N_HEAD, FFN_HIDDEN = 64, 32, 2, 4, 64
    B, S_DEC, S_ENC = 2, 8, 8

    root = jax.random.PRNGKey(0)
    k_par, k_tok, k_enc = jax.random.split(root, 3)

    params = init_params(k_par, VOCAB, D_MODEL, N_LAYERS, FFN_HIDDEN)
    tokens = jax.random.randint(k_tok, (B, S_DEC), 0, VOCAB, dtype=jnp.int32)
    enc = jax.random.normal(k_enc, (B, S_ENC, D_MODEL), jnp.float32)

    # causal target mask (1 = attend, 0 = masked), full source mask
    t_mask = jnp.tril(jnp.ones((S_DEC, S_DEC), jnp.float32))[None, None, :, :]
    t_mask = jnp.broadcast_to(t_mask, (B, 1, S_DEC, S_DEC))
    s_mask = jnp.ones((B, 1, S_DEC, S_ENC), jnp.float32)

    fwd = jax.jit(functools.partial(decoder_forward, n_head=N_HEAD))
    logits = fwd(params, tokens, enc, t_mask, s_mask)
    jax.block_until_ready(logits)

    assert logits.shape == (B, S_DEC, VOCAB) and logits.dtype == jnp.float32
    assert bool(jnp.all(jnp.isfinite(logits)))
    print("KERNEL_OK")
</pallas_src>

<mosaic_0001>
module attributes {stable_mosaic.version = 11 : i64} {
  func.func @_embed_gather_kernel(%arg0: i32, %arg1: memref<16xi32, #tpu.memory_space<smem>>, %arg2: memref<64x32xf32, #tpu.memory_space<vmem>>, %arg3: memref<16x32xf32, #tpu.memory_space<vmem>>) attributes {dimension_semantics = [#tpu.dimension_semantics<arbitrary>], iteration_bounds = array<i64: 1>, scalar_prefetch = 1 : i64, scratch_operands = 0 : i64, tpu.core_type = #tpu.core_type<tc>, window_params = [{pipeline_mode = #tpu.pipeline_mode<synchronous>, transform_indices = @transform_0, window_bounds = array<i64: 64, 32>}, {pipeline_mode = #tpu.pipeline_mode<synchronous>, transform_indices = @transform_1, window_bounds = array<i64: 16, 32>}]} {
    %c0 = arith.constant 0 : index
    %0 = memref.load %arg1[%c0] : memref<16xi32, #tpu.memory_space<smem>>
    %1 = arith.index_cast %0 : i32 to index
    %c0_0 = arith.constant 0 : index
    %2 = vector.load %arg2[%1, %c0_0] : memref<64x32xf32, #tpu.memory_space<vmem>>, vector<1x32xf32>
    %c0_1 = arith.constant 0 : index
    %c0_2 = arith.constant 0 : index
    %3 = vector.load %arg3[%c0_1, %c0_2] : memref<16x32xf32, #tpu.memory_space<vmem>>, vector<1x32xf32>
    tpu.vector_store %arg3[%c0_1, %c0_2], %2 {strides = array<i32>} : memref<16x32xf32, #tpu.memory_space<vmem>>, vector<1x32xf32>,
    %c1 = arith.constant 1 : index
    %4 = memref.load %arg1[%c1] : memref<16xi32, #tpu.memory_space<smem>>
    %5 = arith.index_cast %4 : i32 to index
    %c0_3 = arith.constant 0 : index
    %6 = vector.load %arg2[%5, %c0_3] : memref<64x32xf32, #tpu.memory_space<vmem>>, vector<1x32xf32>
    %c1_4 = arith.constant 1 : index
    %c0_5 = arith.constant 0 : index
    %7 = vector.load %arg3[%c1_4, %c0_5] : memref<16x32xf32, #tpu.memory_space<vmem>>, vector<1x32xf32>
    tpu.vector_store %arg3[%c1_4, %c0_5], %6 {strides = array<i32>} : memref<16x32xf32, #tpu.memory_space<vmem>>, vector<1x32xf32>,
    %c2 = arith.constant 2 : index
    %8 = memref.load %arg1[%c2] : memref<16xi32, #tpu.memory_space<smem>>
    %9 = arith.index_cast %8 : i32 to index
    %c0_6 = arith.constant 0 : index
    %10 = vector.load %arg2[%9, %c0_6] : memref<64x32xf32, #tpu.memory_space<vmem>>, vector<1x32xf32>
    %c2_7 = arith.constant 2 : index
    %c0_8 = arith.constant 0 : index
    %11 = vector.load %arg3[%c2_7, %c0_8] : memref<16x32xf32, #tpu.memory_space<vmem>>, vector<1x32xf32>
    tpu.vector_store %arg3[%c2_7, %c0_8], %10 {strides = array<i32>} : memref<16x32xf32, #tpu.memory_space<vmem>>, vector<1x32xf32>,
    %c3 = arith.constant 3 : index
    %12 = memref.load %arg1[%c3] : memref<16xi32, #tpu.memory_space<smem>>
    %13 = arith.index_cast %12 : i32 to index
    %c0_9 = arith.constant 0 : index
    %14 = vector.load %arg2[%13, %c0_9] : memref<64x32xf32, #tpu.memory_space<vmem>>, vector<1x32xf32>
    %c3_10 = arith.constant 3 : index
    %c0_11 = arith.constant 0 : index
    %15 = vector.load %arg3[%c3_10, %c0_11] : memref<16x32xf32, #tpu.memory_space<vmem>>, vector<1x32xf32>
    tpu.vector_store %arg3[%c3_10, %c0_11], %14 {strides = array<i32>} : memref<16x32xf32, #tpu.memory_space<vmem>>, vector<1x32xf32>,
    %c4 = arith.constant 4 : index
    %16 = memref.load %arg1[%c4] : memref<16xi32, #tpu.memory_space<smem>>
    %17 = arith.index_cast %16 : i32 to index
    %c0_12 = arith.constant 0 : index
    %18 = vector.load %arg2[%17, %c0_12] : memref<64x32xf32, #tpu.memory_space<vmem>>, vector<1x32xf32>
    %c4_13 = arith.constant 4 : index
    %c0_14 = arith.constant 0 : index
    %19 = vector.load %arg3[%c4_13, %c0_14] : memref<16x32xf32, #tpu.memory_space<vmem>>, vector<1x32xf32>
    tpu.vector_store %arg3[%c4_13, %c0_14], %18 {strides = array<i32>} : memref<16x32xf32, #tpu.memory_space<vmem>>, vector<1x32xf32>,
    %c5 = arith.constant 5 : index
    %20 = memref.load %arg1[%c5] : memref<16xi32, #tpu.memory_space<smem>>
    %21 = arith.index_cast %20 : i32 to index
    %c0_15 = arith.constant 0 : index
    %22 = vector.load %arg2[%21, %c0_15] : memref<64x32xf32, #tpu.memory_space<vmem>>, vector<1x32xf32>
    %c5_16 = arith.constant 5 : index
    %c0_17 = arith.constant 0 : index
    %23 = vector.load %arg3[%c5_16, %c0_17] : memref<16x32xf32, #tpu.memory_space<vmem>>, vector<1x32xf32>
    tpu.vector_store %arg3[%c5_16, %c0_17], %22 {strides = array<i32>} : memref<16x32xf32, #tpu.memory_space<vmem>>, vector<1x32xf32>,
    %c6 = arith.constant 6 : index
    %24 = memref.load %arg1[%c6] : memref<16xi32, #tpu.memory_space<smem>>
    %25 = arith.index_cast %24 : i32 to index
    %c0_18 = arith.constant 0 : index
    %26 = vector.load %arg2[%25, %c0_18] : memref<64x32xf32, #tpu.memory_space<vmem>>, vector<1x32xf32>
    %c6_19 = arith.constant 6 : index
    %c0_20 = arith.constant 0 : index
    %27 = vector.load %arg3[%c6_19, %c0_20] : memref<16x32xf32, #tpu.memory_space<vmem>>, vector<1x32xf32>
    tpu.vector_store %arg3[%c6_19, %c0_20], %26 {strides = array<i32>} : memref<16x32xf32, #tpu.memory_space<vmem>>, vector<1x32xf32>,
    %c7 = arith.constant 7 : index
    %28 = memref.load %arg1[%c7] : memref<16xi32, #tpu.memory_space<smem>>
    %29 = arith.index_cast %28 : i32 to index
    %c0_21 = arith.constant 0 : index
    %30 = vector.load %arg2[%29, %c0_21] : memref<64x32xf32, #tpu.memory_space<vmem>>, vector<1x32xf32>
    %c7_22 = arith.constant 7 : index
    %c0_23 = arith.constant 0 : index
    %31 = vector.load %arg3[%c7_22, %c0_23] : memref<16x32xf32, #tpu.memory_space<vmem>>, vector<1x32xf32>
    tpu.vector_store %arg3[%c7_22, %c0_23], %30 {strides = array<i32>} : memref<16x32xf32, #tpu.memory_space<vmem>>, vector<1x32xf32>,
    %c8 = arith.constant 8 : index
    %32 = memref.load %arg1[%c8] : memref<16xi32, #tpu.memory_space<smem>>
    %33 = arith.index_cast %32 : i32 to index
    %c0_24 = arith.constant 0 : index
    %34 = vector.load %arg2[%33, %c0_24] : memref<64x32xf32, #tpu.memory_space<vmem>>, vector<1x32xf32>
    %c8_25 = arith.constant 8 : index
    %c0_26 = arith.constant 0 : index
    %35 = vector.load %arg3[%c8_25, %c0_26] : memref<16x32xf32, #tpu.memory_space<vmem>>, vector<1x32xf32>
    tpu.vector_store %arg3[%c8_25, %c0_26], %34 {strides = array<i32>} : memref<16x32xf32, #tpu.memory_space<vmem>>, vector<1x32xf32>,
    %c9 = arith.constant 9 : index
    %36 = memref.load %arg1[%c9] : memref<16xi32, #tpu.memory_space<smem>>
    %37 = arith.index_cast %36 : i32 to index
    %c0_27 = arith.constant 0 : index
    %38 = vector.load %arg2[%37, %c0_27] : memref<64x32xf32, #tpu.memory_space<vmem>>, vector<1x32xf32>
    %c9_28 = arith.constant 9 : index
    %c0_29 = arith.constant 0 : index
    %39 = vector.load %arg3[%c9_28, %c0_29] : memref<16x32xf32, #tpu.memory_space<vmem>>, vector<1x32xf32>
    tpu.vector_store %arg3[%c9_28, %c0_29], %38 {strides = array<i32>} : memref<16x32xf32, #tpu.memory_space<vmem>>, vector<1x32xf32>,
    %c10 = arith.constant 10 : index
    %40 = memref.load %arg1[%c10] : memref<16xi32, #tpu.memory_space<smem>>
    %41 = arith.index_cast %40 : i32 to index
    %c0_30 = arith.constant 0 : index
    %42 = vector.load %arg2[%41, %c0_30] : memref<64x32xf32, #tpu.memory_space<vmem>>, vector<1x32xf32>
    %c10_31 = arith.constant 10 : index
    %c0_32 = arith.constant 0 : index
    %43 = vector.load %arg3[%c10_31, %c0_32] : memref<16x32xf32, #tpu.memory_space<vmem>>, vector<1x32xf32>
    tpu.vector_store %arg3[%c10_31, %c0_32], %42 {strides = array<i32>} : memref<16x32xf32, #tpu.memory_space<vmem>>, vector<1x32xf32>,
    %c11 = arith.constant 11 : index
    %44 = memref.load %arg1[%c11] : memref<16xi32, #tpu.memory_space<smem>>
    %45 = arith.index_cast %44 : i32 to index
    %c0_33 = arith.constant 0 : index
    %46 = vector.load %arg2[%45, %c0_33] : memref<64x32xf32, #tpu.memory_space<vmem>>, vector<1x32xf32>
    %c11_34 = arith.constant 11 : index
    %c0_35 = arith.constant 0 : index
    %47 = vector.load %arg3[%c11_34, %c0_35] : memref<16x32xf32, #tpu.memory_space<vmem>>, vector<1x32xf32>
    tpu.vector_store %arg3[%c11_34, %c0_35], %46 {strides = array<i32>} : memref<16x32xf32, #tpu.memory_space<vmem>>, vector<1x32xf32>,
    %c12 = arith.constant 12 : index
    %48 = memref.load %arg1[%c12] : memref<16xi32, #tpu.memory_space<smem>>
    %49 = arith.index_cast %48 : i32 to index
    %c0_36 = arith.constant 0 : index
    %50 = vector.load %arg2[%49, %c0_36] : memref<64x32xf32, #tpu.memory_space<vmem>>, vector<1x32xf32>
    %c12_37 = arith.constant 12 : index
    %c0_38 = arith.constant 0 : index
    %51 = vector.load %arg3[%c12_37, %c0_38] : memref<16x32xf32, #tpu.memory_space<vmem>>, vector<1x32xf32>
    tpu.vector_store %arg3[%c12_37, %c0_38], %50 {strides = array<i32>} : memref<16x32xf32, #tpu.memory_space<vmem>>, vector<1x32xf32>,
    %c13 = arith.constant 13 : index
    %52 = memref.load %arg1[%c13] : memref<16xi32, #tpu.memory_space<smem>>
    %53 = arith.index_cast %52 : i32 to index
    %c0_39 = arith.constant 0 : index
    %54 = vector.load %arg2[%53, %c0_39] : memref<64x32xf32, #tpu.memory_space<vmem>>, vector<1x32xf32>
    %c13_40 = arith.constant 13 : index
    %c0_41 = arith.constant 0 : index
    %55 = vector.load %arg3[%c13_40, %c0_41] : memref<16x32xf32, #tpu.memory_space<vmem>>, vector<1x32xf32>
    tpu.vector_store %arg3[%c13_40, %c0_41], %54 {strides = array<i32>} : memref<16x32xf32, #tpu.memory_space<vmem>>, vector<1x32xf32>,
    %c14 = arith.constant 14 : index
    %56 = memref.load %arg1[%c14] : memref<16xi32, #tpu.memory_space<smem>>
    %57 = arith.index_cast %56 : i32 to index
    %c0_42 = arith.constant 0 : index
    %58 = vector.load %arg2[%57, %c0_42] : memref<64x32xf32, #tpu.memory_space<vmem>>, vector<1x32xf32>
    %c14_43 = arith.constant 14 : index
    %c0_44 = arith.constant 0 : index
    %59 = vector.load %arg3[%c14_43, %c0_44] : memref<16x32xf32, #tpu.memory_space<vmem>>, vector<1x32xf32>
    tpu.vector_store %arg3[%c14_43, %c0_44], %58 {strides = array<i32>} : memref<16x32xf32, #tpu.memory_space<vmem>>, vector<1x32xf32>,
    %c15 = arith.constant 15 : index
    %60 = memref.load %arg1[%c15] : memref<16xi32, #tpu.memory_space<smem>>
    %61 = arith.index_cast %60 : i32 to index
    %c0_45 = arith.constant 0 : index
    %62 = vector.load %arg2[%61, %c0_45] : memref<64x32xf32, #tpu.memory_space<vmem>>, vector<1x32xf32>
    %c15_46 = arith.constant 15 : index
    %c0_47 = arith.constant 0 : index
    %63 = vector.load %arg3[%c15_46, %c0_47] : memref<16x32xf32, #tpu.memory_space<vmem>>, vector<1x32xf32>
    tpu.vector_store %arg3[%c15_46, %c0_47], %62 {strides = array<i32>} : memref<16x32xf32, #tpu.memory_space<vmem>>, vector<1x32xf32>,
    return
  }
  func.func @transform_0(%arg0: i32, %arg1: memref<16xi32, #tpu.memory_space<smem>>) -> (i32, i32) {
    %c0_i32 = arith.constant 0 : i32
    %c0_i32_0 = arith.constant 0 : i32
    %c0_i32_1 = arith.constant 0 : i32
    return %c0_i32, %c0_i32_0 : i32, i32
  }
  func.func @transform_1(%arg0: i32, %arg1: memref<16xi32, #tpu.memory_space<smem>>) -> (i32, i32) {
    %c0_i32 = arith.constant 0 : i32
    %c0_i32_0 = arith.constant 0 : i32
    %c0_i32_1 = arith.constant 0 : i32
    return %c0_i32, %c0_i32_0 : i32, i32
  }
}

module attributes {stable_mosaic.version = 11 : i64} {
  func.func @_decoder_layer_kernel(%arg0: i32, %arg1: memref<1x8x32xf32, #tpu.memory_space<vmem>>, %arg2: memref<1x8x32xf32, #tpu.memory_space<vmem>>, %arg3: memref<1x8x8xf32, #tpu.memory_space<vmem>>, %arg4: memref<1x8x8xf32, #tpu.memory_space<vmem>>, %arg5: memref<32x96xf32, #tpu.memory_space<vmem>>, %arg6: memref<1x96xf32, #tpu.memory_space<vmem>>, %arg7: memref<32x32xf32, #tpu.memory_space<vmem>>, %arg8: memref<1x32xf32, #tpu.memory_space<vmem>>, %arg9: memref<1x32xf32, #tpu.memory_space<vmem>>, %arg10: memref<1x32xf32, #tpu.memory_space<vmem>>, %arg11: memref<32x32xf32, #tpu.memory_space<vmem>>, %arg12: memref<1x32xf32, #tpu.memory_space<vmem>>, %arg13: memref<32x64xf32, #tpu.memory_space<vmem>>, %arg14: memref<1x64xf32, #tpu.memory_space<vmem>>, %arg15: memref<32x32xf32, #tpu.memory_space<vmem>>, %arg16: memref<1x32xf32, #tpu.memory_space<vmem>>, %arg17: memref<1x32xf32, #tpu.memory_space<vmem>>, %arg18: memref<1x32xf32, #tpu.memory_space<vmem>>, %arg19: memref<32x64xf32, #tpu.memory_space<vmem>>, %arg20: memref<1x64xf32, #tpu.memory_space<vmem>>, %arg21: memref<64x32xf32, #tpu.memory_space<vmem>>, %arg22: memref<1x32xf32, #tpu.memory_space<vmem>>, %arg23: memref<1x8x32xf32, #tpu.memory_space<vmem>>) attributes {dimension_semantics = [#tpu.dimension_semantics<parallel>], iteration_bounds = array<i64: 2>, scalar_prefetch = 0 : i64, scratch_operands = 0 : i64, tpu.core_type = #tpu.core_type<tc>, window_params = [{transform_indices = @transform_0, window_bounds = array<i64: 1, 8, 32>}, {transform_indices = @transform_1, window_bounds = array<i64: 1, 8, 32>}, {transform_indices = @transform_2, window_bounds = array<i64: 1, 8, 8>}, {transform_indices = @transform_3, window_bounds = array<i64: 1, 8, 8>}, {pipeline_mode = #tpu.pipeline_mode<synchronous>, transform_indices = @transform_4, window_bounds = array<i64: 32, 96>}, {pipeline_mode = #tpu.pipeline_mode<synchronous>, transform_indices = @transform_5, window_bounds = array<i64: 1, 96>}, {pipeline_mode = #tpu.pipeline_mode<synchronous>, transform_indices = @transform_6, window_bounds = array<i64: 32, 32>}, {pipeline_mode = #tpu.pipeline_mode<synchronous>, transform_indices = @transform_7, window_bounds = array<i64: 1, 32>}, {pipeline_mode = #tpu.pipeline_mode<synchronous>, transform_indices = @transform_8, window_bounds = array<i64: 1, 32>}, {pipeline_mode = #tpu.pipeline_mode<synchronous>, transform_indices = @transform_9, window_bounds = array<i64: 1, 32>}, {pipeline_mode = #tpu.pipeline_mode<synchronous>, transform_indices = @transform_10, window_bounds = array<i64: 32, 32>}, {pipeline_mode = #tpu.pipeline_mode<synchronous>, transform_indices = @transform_11, window_bounds = array<i64: 1, 32>}, {pipeline_mode = #tpu.pipeline_mode<synchronous>, transform_indices = @transform_12, window_bounds = array<i64: 32, 64>}, {pipeline_mode = #tpu.pipeline_mode<synchronous>, transform_indices = @transform_13, window_bounds = array<i64: 1, 64>}, {pipeline_mode = #tpu.pipeline_mode<synchronous>, transform_indices = @transform_14, window_bounds = array<i64: 32, 32>}, {pipeline_mode = #tpu.pipeline_mode<synchronous>, transform_indices = @transform_15, window_bounds = array<i64: 1, 32>}, {pipeline_mode = #tpu.pipeline_mode<synchronous>, transform_indices = @transform_16, window_bounds = array<i64: 1, 32>}, {pipeline_mode = #tpu.pipeline_mode<synchronous>, transform_indices = @transform_17, window_bounds = array<i64: 1, 32>}, {pipeline_mode = #tpu.pipeline_mode<synchronous>, transform_indices = @transform_18, window_bounds = array<i64: 32, 64>}, {pipeline_mode = #tpu.pipeline_mode<synchronous>, transform_indices = @transform_19, window_bounds = array<i64: 1, 64>}, {pipeline_mode = #tpu.pipeline_mode<synchronous>, transform_indices = @transform_20, window_bounds = array<i64: 64, 32>}, {pipeline_mode = #tpu.pipeline_mode<synchronous>, transform_indices = @transform_21, window_bounds = array<i64: 1, 32>}, {transform_indices = @transform_22, window_bounds = array<i64: 1, 8, 32>}]} {
    %c0 = arith.constant 0 : index
    %c0_0 = arith.constant 0 : index
    %c0_1 = arith.constant 0 : index
    %0 = vector.load %arg1[%c0, %c0_0, %c0_1] : memref<1x8x32xf32, #tpu.memory_space<vmem>>, vector<1x8x32xf32>
    %1 = vector.shape_cast %0 : vector<1x8x32xf32> to vector<8x32xf32>
    %c0_2 = arith.constant 0 : index
    %c0_3 = arith.constant 0 : index
    %c0_4 = arith.constant 0 : index
    %2 = vector.load %arg3[%c0_2, %c0_3, %c0_4] : memref<1x8x8xf32, #tpu.memory_space<vmem>>, vector<1x8x8xf32>
    %3 = vector.shape_cast %2 : vector<1x8x8xf32> to vector<8x8xf32>
    %c0_5 = arith.constant 0 : index
    %c0_6 = arith.constant 0 : index
    %4 = vector.load %arg5[%c0_5, %c0_6] : memref<32x96xf32, #tpu.memory_space<vmem>>, vector<32x96xf32>
    %cst = arith.constant dense<0.000000e+00> : vector<8x96xf32>
    %5 = tpu.matmul %1, %4, %cst {dimension_numbers = #tpu.dot_dimension_numbers<[1], [0], [0], [1], [0, 0, 1, 1], [], []>} : vector<8x32xf32>, vector<32x96xf32>, vector<8x96xf32> -> vector<8x96xf32>
    %c0_7 = arith.constant 0 : index
    %c0_8 = arith.constant 0 : index
    %6 = vector.load %arg6[%c0_7, %c0_8] : memref<1x96xf32, #tpu.memory_space<vmem>>, vector<1x96xf32>
    %7 = vector.broadcast %6 : vector<1x96xf32> to vector<8x96xf32>
    %8 = arith.addf %5, %7 : vector<8x96xf32>
    %9 = vector.extract_strided_slice %8 {offsets = [0, 0], sizes = [8, 32], strides = [1, 1]} : vector<8x96xf32> to vector<8x32xf32>
    %10 = vector.extract_strided_slice %8 {offsets = [0, 32], sizes = [8, 32], strides = [1, 1]} : vector<8x96xf32> to vector<8x32xf32>
    %11 = vector.extract_strided_slice %8 {offsets = [0, 64], sizes = [8, 32], strides = [1, 1]} : vector<8x96xf32> to vector<8x32xf32>
    %c0_9 = arith.constant 0 : index
    %c0_10 = arith.constant 0 : index
    %12 = vector.load %arg7[%c0_9, %c0_10] : memref<32x32xf32, #tpu.memory_space<vmem>>, vector<32x32xf32>
    %cst_11 = arith.constant 0.000000e+00 : f32
    %13 = vector.broadcast %cst_11 : f32 to vector<8x32xf32>
    %14 = vector.extract_strided_slice %9 {offsets = [0, 0], sizes = [8, 8], strides = [1, 1]} : vector<8x32xf32> to vector<8x8xf32>
    %15 = vector.extract_strided_slice %10 {offsets = [0, 0], sizes = [8, 8], strides = [1, 1]} : vector<8x32xf32> to vector<8x8xf32>
    %16 = vector.extract_strided_slice %11 {offsets = [0, 0], sizes = [8, 8], strides = [1, 1]} : vector<8x32xf32> to vector<8x8xf32>
    "tpu.trace_start"() <{level = 10 : i32, message = "qd,kd->qk"}> : () -> ()
    %cst_12 = arith.constant dense<0.000000e+00> : vector<8x8xf32>
    %17 = tpu.matmul %14, %15, %cst_12 {dimension_numbers = #tpu.dot_dimension_numbers<[1], [1], [0], [0], [0, 0, 1, 0], [], []>} : vector<8x8xf32>, vector<8x8xf32>, vector<8x8xf32> -> vector<8x8xf32>
    "tpu.trace_stop"() : () -> ()
    %cst_13 = arith.constant 0.353553385 : f32
    %18 = vector.broadcast %cst_13 : f32 to vector<8x8xf32>
    %19 = arith.mulf %17, %18 : vector<8x8xf32>
    %cst_14 = arith.constant 0.000000e+00 : f32
    %20 = vector.broadcast %cst_14 : f32 to vector<8x8xf32>
    %21 = arith.cmpf oeq, %3, %20 : vector<8x8xf32>
    %cst_15 = arith.constant -1.000000e+09 : f32
    %22 = vector.broadcast %cst_15 : f32 to vector<8x8xf32>
    %23 = arith.select %21, %22, %19 : vector<8x8xi1>, vector<8x8xf32>
    %cst_16 = arith.constant dense<0xFF800000> : vector<8xf32>
    %24 = vector.multi_reduction <maximumf>, %23, %cst_16 [1] : vector<8x8xf32> to vector<8xf32>
    %25 = vector.shape_cast %24 : vector<8xf32> to vector<8x1xf32>
    %26 = vector.broadcast %25 : vector<8x1xf32> to vector<8x8xf32>
    %27 = arith.subf %23, %26 : vector<8x8xf32>
    %28 = math.exp %27 : vector<8x8xf32>
    %cst_17 = arith.constant dense<0.000000e+00> : vector<8xf32>
    %29 = vector.multi_reduction <add>, %28, %cst_17 [1] : vector<8x8xf32> to vector<8xf32>
    %30 = vector.shape_cast %29 : vector<8xf32> to vector<8x1xf32>
    %31 = tpu.reciprocal %30 {approx = true} : vector<8x1xf32> -> vector<8x1xf32>
    %32 = vector.broadcast %31 : vector<8x1xf32> to vector<8x8xf32>
    %33 = arith.mulf %28, %32 : vector<8x8xf32>
    %cst_18 = arith.constant dense<0.000000e+00> : vector<8x8xf32>
    %34 = tpu.matmul %33, %16, %cst_18 {dimension_numbers = #tpu.dot_dimension_numbers<[1], [0], [0], [1], [0, 0, 1, 1], [], []>} : vector<8x8xf32>, vector<8x8xf32>, vector<8x8xf32> -> vector<8x8xf32>
    %35 = vector.extract_strided_slice %12 {offsets = [0, 0], sizes = [8, 32], strides = [1, 1]} : vector<32x32xf32> to vector<8x32xf32>
    %cst_19 = arith.constant dense<0.000000e+00> : vector<8x32xf32>
    %36 = tpu.matmul %34, %35, %cst_19 {dimension_numbers = #tpu.dot_dimension_numbers<[1], [0], [0], [1], [0, 0, 1, 1], [], []>} : vector<8x8xf32>, vector<8x32xf32>, vector<8x32xf32> -> vector<8x32xf32>
    %37 = arith.addf %13, %36 : vector<8x32xf32>
    %38 = vector.extract_strided_slice %9 {offsets = [0, 8], sizes = [8, 8], strides = [1, 1]} : vector<8x32xf32> to vector<8x8xf32>
    %39 = vector.extract_strided_slice %10 {offsets = [0, 8], sizes = [8, 8], strides = [1, 1]} : vector<8x32xf32> to vector<8x8xf32>
    %40 = vector.extract_strided_slice %11 {offsets = [0, 8], sizes = [8, 8], strides = [1, 1]} : vector<8x32xf32> to vector<8x8xf32>
    "tpu.trace_start"() <{level = 10 : i32, message = "qd,kd->qk"}> : () -> ()
    %cst_20 = arith.constant dense<0.000000e+00> : vector<8x8xf32>
    %41 = tpu.matmul %38, %39, %cst_20 {dimension_numbers = #tpu.dot_dimension_numbers<[1], [1], [0], [0], [0, 0, 1, 0], [], []>} : vector<8x8xf32>, vector<8x8xf32>, vector<8x8xf32> -> vector<8x8xf32>
    "tpu.trace_stop"() : () -> ()
    %cst_21 = arith.constant 0.353553385 : f32
    %42 = vector.broadcast %cst_21 : f32 to vector<8x8xf32>
    %43 = arith.mulf %41, %42 : vector<8x8xf32>
    %cst_22 = arith.constant 0.000000e+00 : f32
    %44 = vector.broadcast %cst_22 : f32 to vector<8x8xf32>
    %45 = arith.cmpf oeq, %3, %44 : vector<8x8xf32>
    %cst_23 = arith.constant -1.000000e+09 : f32
    %46 = vector.broadcast %cst_23 : f32 to vector<8x8xf32>
    %47 = arith.select %45, %46, %43 : vector<8x8xi1>, vector<8x8xf32>
    %cst_24 = arith.constant dense<0xFF800000> : vector<8xf32>
    %48 = vector.multi_reduction <maximumf>, %47, %cst_24 [1] : vector<8x8xf32> to vector<8xf32>
    %49 = vector.shape_cast %48 : vector<8xf32> to vector<8x1xf32>
    %50 = vector.broadcast %49 : vector<8x1xf32> to vector<8x8xf32>
    %51 = arith.subf %47, %50 : vector<8x8xf32>
    %52 = math.exp %51 : vector<8x8xf32>
    %cst_25 = arith.constant dense<0.000000e+00> : vector<8xf32>
    %53 = vector.multi_reduction <add>, %52, %cst_25 [1] : vector<8x8xf32> to vector<8xf32>
    %54 = vector.shape_cast %53 : vector<8xf32> to vector<8x1xf32>
    %55 = tpu.reciprocal %54 {approx = true} : vector<8x1xf32> -> vector<8x1xf32>
    %56 = vector.broadcast %55 : vector<8x1xf32> to vector<8x8xf32>
    %57 = arith.mulf %52, %56 : vector<8x8xf32>
    %cst_26 = arith.constant dense<0.000000e+00> : vector<8x8xf32>
    %58 = tpu.matmul %57, %40, %cst_26 {dimension_numbers = #tpu.dot_dimension_numbers<[1], [0], [0], [1], [0, 0, 1, 1], [], []>} : vector<8x8xf32>, vector<8x8xf32>, vector<8x8xf32> -> vector<8x8xf32>
    %59 = vector.extract_strided_slice %12 {offsets = [8, 0], sizes = [8, 32], strides = [1, 1]} : vector<32x32xf32> to vector<8x32xf32>
    %cst_27 = arith.constant dense<0.000000e+00> : vector<8x32xf32>
    %60 = tpu.matmul %58, %59, %cst_27 {dimension_numbers = #tpu.dot_dimension_numbers<[1], [0], [0], [1], [0, 0, 1, 1], [], []>} : vector<8x8xf32>, vector<8x32xf32>, vector<8x32xf32> -> vector<8x32xf32>
    %61 = arith.addf %37, %60 : vector<8x32xf32>
    %62 = vector.extract_strided_slice %9 {offsets = [0, 16], sizes = [8, 8], strides = [1, 1]} : vector<8x32xf32> to vector<8x8xf32>
    %63 = vector.extract_strided_slice %10 {offsets = [0, 16], sizes = [8, 8], strides = [1, 1]} : vector<8x32xf32> to vector<8x8xf32>
    %64 = vector.extract_strided_slice %11 {offsets = [0, 16], sizes = [8, 8], strides = [1, 1]} : vector<8x32xf32> to vector<8x8xf32>
    "tpu.trace_start"() <{level = 10 : i32, message = "qd,kd->qk"}> : () -> ()
    %cst_28 = arith.constant dense<0.000000e+00> : vector<8x8xf32>
    %65 = tpu.matmul %62, %63, %cst_28 {dimension_numbers = #tpu.dot_dimension_numbers<[1], [1], [0], [0], [0, 0, 1, 0], [], []>} : vector<8x8xf32>, vector<8x8xf32>, vector<8x8xf32> -> vector<8x8xf32>
    "tpu.trace_stop"() : () -> ()
    %cst_29 = arith.constant 0.353553385 : f32
    %66 = vector.broadcast %cst_29 : f32 to vector<8x8xf32>
    %67 = arith.mulf %65, %66 : vector<8x8xf32>
    %cst_30 = arith.constant 0.000000e+00 : f32
    %68 = vector.broadcast %cst_30 : f32 to vector<8x8xf32>
    %69 = arith.cmpf oeq, %3, %68 : vector<8x8xf32>
    %cst_31 = arith.constant -1.000000e+09 : f32
    %70 = vector.broadcast %cst_31 : f32 to vector<8x8xf32>
    %71 = arith.select %69, %70, %67 : vector<8x8xi1>, vector<8x8xf32>
    %cst_32 = arith.constant dense<0xFF800000> : vector<8xf32>
    %72 = vector.multi_reduction <maximumf>, %71, %cst_32 [1] : vector<8x8xf32> to vector<8xf32>
    %73 = vector.shape_cast %72 : vector<8xf32> to vector<8x1xf32>
    %74 = vector.broadcast %73 : vector<8x1xf32> to vector<8x8xf32>
    %75 = arith.subf %71, %74 : vector<8x8xf32>
    %76 = math.exp %75 : vector<8x8xf32>
    %cst_33 = arith.constant dense<0.000000e+00> : vector<8xf32>
    %77 = vector.multi_reduction <add>, %76, %cst_33 [1] : vector<8x8xf32> to vector<8xf32>
    %78 = vector.shape_cast %77 : vector<8xf32> to vector<8x1xf32>
    %79 = tpu.reciprocal %78 {approx = true} : vector<8x1xf32> -> vector<8x1xf32>
    %80 = vector.broadcast %79 : vector<8x1xf32> to vector<8x8xf32>
    %81 = arith.mulf %76, %80 : vector<8x8xf32>
    %cst_34 = arith.constant dense<0.000000e+00> : vector<8x8xf32>
    %82 = tpu.matmul %81, %64, %cst_34 {dimension_numbers = #tpu.dot_dimension_numbers<[1], [0], [0], [1], [0, 0, 1, 1], [], []>} : vector<8x8xf32>, vector<8x8xf32>, vector<8x8xf32> -> vector<8x8xf32>
    %83 = vector.extract_strided_slice %12 {offsets = [16, 0], sizes = [8, 32], strides = [1, 1]} : vector<32x32xf32> to vector<8x32xf32>
    %cst_35 = arith.constant dense<0.000000e+00> : vector<8x32xf32>
    %84 = tpu.matmul %82, %83, %cst_35 {dimension_numbers = #tpu.dot_dimension_numbers<[1], [0], [0], [1], [0, 0, 1, 1], [], []>} : vector<8x8xf32>, vector<8x32xf32>, vector<8x32xf32> -> vector<8x32xf32>
    %85 = arith.addf %61, %84 : vector<8x32xf32>
    %86 = vector.extract_strided_slice %9 {offsets = [0, 24], sizes = [8, 8], strides = [1, 1]} : vector<8x32xf32> to vector<8x8xf32>
    %87 = vector.extract_strided_slice %10 {offsets = [0, 24], sizes = [8, 8], strides = [1, 1]} : vector<8x32xf32> to vector<8x8xf32>
    %88 = vector.extract_strided_slice %11 {offsets = [0, 24], sizes = [8, 8], strides = [1, 1]} : vector<8x32xf32> to vector<8x8xf32>
    "tpu.trace_start"() <{level = 10 : i32, message = "qd,kd->qk"}> : () -> ()
    %cst_36 = arith.constant dense<0.000000e+00> : vector<8x8xf32>
    %89 = tpu.matmul %86, %87, %cst_36 {dimension_numbers = #tpu.dot_dimension_numbers<[1], [1], [0], [0], [0, 0, 1, 0], [], []>} : vector<8x8xf32>, vector<8x8xf32>, vector<8x8xf32> -> vector<8x8xf32>
    "tpu.trace_stop"() : () -> ()
    %cst_37 = arith.constant 0.353553385 : f32
    %90 = vector.broadcast %cst_37 : f32 to vector<8x8xf32>
    %91 = arith.mulf %89, %90 : vector<8x8xf32>
    %cst_38 = arith.constant 0.000000e+00 : f32
    %92 = vector.broadcast %cst_38 : f32 to vector<8x8xf32>
    %93 = arith.cmpf oeq, %3, %92 : vector<8x8xf32>
    %cst_39 = arith.constant -1.000000e+09 : f32
    %94 = vector.broadcast %cst_39 : f32 to vector<8x8xf32>
    %95 = arith.select %93, %94, %91 : vector<8x8xi1>, vector<8x8xf32>
    %cst_40 = arith.constant dense<0xFF800000> : vector<8xf32>
    %96 = vector.multi_reduction <maximumf>, %95, %cst_40 [1] : vector<8x8xf32> to vector<8xf32>
    %97 = vector.shape_cast %96 : vector<8xf32> to vector<8x1xf32>
    %98 = vector.broadcast %97 : vector<8x1xf32> to vector<8x8xf32>
    %99 = arith.subf %95, %98 : vector<8x8xf32>
    %100 = math.exp %99 : vector<8x8xf32>
    %cst_41 = arith.constant dense<0.000000e+00> : vector<8xf32>
    %101 = vector.multi_reduction <add>, %100, %cst_41 [1] : vector<8x8xf32> to vector<8xf32>
    %102 = vector.shape_cast %101 : vector<8xf32> to vector<8x1xf32>
    %103 = tpu.reciprocal %102 {approx = true} : vector<8x1xf32> -> vector<8x1xf32>
    %104 = vector.broadcast %103 : vector<8x1xf32> to vector<8x8xf32>
    %105 = arith.mulf %100, %104 : vector<8x8xf32>
    %cst_42 = arith.constant dense<0.000000e+00> : vector<8x8xf32>
    %106 = tpu.matmul %105, %88, %cst_42 {dimension_numbers = #tpu.dot_dimension_numbers<[1], [0], [0], [1], [0, 0, 1, 1], [], []>} : vector<8x8xf32>, vector<8x8xf32>, vector<8x8xf32> -> vector<8x8xf32>
    %107 = vector.extract_strided_slice %12 {offsets = [24, 0], sizes = [8, 32], strides = [1, 1]} : vector<32x32xf32> to vector<8x32xf32>
    %cst_43 = arith.constant dense<0.000000e+00> : vector<8x32xf32>
    %108 = tpu.matmul %106, %107, %cst_43 {dimension_numbers = #tpu.dot_dimension_numbers<[1], [0], [0], [1], [0, 0, 1, 1], [], []>} : vector<8x8xf32>, vector<8x32xf32>, vector<8x32xf32> -> vector<8x32xf32>
    %109 = arith.addf %85, %108 : vector<8x32xf32>
    %c0_44 = arith.constant 0 : index
    %c0_45 = arith.constant 0 : index
    %110 = vector.load %arg8[%c0_44, %c0_45] : memref<1x32xf32, #tpu.memory_space<vmem>>, vector<1x32xf32>
    %111 = vector.broadcast %110 : vector<1x32xf32> to vector<8x32xf32>
    %112 = arith.addf %109, %111 : vector<8x32xf32>
    %113 = arith.addf %112, %1 : vector<8x32xf32>
    %cst_46 = arith.constant dense<0.000000e+00> : vector<8xf32>
    %114 = vector.multi_reduction <add>, %113, %cst_46 [1] : vector<8x32xf32> to vector<8xf32>
    %115 = vector.shape_cast %114 : vector<8xf32> to vector<8x1xf32>
    %cst_47 = arith.constant 3.200000e+01 : f32
    %116 = vector.broadcast %cst_47 : f32 to vector<8x1xf32>
    %117 = arith.divf %115, %116 : vector<8x1xf32>
    %118 = vector.broadcast %117 : vector<8x1xf32> to vector<8x32xf32>
    %119 = arith.subf %113, %118 : vector<8x32xf32>
    %120 = arith.mulf %119, %119 : vector<8x32xf32>
    %cst_48 = arith.constant dense<0.000000e+00> : vector<8xf32>
    %121 = vector.multi_reduction <add>, %120, %cst_48 [1] : vector<8x32xf32> to vector<8xf32>
    %122 = vector.shape_cast %121 : vector<8xf32> to vector<8x1xf32>
    %cst_49 = arith.constant 3.200000e+01 : f32
    %123 = vector.broadcast %cst_49 : f32 to vector<8x1xf32>
    %124 = arith.divf %122, %123 : vector<8x1xf32>
    %125 = vector.broadcast %117 : vector<8x1xf32> to vector<8x32xf32>
    %126 = arith.subf %113, %125 : vector<8x32xf32>
    %cst_50 = arith.constant 9.99999974E-6 : f32
    %127 = vector.broadcast %cst_50 : f32 to vector<8x1xf32>
    %128 = arith.addf %124, %127 : vector<8x1xf32>
    %129 = math.rsqrt %128 : vector<8x1xf32>
    %130 = vector.broadcast %129 : vector<8x1xf32> to vector<8x32xf32>
    %131 = arith.mulf %126, %130 : vector<8x32xf32>
    %c0_51 = arith.constant 0 : index
    %c0_52 = arith.constant 0 : index
    %132 = vector.load %arg9[%c0_51, %c0_52] : memref<1x32xf32, #tpu.memory_space<vmem>>, vector<1x32xf32>
    %133 = vector.broadcast %132 : vector<1x32xf32> to vector<8x32xf32>
    %134 = arith.mulf %131, %133 : vector<8x32xf32>
    %c0_53 = arith.constant 0 : index
    %c0_54 = arith.constant 0 : index
    %135 = vector.load %arg10[%c0_53, %c0_54] : memref<1x32xf32, #tpu.memory_space<vmem>>, vector<1x32xf32>
    %136 = vector.broadcast %135 : vector<1x32xf32> to vector<8x32xf32>
    %137 = arith.addf %134, %136 : vector<8x32xf32>
    %c0_55 = arith.constant 0 : index
    %c0_56 = arith.constant 0 : index
    %c0_57 = arith.constant 0 : index
    %138 = vector.load %arg2[%c0_55, %c0_56, %c0_57] : memref<1x8x32xf32, #tpu.memory_space<vmem>>, vector<1x8x32xf32>
    %139 = vector.shape_cast %138 : vector<1x8x32xf32> to vector<8x32xf32>
    %c0_58 = arith.constant 0 : index
    %c0_59 = arith.constant 0 : index
    %c0_60 = arith.constant 0 : index
    %140 = vector.load %arg4[%c0_58, %c0_59, %c0_60] : memref<1x8x8xf32, #tpu.memory_space<vmem>>, vector<1x8x8xf32>
    %141 = vector.shape_cast %140 : vector<1x8x8xf32> to vector<8x8xf32>
    %c0_61 = arith.constant 0 : index
    %c0_62 = arith.constant 0 : index
    %142 = vector.load %arg11[%c0_61, %c0_62] : memref<32x32xf32, #tpu.memory_space<vmem>>, vector<32x32xf32>
    %cst_63 = arith.constant dense<0.000000e+00> : vector<8x32xf32>
    %143 = tpu.matmul %137, %142, %cst_63 {dimension_numbers = #tpu.dot_dimension_numbers<[1], [0], [0], [1], [0, 0, 1, 1], [], []>} : vector<8x32xf32>, vector<32x32xf32>, vector<8x32xf32> -> vector<8x32xf32>
    %c0_64 = arith.constant 0 : index
    %c0_65 = arith.constant 0 : index
    %144 = vector.load %arg12[%c0_64, %c0_65] : memref<1x32xf32, #tpu.memory_space<vmem>>, vector<1x32xf32>
    %145 = vector.broadcast %144 : vector<1x32xf32> to vector<8x32xf32>
    %146 = arith.addf %143, %145 : vector<8x32xf32>
    %c0_66 = arith.constant 0 : index
    %c0_67 = arith.constant 0 : index
    %147 = vector.load %arg13[%c0_66, %c0_67] : memref<32x64xf32, #tpu.memory_space<vmem>>, vector<32x64xf32>
    %cst_68 = arith.constant dense<0.000000e+00> : vector<8x64xf32>
    %148 = tpu.matmul %139, %147, %cst_68 {dimension_numbers = #tpu.dot_dimension_numbers<[1], [0], [0], [1], [0, 0, 1, 1], [], []>} : vector<8x32xf32>, vector<32x64xf32>, vector<8x64xf32> -> vector<8x64xf32>
    %c0_69 = arith.constant 0 : index
    %c0_70 = arith.constant 0 : index
    %149 = vector.load %arg14[%c0_69, %c0_70] : memref<1x64xf32, #tpu.memory_space<vmem>>, vector<1x64xf32>
    %150 = vector.broadcast %149 : vector<1x64xf32> to vector<8x64xf32>
    %151 = arith.addf %148, %150 : vector<8x64xf32>
    %152 = vector.extract_strided_slice %151 {offsets = [0, 0], sizes = [8, 32], strides = [1, 1]} : vector<8x64xf32> to vector<8x32xf32>
    %153 = vector.extract_strided_slice %151 {offsets = [0, 32], sizes = [8, 32], strides = [1, 1]} : vector<8x64xf32> to vector<8x32xf32>
    %c0_71 = arith.constant 0 : index
    %c0_72 = arith.constant 0 : index
    %154 = vector.load %arg15[%c0_71, %c0_72] : memref<32x32xf32, #tpu.memory_space<vmem>>, vector<32x32xf32>
    %cst_73 = arith.constant 0.000000e+00 : f32
    %155 = vector.broadcast %cst_73 : f32 to vector<8x32xf32>
    %156 = vector.extract_strided_slice %146 {offsets = [0, 0], sizes = [8, 8], strides = [1, 1]} : vector<8x32xf32> to vector<8x8xf32>
    %157 = vector.extract_strided_slice %152 {offsets = [0, 0], sizes = [8, 8], strides = [1, 1]} : vector<8x32xf32> to vector<8x8xf32>
    %158 = vector.extract_strided_slice %153 {offsets = [0, 0], sizes = [8, 8], strides = [1, 1]} : vector<8x32xf32> to vector<8x8xf32>
    "tpu.trace_start"() <{level = 10 : i32, message = "qd,kd->qk"}> : () -> ()
    %cst_74 = arith.constant dense<0.000000e+00> : vector<8x8xf32>
    %159 = tpu.matmul %156, %157, %cst_74 {dimension_numbers = #tpu.dot_dimension_numbers<[1], [1], [0], [0], [0, 0, 1, 0], [], []>} : vector<8x8xf32>, vector<8x8xf32>, vector<8x8xf32> -> vector<8x8xf32>
    "tpu.trace_stop"() : () -> ()
    %cst_75 = arith.constant 0.353553385 : f32
    %160 = vector.broadcast %cst_75 : f32 to vector<8x8xf32>
    %161 = arith.mulf %159, %160 : vector<8x8xf32>
    %cst_76 = arith.constant 0.000000e+00 : f32
    %162 = vector.broadcast %cst_76 : f32 to vector<8x8xf32>
    %163 = arith.cmpf oeq, %141, %162 : vector<8x8xf32>
    %cst_77 = arith.constant -1.000000e+09 : f32
    %164 = vector.broadcast %cst_77 : f32 to vector<8x8xf32>
    %165 = arith.select %163, %164, %161 : vector<8x8xi1>, vector<8x8xf32>
    %cst_78 = arith.constant dense<0xFF800000> : vector<8xf32>
    %166 = vector.multi_reduction <maximumf>, %165, %cst_78 [1] : vector<8x8xf32> to vector<8xf32>
    %167 = vector.shape_cast %166 : vector<8xf32> to vector<8x1xf32>
    %168 = vector.broadcast %167 : vector<8x1xf32> to vector<8x8xf32>
    %169 = arith.subf %165, %168 : vector<8x8xf32>
    %170 = math.exp %169 : vector<8x8xf32>
    %cst_79 = arith.constant dense<0.000000e+00> : vector<8xf32>
    %171 = vector.multi_reduction <add>, %170, %cst_79 [1] : vector<8x8xf32> to vector<8xf32>
    %172 = vector.shape_cast %171 : vector<8xf32> to vector<8x1xf32>
    %173 = tpu.reciprocal %172 {approx = true} : vector<8x1xf32> -> vector<8x1xf32>
    %174 = vector.broadcast %173 : vector<8x1xf32> to vector<8x8xf32>
    %175 = arith.mulf %170, %174 : vector<8x8xf32>
    %cst_80 = arith.constant dense<0.000000e+00> : vector<8x8xf32>
    %176 = tpu.matmul %175, %158, %cst_80 {dimension_numbers = #tpu.dot_dimension_numbers<[1], [0], [0], [1], [0, 0, 1, 1], [], []>} : vector<8x8xf32>, vector<8x8xf32>, vector<8x8xf32> -> vector<8x8xf32>
    %177 = vector.extract_strided_slice %154 {offsets = [0, 0], sizes = [8, 32], strides = [1, 1]} : vector<32x32xf32> to vector<8x32xf32>
    %cst_81 = arith.constant dense<0.000000e+00> : vector<8x32xf32>
    %178 = tpu.matmul %176, %177, %cst_81 {dimension_numbers = #tpu.dot_dimension_numbers<[1], [0], [0], [1], [0, 0, 1, 1], [], []>} : vector<8x8xf32>, vector<8x32xf32>, vector<8x32xf32> -> vector<8x32xf32>
    %179 = arith.addf %155, %178 : vector<8x32xf32>
    %180 = vector.extract_strided_slice %146 {offsets = [0, 8], sizes = [8, 8], strides = [1, 1]} : vector<8x32xf32> to vector<8x8xf32>
    %181 = vector.extract_strided_slice %152 {offsets = [0, 8], sizes = [8, 8], strides = [1, 1]} : vector<8x32xf32> to vector<8x8xf32>
    %182 = vector.extract_strided_slice %153 {offsets = [0, 8], sizes = [8, 8], strides = [1, 1]} : vector<8x32xf32> to vector<8x8xf32>
    "tpu.trace_start"() <{level = 10 : i32, message = "qd,kd->qk"}> : () -> ()
    %cst_82 = arith.constant dense<0.000000e+00> : vector<8x8xf32>
    %183 = tpu.matmul %180, %181, %cst_82 {dimension_numbers = #tpu.dot_dimension_numbers<[1], [1], [0], [0], [0, 0, 1, 0], [], []>} : vector<8x8xf32>, vector<8x8xf32>, vector<8x8xf32> -> vector<8x8xf32>
    "tpu.trace_stop"() : () -> ()
    %cst_83 = arith.constant 0.353553385 : f32
    %184 = vector.broadcast %cst_83 : f32 to vector<8x8xf32>
    %185 = arith.mulf %183, %184 : vector<8x8xf32>
    %cst_84 = arith.constant 0.000000e+00 : f32
    %186 = vector.broadcast %cst_84 : f32 to vector<8x8xf32>
    %187 = arith.cmpf oeq, %141, %186 : vector<8x8xf32>
    %cst_85 = arith.constant -1.000000e+09 : f32
    %188 = vector.broadcast %cst_85 : f32 to vector<8x8xf32>
    %189 = arith.select %187, %188, %185 : vector<8x8xi1>, vector<8x8xf32>
    %cst_86 = arith.constant dense<0xFF800000> : vector<8xf32>
    %190 = vector.multi_reduction <maximumf>, %189, %cst_86 [1] : vector<8x8xf32> to vector<8xf32>
    %191 = vector.shape_cast %190 : vector<8xf32> to vector<8x1xf32>
    %192 = vector.broadcast %191 : vector<8x1xf32> to vector<8x8xf32>
    %193 = arith.subf %189, %192 : vector<8x8xf32>
    %194 = math.exp %193 : vector<8x8xf32>
    %cst_87 = arith.constant dense<0.000000e+00> : vector<8xf32>
    %195 = vector.multi_reduction <add>, %194, %cst_87 [1] : vector<8x8xf32> to vector<8xf32>
    %196 = vector.shape_cast %195 : vector<8xf32> to vector<8x1xf32>
    %197 = tpu.reciprocal %196 {approx = true} : vector<8x1xf32> -> vector<8x1xf32>
    %198 = vector.broadcast %197 : vector<8x1xf32> to vector<8x8xf32>
    %199 = arith.mulf %194, %198 : vector<8x8xf32>
    %cst_88 = arith.constant dense<0.000000e+00> : vector<8x8xf32>
    %200 = tpu.matmul %199, %182, %cst_88 {dimension_numbers = #tpu.dot_dimension_numbers<[1], [0], [0], [1], [0, 0, 1, 1], [], []>} : vector<8x8xf32>, vector<8x8xf32>, vector<8x8xf32> -> vector<8x8xf32>
    %201 = vector.extract_strided_slice %154 {offsets = [8, 0], sizes = [8, 32], strides = [1, 1]} : vector<32x32xf32> to vector<8x32xf32>
    %cst_89 = arith.constant dense<0.000000e+00> : vector<8x32xf32>
    %202 = tpu.matmul %200, %201, %cst_89 {dimension_numbers = #tpu.dot_dimension_numbers<[1], [0], [0], [1], [0, 0, 1, 1], [], []>} : vector<8x8xf32>, vector<8x32xf32>, vector<8x32xf32> -> vector<8x32xf32>
    %203 = arith.addf %179, %202 : vector<8x32xf32>
    %204 = vector.extract_strided_slice %146 {offsets = [0, 16], sizes = [8, 8], strides = [1, 1]} : vector<8x32xf32> to vector<8x8xf32>
    %205 = vector.extract_strided_slice %152 {offsets = [0, 16], sizes = [8, 8], strides = [1, 1]} : vector<8x32xf32> to vector<8x8xf32>
    %206 = vector.extract_strided_slice %153 {offsets = [0, 16], sizes = [8, 8], strides = [1, 1]} : vector<8x32xf32> to vector<8x8xf32>
    "tpu.trace_start"() <{level = 10 : i32, message = "qd,kd->qk"}> : () -> ()
    %cst_90 = arith.constant dense<0.000000e+00> : vector<8x8xf32>
    %207 = tpu.matmul %204, %205, %cst_90 {dimension_numbers = #tpu.dot_dimension_numbers<[1], [1], [0], [0], [0, 0, 1, 0], [], []>} : vector<8x8xf32>, vector<8x8xf32>, vector<8x8xf32> -> vector<8x8xf32>
    "tpu.trace_stop"() : () -> ()
    %cst_91 = arith.constant 0.353553385 : f32
    %208 = vector.broadcast %cst_91 : f32 to vector<8x8xf32>
    %209 = arith.mulf %207, %208 : vector<8x8xf32>
    %cst_92 = arith.constant 0.000000e+00 : f32
    %210 = vector.broadcast %cst_92 : f32 to vector<8x8xf32>
    %211 = arith.cmpf oeq, %141, %210 : vector<8x8xf32>
    %cst_93 = arith.constant -1.000000e+09 : f32
    %212 = vector.broadcast %cst_93 : f32 to vector<8x8xf32>
    %213 = arith.select %211, %212, %209 : vector<8x8xi1>, vector<8x8xf32>
    %cst_94 = arith.constant dense<0xFF800000> : vector<8xf32>
    %214 = vector.multi_reduction <maximumf>, %213, %cst_94 [1] : vector<8x8xf32> to vector<8xf32>
    %215 = vector.shape_cast %214 : vector<8xf32> to vector<8x1xf32>
    %216 = vector.broadcast %215 : vector<8x1xf32> to vector<8x8xf32>
    %217 = arith.subf %213, %216 : vector<8x8xf32>
    %218 = math.exp %217 : vector<8x8xf32>
    %cst_95 = arith.constant dense<0.000000e+00> : vector<8xf32>
    %219 = vector.multi_reduction <add>, %218, %cst_95 [1] : vector<8x8xf32> to vector<8xf32>
    %220 = vector.shape_cast %219 : vector<8xf32> to vector<8x1xf32>
    %221 = tpu.reciprocal %220 {approx = true} : vector<8x1xf32> -> vector<8x1xf32>
    %222 = vector.broadcast %221 : vector<8x1xf32> to vector<8x8xf32>
    %223 = arith.mulf %218, %222 : vector<8x8xf32>
    %cst_96 = arith.constant dense<0.000000e+00> : vector<8x8xf32>
    %224 = tpu.matmul %223, %206, %cst_96 {dimension_numbers = #tpu.dot_dimension_numbers<[1], [0], [0], [1], [0, 0, 1, 1], [], []>} : vector<8x8xf32>, vector<8x8xf32>, vector<8x8xf32> -> vector<8x8xf32>
    %225 = vector.extract_strided_slice %154 {offsets = [16, 0], sizes = [8, 32], strides = [1, 1]} : vector<32x32xf32> to vector<8x32xf32>
    %cst_97 = arith.constant dense<0.000000e+00> : vector<8x32xf32>
    %226 = tpu.matmul %224, %225, %cst_97 {dimension_numbers = #tpu.dot_dimension_numbers<[1], [0], [0], [1], [0, 0, 1, 1], [], []>} : vector<8x8xf32>, vector<8x32xf32>, vector<8x32xf32> -> vector<8x32xf32>
    %227 = arith.addf %203, %226 : vector<8x32xf32>
    %228 = vector.extract_strided_slice %146 {offsets = [0, 24], sizes = [8, 8], strides = [1, 1]} : vector<8x32xf32> to vector<8x8xf32>
    %229 = vector.extract_strided_slice %152 {offsets = [0, 24], sizes = [8, 8], strides = [1, 1]} : vector<8x32xf32> to vector<8x8xf32>
    %230 = vector.extract_strided_slice %153 {offsets = [0, 24], sizes = [8, 8], strides = [1, 1]} : vector<8x32xf32> to vector<8x8xf32>
    "tpu.trace_start"() <{level = 10 : i32, message = "qd,kd->qk"}> : () -> ()
    %cst_98 = arith.constant dense<0.000000e+00> : vector<8x8xf32>
    %231 = tpu.matmul %228, %229, %cst_98 {dimension_numbers = #tpu.dot_dimension_numbers<[1], [1], [0], [0], [0, 0, 1, 0], [], []>} : vector<8x8xf32>, vector<8x8xf32>, vector<8x8xf32> -> vector<8x8xf32>
    "tpu.trace_stop"() : () -> ()
    %cst_99 = arith.constant 0.353553385 : f32
    %232 = vector.broadcast %cst_99 : f32 to vector<8x8xf32>
    %233 = arith.mulf %231, %232 : vector<8x8xf32>
    %cst_100 = arith.constant 0.000000e+00 : f32
    %234 = vector.broadcast %cst_100 : f32 to vector<8x8xf32>
    %235 = arith.cmpf oeq, %141, %234 : vector<8x8xf32>
    %cst_101 = arith.constant -1.000000e+09 : f32
    %236 = vector.broadcast %cst_101 : f32 to vector<8x8xf32>
    %237 = arith.select %235, %236, %233 : vector<8x8xi1>, vector<8x8xf32>
    %cst_102 = arith.constant dense<0xFF800000> : vector<8xf32>
    %238 = vector.multi_reduction <maximumf>, %237, %cst_102 [1] : vector<8x8xf32> to vector<8xf32>
    %239 = vector.shape_cast %238 : vector<8xf32> to vector<8x1xf32>
    %240 = vector.broadcast %239 : vector<8x1xf32> to vector<8x8xf32>
    %241 = arith.subf %237, %240 : vector<8x8xf32>
    %242 = math.exp %241 : vector<8x8xf32>
    %cst_103 = arith.constant dense<0.000000e+00> : vector<8xf32>
    %243 = vector.multi_reduction <add>, %242, %cst_103 [1] : vector<8x8xf32> to vector<8xf32>
    %244 = vector.shape_cast %243 : vector<8xf32> to vector<8x1xf32>
    %245 = tpu.reciprocal %244 {approx = true} : vector<8x1xf32> -> vector<8x1xf32>
    %246 = vector.broadcast %245 : vector<8x1xf32> to vector<8x8xf32>
    %247 = arith.mulf %242, %246 : vector<8x8xf32>
    %cst_104 = arith.constant dense<0.000000e+00> : vector<8x8xf32>
    %248 = tpu.matmul %247, %230, %cst_104 {dimension_numbers = #tpu.dot_dimension_numbers<[1], [0], [0], [1], [0, 0, 1, 1], [], []>} : vector<8x8xf32>, vector<8x8xf32>, vector<8x8xf32> -> vector<8x8xf32>
    %249 = vector.extract_strided_slice %154 {offsets = [24, 0], sizes = [8, 32], strides = [1, 1]} : vector<32x32xf32> to vector<8x32xf32>
    %cst_105 = arith.constant dense<0.000000e+00> : vector<8x32xf32>
    %250 = tpu.matmul %248, %249, %cst_105 {dimension_numbers = #tpu.dot_dimension_numbers<[1], [0], [0], [1], [0, 0, 1, 1], [], []>} : vector<8x8xf32>, vector<8x32xf32>, vector<8x32xf32> -> vector<8x32xf32>
    %251 = arith.addf %227, %250 : vector<8x32xf32>
    %c0_106 = arith.constant 0 : index
    %c0_107 = arith.constant 0 : index
    %252 = vector.load %arg16[%c0_106, %c0_107] : memref<1x32xf32, #tpu.memory_space<vmem>>, vector<1x32xf32>
    %253 = vector.broadcast %252 : vector<1x32xf32> to vector<8x32xf32>
    %254 = arith.addf %251, %253 : vector<8x32xf32>
    %255 = arith.addf %254, %137 : vector<8x32xf32>
    %cst_108 = arith.constant dense<0.000000e+00> : vector<8xf32>
    %256 = vector.multi_reduction <add>, %255, %cst_108 [1] : vector<8x32xf32> to vector<8xf32>
    %257 = vector.shape_cast %256 : vector<8xf32> to vector<8x1xf32>
    %cst_109 = arith.constant 3.200000e+01 : f32
    %258 = vector.broadcast %cst_109 : f32 to vector<8x1xf32>
    %259 = arith.divf %257, %258 : vector<8x1xf32>
    %260 = vector.broadcast %259 : vector<8x1xf32> to vector<8x32xf32>
    %261 = arith.subf %255, %260 : vector<8x32xf32>
    %262 = arith.mulf %261, %261 : vector<8x32xf32>
    %cst_110 = arith.constant dense<0.000000e+00> : vector<8xf32>
    %263 = vector.multi_reduction <add>, %262, %cst_110 [1] : vector<8x32xf32> to vector<8xf32>
    %264 = vector.shape_cast %263 : vector<8xf32> to vector<8x1xf32>
    %cst_111 = arith.constant 3.200000e+01 : f32
    %265 = vector.broadcast %cst_111 : f32 to vector<8x1xf32>
    %266 = arith.divf %264, %265 : vector<8x1xf32>
    %267 = vector.broadcast %259 : vector<8x1xf32> to vector<8x32xf32>
    %268 = arith.subf %255, %267 : vector<8x32xf32>
    %cst_112 = arith.constant 9.99999974E-6 : f32
    %269 = vector.broadcast %cst_112 : f32 to vector<8x1xf32>
    %270 = arith.addf %266, %269 : vector<8x1xf32>
    %271 = math.rsqrt %270 : vector<8x1xf32>
    %272 = vector.broadcast %271 : vector<8x1xf32> to vector<8x32xf32>
    %273 = arith.mulf %268, %272 : vector<8x32xf32>
    %c0_113 = arith.constant 0 : index
    %c0_114 = arith.constant 0 : index
    %274 = vector.load %arg17[%c0_113, %c0_114] : memref<1x32xf32, #tpu.memory_space<vmem>>, vector<1x32xf32>
    %275 = vector.broadcast %274 : vector<1x32xf32> to vector<8x32xf32>
    %276 = arith.mulf %273, %275 : vector<8x32xf32>
    %c0_115 = arith.constant 0 : index
    %c0_116 = arith.constant 0 : index
    %277 = vector.load %arg18[%c0_115, %c0_116] : memref<1x32xf32, #tpu.memory_space<vmem>>, vector<1x32xf32>
    %278 = vector.broadcast %277 : vector<1x32xf32> to vector<8x32xf32>
    %279 = arith.addf %276, %278 : vector<8x32xf32>
    %c0_117 = arith.constant 0 : index
    %c0_118 = arith.constant 0 : index
    %280 = vector.load %arg19[%c0_117, %c0_118] : memref<32x64xf32, #tpu.memory_space<vmem>>, vector<32x64xf32>
    %cst_119 = arith.constant dense<0.000000e+00> : vector<8x64xf32>
    %281 = tpu.matmul %279, %280, %cst_119 {dimension_numbers = #tpu.dot_dimension_numbers<[1], [0], [0], [1], [0, 0, 1, 1], [], []>} : vector<8x32xf32>, vector<32x64xf32>, vector<8x64xf32> -> vector<8x64xf32>
    %c0_120 = arith.constant 0 : index
    %c0_121 = arith.constant 0 : index
    %282 = vector.load %arg20[%c0_120, %c0_121] : memref<1x64xf32, #tpu.memory_space<vmem>>, vector<1x64xf32>
    %283 = vector.broadcast %282 : vector<1x64xf32> to vector<8x64xf32>
    %284 = arith.addf %281, %283 : vector<8x64xf32>
    %cst_122 = arith.constant 0.000000e+00 : f32
    %285 = vector.broadcast %cst_122 : f32 to vector<8x64xf32>
    %286 = arith.maximumf %284, %285 : vector<8x64xf32>
    %c0_123 = arith.constant 0 : index
    %c0_124 = arith.constant 0 : index
    %287 = vector.load %arg21[%c0_123, %c0_124] : memref<64x32xf32, #tpu.memory_space<vmem>>, vector<64x32xf32>
    %cst_125 = arith.constant dense<0.000000e+00> : vector<8x32xf32>
    %288 = tpu.matmul %286, %287, %cst_125 {dimension_numbers = #tpu.dot_dimension_numbers<[1], [0], [0], [1], [0, 0, 1, 1], [], []>} : vector<8x64xf32>, vector<64x32xf32>, vector<8x32xf32> -> vector<8x32xf32>
    %c0_126 = arith.constant 0 : index
    %c0_127 = arith.constant 0 : index
    %289 = vector.load %arg22[%c0_126, %c0_127] : memref<1x32xf32, #tpu.memory_space<vmem>>, vector<1x32xf32>
    %290 = vector.broadcast %289 : vector<1x32xf32> to vector<8x32xf32>
    %291 = arith.addf %288, %290 : vector<8x32xf32>
    %c0_128 = arith.constant 0 : index
    %c0_129 = arith.constant 0 : index
    %c0_130 = arith.constant 0 : index
    %292 = vector.load %arg23[%c0_128, %c0_129, %c0_130] : memref<1x8x32xf32, #tpu.memory_space<vmem>>, vector<1x8x32xf32>
    %293 = vector.shape_cast %292 : vector<1x8x32xf32> to vector<8x32xf32>
    %294 = vector.shape_cast %291 : vector<8x32xf32> to vector<1x8x32xf32>
    tpu.vector_store %arg23[%c0_128, %c0_129, %c0_130], %294 {strides = array<i32>} : memref<1x8x32xf32, #tpu.memory_space<vmem>>, vector<1x8x32xf32>,
    return
  }
  func.func @transform_0(%arg0: i32) -> (i32, i32, i32) {
    %c0_i32 = arith.constant 0 : i32
    %c0_i32_0 = arith.constant 0 : i32
    %c0_i32_1 = arith.constant 0 : i32
    return %arg0, %c0_i32, %c0_i32_0 : i32, i32, i32
  }
  func.func @transform_1(%arg0: i32) -> (i32, i32, i32) {
    %c0_i32 = arith.constant 0 : i32
    %c0_i32_0 = arith.constant 0 : i32
    %c0_i32_1 = arith.constant 0 : i32
    return %arg0, %c0_i32, %c0_i32_0 : i32, i32, i32
  }
  func.func @transform_2(%arg0: i32) -> (i32, i32, i32) {
    %c0_i32 = arith.constant 0 : i32
    %c0_i32_0 = arith.constant 0 : i32
    %c0_i32_1 = arith.constant 0 : i32
    return %arg0, %c0_i32, %c0_i32_0 : i32, i32, i32
  }
  func.func @transform_3(%arg0: i32) -> (i32, i32, i32) {
    %c0_i32 = arith.constant 0 : i32
    %c0_i32_0 = arith.constant 0 : i32
    %c0_i32_1 = arith.constant 0 : i32
    return %arg0, %c0_i32, %c0_i32_0 : i32, i32, i32
  }
  func.func @transform_4(%arg0: i32) -> (i32, i32) {
    %c0_i32 = arith.constant 0 : i32
    %c0_i32_0 = arith.constant 0 : i32
    %c0_i32_1 = arith.constant 0 : i32
    return %c0_i32, %c0_i32_0 : i32, i32
  }
  func.func @transform_5(%arg0: i32) -> (i32, i32) {
    %c0_i32 = arith.constant 0 : i32
    %c0_i32_0 = arith.constant 0 : i32
    %c0_i32_1 = arith.constant 0 : i32
    return %c0_i32, %c0_i32_0 : i32, i32
  }
  func.func @transform_6(%arg0: i32) -> (i32, i32) {
    %c0_i32 = arith.constant 0 : i32
    %c0_i32_0 = arith.constant 0 : i32
    %c0_i32_1 = arith.constant 0 : i32
    return %c0_i32, %c0_i32_0 : i32, i32
  }
  func.func @transform_7(%arg0: i32) -> (i32, i32) {
    %c0_i32 = arith.constant 0 : i32
    %c0_i32_0 = arith.constant 0 : i32
    %c0_i32_1 = arith.constant 0 : i32
    return %c0_i32, %c0_i32_0 : i32, i32
  }
  func.func @transform_8(%arg0: i32) -> (i32, i32) {
    %c0_i32 = arith.constant 0 : i32
    %c0_i32_0 = arith.constant 0 : i32
    %c0_i32_1 = arith.constant 0 : i32
    return %c0_i32, %c0_i32_0 : i32, i32
  }
  func.func @transform_9(%arg0: i32) -> (i32, i32) {
    %c0_i32 = arith.constant 0 : i32
    %c0_i32_0 = arith.constant 0 : i32
    %c0_i32_1 = arith.constant 0 : i32
    return %c0_i32, %c0_i32_0 : i32, i32
  }
  func.func @transform_10(%arg0: i32) -> (i32, i32) {
    %c0_i32 = arith.constant 0 : i32
    %c0_i32_0 = arith.constant 0 : i32
    %c0_i32_1 = arith.constant 0 : i32
    return %c0_i32, %c0_i32_0 : i32, i32
  }
  func.func @transform_11(%arg0: i32) -> (i32, i32) {
    %c0_i32 = arith.constant 0 : i32
    %c0_i32_0 = arith.constant 0 : i32
    %c0_i32_1 = arith.constant 0 : i32
    return %c0_i32, %c0_i32_0 : i32, i32
  }
  func.func @transform_12(%arg0: i32) -> (i32, i32) {
    %c0_i32 = arith.constant 0 : i32
    %c0_i32_0 = arith.constant 0 : i32
    %c0_i32_1 = arith.constant 0 : i32
    return %c0_i32, %c0_i32_0 : i32, i32
  }
  func.func @transform_13(%arg0: i32) -> (i32, i32) {
    %c0_i32 = arith.constant 0 : i32
    %c0_i32_0 = arith.constant 0 : i32
    %c0_i32_1 = arith.constant 0 : i32
    return %c0_i32, %c0_i32_0 : i32, i32
  }
  func.func @transform_14(%arg0: i32) -> (i32, i32) {
    %c0_i32 = arith.constant 0 : i32
    %c0_i32_0 = arith.constant 0 : i32
    %c0_i32_1 = arith.constant 0 : i32
    return %c0_i32, %c0_i32_0 : i32, i32
  }
  func.func @transform_15(%arg0: i32) -> (i32, i32) {
    %c0_i32 = arith.constant 0 : i32
    %c0_i32_0 = arith.constant 0 : i32
    %c0_i32_1 = arith.constant 0 : i32
    return %c0_i32, %c0_i32_0 : i32, i32
  }
  func.func @transform_16(%arg0: i32) -> (i32, i32) {
    %c0_i32 = arith.constant 0 : i32
    %c0_i32_0 = arith.constant 0 : i32
    %c0_i32_1 = arith.constant 0 : i32
    return %c0_i32, %c0_i32_0 : i32, i32
  }
  func.func @transform_17(%arg0: i32) -> (i32, i32) {
    %c0_i32 = arith.constant 0 : i32
    %c0_i32_0 = arith.constant 0 : i32
    %c0_i32_1 = arith.constant 0 : i32
    return %c0_i32, %c0_i32_0 : i32, i32
  }
  func.func @transform_18(%arg0: i32) -> (i32, i32) {
    %c0_i32 = arith.constant 0 : i32
    %c0_i32_0 = arith.constant 0 : i32
    %c0_i32_1 = arith.constant 0 : i32
    return %c0_i32, %c0_i32_0 : i32, i32
  }
  func.func @transform_19(%arg0: i32) -> (i32, i32) {
    %c0_i32 = arith.constant 0 : i32
    %c0_i32_0 = arith.constant 0 : i32
    %c0_i32_1 = arith.constant 0 : i32
    return %c0_i32, %c0_i32_0 : i32, i32
  }
  func.func @transform_20(%arg0: i32) -> (i32, i32) {
    %c0_i32 = arith.constant 0 : i32
    %c0_i32_0 = arith.constant 0 : i32
    %c0_i32_1 = arith.constant 0 : i32
    return %c0_i32, %c0_i32_0 : i32, i32
  }
  func.func @transform_21(%arg0: i32) -> (i32, i32) {
    %c0_i32 = arith.constant 0 : i32
    %c0_i32_0 = arith.constant 0 : i32
    %c0_i32_1 = arith.constant 0 : i32
    return %c0_i32, %c0_i32_0 : i32, i32
  }
  func.func @transform_22(%arg0: i32) -> (i32, i32, i32) {
    %c0_i32 = arith.constant 0 : i32
    %c0_i32_0 = arith.constant 0 : i32
    %c0_i32_1 = arith.constant 0 : i32
    return %arg0, %c0_i32, %c0_i32_0 : i32, i32, i32
  }
}

module attributes {stable_mosaic.version = 11 : i64} {
  func.func @_decoder_layer_kernel(%arg0: i32, %arg1: memref<1x8x32xf32, #tpu.memory_space<vmem>>, %arg2: memref<1x8x32xf32, #tpu.memory_space<vmem>>, %arg3: memref<1x8x8xf32, #tpu.memory_space<vmem>>, %arg4: memref<1x8x8xf32, #tpu.memory_space<vmem>>, %arg5: memref<32x96xf32, #tpu.memory_space<vmem>>, %arg6: memref<1x96xf32, #tpu.memory_space<vmem>>, %arg7: memref<32x32xf32, #tpu.memory_space<vmem>>, %arg8: memref<1x32xf32, #tpu.memory_space<vmem>>, %arg9: memref<1x32xf32, #tpu.memory_space<vmem>>, %arg10: memref<1x32xf32, #tpu.memory_space<vmem>>, %arg11: memref<32x32xf32, #tpu.memory_space<vmem>>, %arg12: memref<1x32xf32, #tpu.memory_space<vmem>>, %arg13: memref<32x64xf32, #tpu.memory_space<vmem>>, %arg14: memref<1x64xf32, #tpu.memory_space<vmem>>, %arg15: memref<32x32xf32, #tpu.memory_space<vmem>>, %arg16: memref<1x32xf32, #tpu.memory_space<vmem>>, %arg17: memref<1x32xf32, #tpu.memory_space<vmem>>, %arg18: memref<1x32xf32, #tpu.memory_space<vmem>>, %arg19: memref<32x64xf32, #tpu.memory_space<vmem>>, %arg20: memref<1x64xf32, #tpu.memory_space<vmem>>, %arg21: memref<64x32xf32, #tpu.memory_space<vmem>>, %arg22: memref<1x32xf32, #tpu.memory_space<vmem>>, %arg23: memref<1x8x32xf32, #tpu.memory_space<vmem>>) attributes {dimension_semantics = [#tpu.dimension_semantics<parallel>], iteration_bounds = array<i64: 2>, scalar_prefetch = 0 : i64, scratch_operands = 0 : i64, tpu.core_type = #tpu.core_type<tc>, window_params = [{transform_indices = @transform_0, window_bounds = array<i64: 1, 8, 32>}, {transform_indices = @transform_1, window_bounds = array<i64: 1, 8, 32>}, {transform_indices = @transform_2, window_bounds = array<i64: 1, 8, 8>}, {transform_indices = @transform_3, window_bounds = array<i64: 1, 8, 8>}, {pipeline_mode = #tpu.pipeline_mode<synchronous>, transform_indices = @transform_4, window_bounds = array<i64: 32, 96>}, {pipeline_mode = #tpu.pipeline_mode<synchronous>, transform_indices = @transform_5, window_bounds = array<i64: 1, 96>}, {pipeline_mode = #tpu.pipeline_mode<synchronous>, transform_indices = @transform_6, window_bounds = array<i64: 32, 32>}, {pipeline_mode = #tpu.pipeline_mode<synchronous>, transform_indices = @transform_7, window_bounds = array<i64: 1, 32>}, {pipeline_mode = #tpu.pipeline_mode<synchronous>, transform_indices = @transform_8, window_bounds = array<i64: 1, 32>}, {pipeline_mode = #tpu.pipeline_mode<synchronous>, transform_indices = @transform_9, window_bounds = array<i64: 1, 32>}, {pipeline_mode = #tpu.pipeline_mode<synchronous>, transform_indices = @transform_10, window_bounds = array<i64: 32, 32>}, {pipeline_mode = #tpu.pipeline_mode<synchronous>, transform_indices = @transform_11, window_bounds = array<i64: 1, 32>}, {pipeline_mode = #tpu.pipeline_mode<synchronous>, transform_indices = @transform_12, window_bounds = array<i64: 32, 64>}, {pipeline_mode = #tpu.pipeline_mode<synchronous>, transform_indices = @transform_13, window_bounds = array<i64: 1, 64>}, {pipeline_mode = #tpu.pipeline_mode<synchronous>, transform_indices = @transform_14, window_bounds = array<i64: 32, 32>}, {pipeline_mode = #tpu.pipeline_mode<synchronous>, transform_indices = @transform_15, window_bounds = array<i64: 1, 32>}, {pipeline_mode = #tpu.pipeline_mode<synchronous>, transform_indices = @transform_16, window_bounds = array<i64: 1, 32>}, {pipeline_mode = #tpu.pipeline_mode<synchronous>, transform_indices = @transform_17, window_bounds = array<i64: 1, 32>}, {pipeline_mode = #tpu.pipeline_mode<synchronous>, transform_indices = @transform_18, window_bounds = array<i64: 32, 64>}, {pipeline_mode = #tpu.pipeline_mode<synchronous>, transform_indices = @transform_19, window_bounds = array<i64: 1, 64>}, {pipeline_mode = #tpu.pipeline_mode<synchronous>, transform_indices = @transform_20, window_bounds = array<i64: 64, 32>}, {pipeline_mode = #tpu.pipeline_mode<synchronous>, transform_indices = @transform_21, window_bounds = array<i64: 1, 32>}, {transform_indices = @transform_22, window_bounds = array<i64: 1, 8, 32>}]} {
    %c0 = arith.constant 0 : index
    %c0_0 = arith.constant 0 : index
    %c0_1 = arith.constant 0 : index
    %0 = vector.load %arg1[%c0, %c0_0, %c0_1] : memref<1x8x32xf32, #tpu.memory_space<vmem>>, vector<1x8x32xf32>
    %1 = vector.shape_cast %0 : vector<1x8x32xf32> to vector<8x32xf32>
    %c0_2 = arith.constant 0 : index
    %c0_3 = arith.constant 0 : index
    %c0_4 = arith.constant 0 : index
    %2 = vector.load %arg3[%c0_2, %c0_3, %c0_4] : memref<1x8x8xf32, #tpu.memory_space<vmem>>, vector<1x8x8xf32>
    %3 = vector.shape_cast %2 : vector<1x8x8xf32> to vector<8x8xf32>
    %c0_5 = arith.constant 0 : index
    %c0_6 = arith.constant 0 : index
    %4 = vector.load %arg5[%c0_5, %c0_6] : memref<32x96xf32, #tpu.memory_space<vmem>>, vector<32x96xf32>
    %cst = arith.constant dense<0.000000e+00> : vector<8x96xf32>
    %5 = tpu.matmul %1, %4, %cst {dimension_numbers = #tpu.dot_dimension_numbers<[1], [0], [0], [1], [0, 0, 1, 1], [], []>} : vector<8x32xf32>, vector<32x96xf32>, vector<8x96xf32> -> vector<8x96xf32>
    %c0_7 = arith.constant 0 : index
    %c0_8 = arith.constant 0 : index
    %6 = vector.load %arg6[%c0_7, %c0_8] : memref<1x96xf32, #tpu.memory_space<vmem>>, vector<1x96xf32>
    %7 = vector.broadcast %6 : vector<1x96xf32> to vector<8x96xf32>
    %8 = arith.addf %5, %7 : vector<8x96xf32>
    %9 = vector.extract_strided_slice %8 {offsets = [0, 0], sizes = [8, 32], strides = [1, 1]} : vector<8x96xf32> to vector<8x32xf32>
    %10 = vector.extract_strided_slice %8 {offsets = [0, 32], sizes = [8, 32], strides = [1, 1]} : vector<8x96xf32> to vector<8x32xf32>
    %11 = vector.extract_strided_slice %8 {offsets = [0, 64], sizes = [8, 32], strides = [1, 1]} : vector<8x96xf32> to vector<8x32xf32>
    %c0_9 = arith.constant 0 : index
    %c0_10 = arith.constant 0 : index
    %12 = vector.load %arg7[%c0_9, %c0_10] : memref<32x32xf32, #tpu.memory_space<vmem>>, vector<32x32xf32>
    %cst_11 = arith.constant 0.000000e+00 : f32
    %13 = vector.broadcast %cst_11 : f32 to vector<8x32xf32>
    %14 = vector.extract_strided_slice %9 {offsets = [0, 0], sizes = [8, 8], strides = [1, 1]} : vector<8x32xf32> to vector<8x8xf32>
    %15 = vector.extract_strided_slice %10 {offsets = [0, 0], sizes = [8, 8], strides = [1, 1]} : vector<8x32xf32> to vector<8x8xf32>
    %16 = vector.extract_strided_slice %11 {offsets = [0, 0], sizes = [8, 8], strides = [1, 1]} : vector<8x32xf32> to vector<8x8xf32>
    "tpu.trace_start"() <{level = 10 : i32, message = "qd,kd->qk"}> : () -> ()
    %cst_12 = arith.constant dense<0.000000e+00> : vector<8x8xf32>
    %17 = tpu.matmul %14, %15, %cst_12 {dimension_numbers = #tpu.dot_dimension_numbers<[1], [1], [0], [0], [0, 0, 1, 0], [], []>} : vector<8x8xf32>, vector<8x8xf32>, vector<8x8xf32> -> vector<8x8xf32>
    "tpu.trace_stop"() : () -> ()
    %cst_13 = arith.constant 0.353553385 : f32
    %18 = vector.broadcast %cst_13 : f32 to vector<8x8xf32>
    %19 = arith.mulf %17, %18 : vector<8x8xf32>
    %cst_14 = arith.constant 0.000000e+00 : f32
    %20 = vector.broadcast %cst_14 : f32 to vector<8x8xf32>
    %21 = arith.cmpf oeq, %3, %20 : vector<8x8xf32>
    %cst_15 = arith.constant -1.000000e+09 : f32
    %22 = vector.broadcast %cst_15 : f32 to vector<8x8xf32>
    %23 = arith.select %21, %22, %19 : vector<8x8xi1>, vector<8x8xf32>
    %cst_16 = arith.constant dense<0xFF800000> : vector<8xf32>
    %24 = vector.multi_reduction <maximumf>, %23, %cst_16 [1] : vector<8x8xf32> to vector<8xf32>
    %25 = vector.shape_cast %24 : vector<8xf32> to vector<8x1xf32>
    %26 = vector.broadcast %25 : vector<8x1xf32> to vector<8x8xf32>
    %27 = arith.subf %23, %26 : vector<8x8xf32>
    %28 = math.exp %27 : vector<8x8xf32>
    %cst_17 = arith.constant dense<0.000000e+00> : vector<8xf32>
    %29 = vector.multi_reduction <add>, %28, %cst_17 [1] : vector<8x8xf32> to vector<8xf32>
    %30 = vector.shape_cast %29 : vector<8xf32> to vector<8x1xf32>
    %31 = tpu.reciprocal %30 {approx = true} : vector<8x1xf32> -> vector<8x1xf32>
    %32 = vector.broadcast %31 : vector<8x1xf32> to vector<8x8xf32>
    %33 = arith.mulf %28, %32 : vector<8x8xf32>
    %cst_18 = arith.constant dense<0.000000e+00> : vector<8x8xf32>
    %34 = tpu.matmul %33, %16, %cst_18 {dimension_numbers = #tpu.dot_dimension_numbers<[1], [0], [0], [1], [0, 0, 1, 1], [], []>} : vector<8x8xf32>, vector<8x8xf32>, vector<8x8xf32> -> vector<8x8xf32>
    %35 = vector.extract_strided_slice %12 {offsets = [0, 0], sizes = [8, 32], strides = [1, 1]} : vector<32x32xf32> to vector<8x32xf32>
    %cst_19 = arith.constant dense<0.000000e+00> : vector<8x32xf32>
    %36 = tpu.matmul %34, %35, %cst_19 {dimension_numbers = #tpu.dot_dimension_numbers<[1], [0], [0], [1], [0, 0, 1, 1], [], []>} : vector<8x8xf32>, vector<8x32xf32>, vector<8x32xf32> -> vector<8x32xf32>
    %37 = arith.addf %13, %36 : vector<8x32xf32>
    %38 = vector.extract_strided_slice %9 {offsets = [0, 8], sizes = [8, 8], strides = [1, 1]} : vector<8x32xf32> to vector<8x8xf32>
    %39 = vector.extract_strided_slice %10 {offsets = [0, 8], sizes = [8, 8], strides = [1, 1]} : vector<8x32xf32> to vector<8x8xf32>
    %40 = vector.extract_strided_slice %11 {offsets = [0, 8], sizes = [8, 8], strides = [1, 1]} : vector<8x32xf32> to vector<8x8xf32>
    "tpu.trace_start"() <{level = 10 : i32, message = "qd,kd->qk"}> : () -> ()
    %cst_20 = arith.constant dense<0.000000e+00> : vector<8x8xf32>
    %41 = tpu.matmul %38, %39, %cst_20 {dimension_numbers = #tpu.dot_dimension_numbers<[1], [1], [0], [0], [0, 0, 1, 0], [], []>} : vector<8x8xf32>, vector<8x8xf32>, vector<8x8xf32> -> vector<8x8xf32>
    "tpu.trace_stop"() : () -> ()
    %cst_21 = arith.constant 0.353553385 : f32
    %42 = vector.broadcast %cst_21 : f32 to vector<8x8xf32>
    %43 = arith.mulf %41, %42 : vector<8x8xf32>
    %cst_22 = arith.constant 0.000000e+00 : f32
    %44 = vector.broadcast %cst_22 : f32 to vector<8x8xf32>
    %45 = arith.cmpf oeq, %3, %44 : vector<8x8xf32>
    %cst_23 = arith.constant -1.000000e+09 : f32
    %46 = vector.broadcast %cst_23 : f32 to vector<8x8xf32>
    %47 = arith.select %45, %46, %43 : vector<8x8xi1>, vector<8x8xf32>
    %cst_24 = arith.constant dense<0xFF800000> : vector<8xf32>
    %48 = vector.multi_reduction <maximumf>, %47, %cst_24 [1] : vector<8x8xf32> to vector<8xf32>
    %49 = vector.shape_cast %48 : vector<8xf32> to vector<8x1xf32>
    %50 = vector.broadcast %49 : vector<8x1xf32> to vector<8x8xf32>
    %51 = arith.subf %47, %50 : vector<8x8xf32>
    %52 = math.exp %51 : vector<8x8xf32>
    %cst_25 = arith.constant dense<0.000000e+00> : vector<8xf32>
    %53 = vector.multi_reduction <add>, %52, %cst_25 [1] : vector<8x8xf32> to vector<8xf32>
    %54 = vector.shape_cast %53 : vector<8xf32> to vector<8x1xf32>
    %55 = tpu.reciprocal %54 {approx = true} : vector<8x1xf32> -> vector<8x1xf32>
    %56 = vector.broadcast %55 : vector<8x1xf32> to vector<8x8xf32>
    %57 = arith.mulf %52, %56 : vector<8x8xf32>
    %cst_26 = arith.constant dense<0.000000e+00> : vector<8x8xf32>
    %58 = tpu.matmul %57, %40, %cst_26 {dimension_numbers = #tpu.dot_dimension_numbers<[1], [0], [0], [1], [0, 0, 1, 1], [], []>} : vector<8x8xf32>, vector<8x8xf32>, vector<8x8xf32> -> vector<8x8xf32>
    %59 = vector.extract_strided_slice %12 {offsets = [8, 0], sizes = [8, 32], strides = [1, 1]} : vector<32x32xf32> to vector<8x32xf32>
    %cst_27 = arith.constant dense<0.000000e+00> : vector<8x32xf32>
    %60 = tpu.matmul %58, %59, %cst_27 {dimension_numbers = #tpu.dot_dimension_numbers<[1], [0], [0], [1], [0, 0, 1, 1], [], []>} : vector<8x8xf32>, vector<8x32xf32>, vector<8x32xf32> -> vector<8x32xf32>
    %61 = arith.addf %37, %60 : vector<8x32xf32>
    %62 = vector.extract_strided_slice %9 {offsets = [0, 16], sizes = [8, 8], strides = [1, 1]} : vector<8x32xf32> to vector<8x8xf32>
    %63 = vector.extract_strided_slice %10 {offsets = [0, 16], sizes = [8, 8], strides = [1, 1]} : vector<8x32xf32> to vector<8x8xf32>
    %64 = vector.extract_strided_slice %11 {offsets = [0, 16], sizes = [8, 8], strides = [1, 1]} : vector<8x32xf32> to vector<8x8xf32>
    "tpu.trace_start"() <{level = 10 : i32, message = "qd,kd->qk"}> : () -> ()
    %cst_28 = arith.constant dense<0.000000e+00> : vector<8x8xf32>
    %65 = tpu.matmul %62, %63, %cst_28 {dimension_numbers = #tpu.dot_dimension_numbers<[1], [1], [0], [0], [0, 0, 1, 0], [], []>} : vector<8x8xf32>, vector<8x8xf32>, vector<8x8xf32> -> vector<8x8xf32>
    "tpu.trace_stop"() : () -> ()
    %cst_29 = arith.constant 0.353553385 : f32
    %66 = vector.broadcast %cst_29 : f32 to vector<8x8xf32>
    %67 = arith.mulf %65, %66 : vector<8x8xf32>
    %cst_30 = arith.constant 0.000000e+00 : f32
    %68 = vector.broadcast %cst_30 : f32 to vector<8x8xf32>
    %69 = arith.cmpf oeq, %3, %68 : vector<8x8xf32>
    %cst_31 = arith.constant -1.000000e+09 : f32
    %70 = vector.broadcast %cst_31 : f32 to vector<8x8xf32>
    %71 = arith.select %69, %70, %67 : vector<8x8xi1>, vector<8x8xf32>
    %cst_32 = arith.constant dense<0xFF800000> : vector<8xf32>
    %72 = vector.multi_reduction <maximumf>, %71, %cst_32 [1] : vector<8x8xf32> to vector<8xf32>
    %73 = vector.shape_cast %72 : vector<8xf32> to vector<8x1xf32>
    %74 = vector.broadcast %73 : vector<8x1xf32> to vector<8x8xf32>
    %75 = arith.subf %71, %74 : vector<8x8xf32>
    %76 = math.exp %75 : vector<8x8xf32>
    %cst_33 = arith.constant dense<0.000000e+00> : vector<8xf32>
    %77 = vector.multi_reduction <add>, %76, %cst_33 [1] : vector<8x8xf32> to vector<8xf32>
    %78 = vector.shape_cast %77 : vector<8xf32> to vector<8x1xf32>
    %79 = tpu.reciprocal %78 {approx = true} : vector<8x1xf32> -> vector<8x1xf32>
    %80 = vector.broadcast %79 : vector<8x1xf32> to vector<8x8xf32>
    %81 = arith.mulf %76, %80 : vector<8x8xf32>
    %cst_34 = arith.constant dense<0.000000e+00> : vector<8x8xf32>
    %82 = tpu.matmul %81, %64, %cst_34 {dimension_numbers = #tpu.dot_dimension_numbers<[1], [0], [0], [1], [0, 0, 1, 1], [], []>} : vector<8x8xf32>, vector<8x8xf32>, vector<8x8xf32> -> vector<8x8xf32>
    %83 = vector.extract_strided_slice %12 {offsets = [16, 0], sizes = [8, 32], strides = [1, 1]} : vector<32x32xf32> to vector<8x32xf32>
    %cst_35 = arith.constant dense<0.000000e+00> : vector<8x32xf32>
    %84 = tpu.matmul %82, %83, %cst_35 {dimension_numbers = #tpu.dot_dimension_numbers<[1], [0], [0], [1], [0, 0, 1, 1], [], []>} : vector<8x8xf32>, vector<8x32xf32>, vector<8x32xf32> -> vector<8x32xf32>
    %85 = arith.addf %61, %84 : vector<8x32xf32>
    %86 = vector.extract_strided_slice %9 {offsets = [0, 24], sizes = [8, 8], strides = [1, 1]} : vector<8x32xf32> to vector<8x8xf32>
    %87 = vector.extract_strided_slice %10 {offsets = [0, 24], sizes = [8, 8], strides = [1, 1]} : vector<8x32xf32> to vector<8x8xf32>
    %88 = vector.extract_strided_slice %11 {offsets = [0, 24], sizes = [8, 8], strides = [1, 1]} : vector<8x32xf32> to vector<8x8xf32>
    "tpu.trace_start"() <{level = 10 : i32, message = "qd,kd->qk"}> : () -> ()
    %cst_36 = arith.constant dense<0.000000e+00> : vector<8x8xf32>
    %89 = tpu.matmul %86, %87, %cst_36 {dimension_numbers = #tpu.dot_dimension_numbers<[1], [1], [0], [0], [0, 0, 1, 0], [], []>} : vector<8x8xf32>, vector<8x8xf32>, vector<8x8xf32> -> vector<8x8xf32>
    "tpu.trace_stop"() : () -> ()
    %cst_37 = arith.constant 0.353553385 : f32
    %90 = vector.broadcast %cst_37 : f32 to vector<8x8xf32>
    %91 = arith.mulf %89, %90 : vector<8x8xf32>
    %cst_38 = arith.constant 0.000000e+00 : f32
    %92 = vector.broadcast %cst_38 : f32 to vector<8x8xf32>
    %93 = arith.cmpf oeq, %3, %92 : vector<8x8xf32>
    %cst_39 = arith.constant -1.000000e+09 : f32
    %94 = vector.broadcast %cst_39 : f32 to vector<8x8xf32>
    %95 = arith.select %93, %94, %91 : vector<8x8xi1>, vector<8x8xf32>
    %cst_40 = arith.constant dense<0xFF800000> : vector<8xf32>
    %96 = vector.multi_reduction <maximumf>, %95, %cst_40 [1] : vector<8x8xf32> to vector<8xf32>
    %97 = vector.shape_cast %96 : vector<8xf32> to vector<8x1xf32>
    %98 = vector.broadcast %97 : vector<8x1xf32> to vector<8x8xf32>
    %99 = arith.subf %95, %98 : vector<8x8xf32>
    %100 = math.exp %99 : vector<8x8xf32>
    %cst_41 = arith.constant dense<0.000000e+00> : vector<8xf32>
    %101 = vector.multi_reduction <add>, %100, %cst_41 [1] : vector<8x8xf32> to vector<8xf32>
    %102 = vector.shape_cast %101 : vector<8xf32> to vector<8x1xf32>
    %103 = tpu.reciprocal %102 {approx = true} : vector<8x1xf32> -> vector<8x1xf32>
    %104 = vector.broadcast %103 : vector<8x1xf32> to vector<8x8xf32>
    %105 = arith.mulf %100, %104 : vector<8x8xf32>
    %cst_42 = arith.constant dense<0.000000e+00> : vector<8x8xf32>
    %106 = tpu.matmul %105, %88, %cst_42 {dimension_numbers = #tpu.dot_dimension_numbers<[1], [0], [0], [1], [0, 0, 1, 1], [], []>} : vector<8x8xf32>, vector<8x8xf32>, vector<8x8xf32> -> vector<8x8xf32>
    %107 = vector.extract_strided_slice %12 {offsets = [24, 0], sizes = [8, 32], strides = [1, 1]} : vector<32x32xf32> to vector<8x32xf32>
    %cst_43 = arith.constant dense<0.000000e+00> : vector<8x32xf32>
    %108 = tpu.matmul %106, %107, %cst_43 {dimension_numbers = #tpu.dot_dimension_numbers<[1], [0], [0], [1], [0, 0, 1, 1], [], []>} : vector<8x8xf32>, vector<8x32xf32>, vector<8x32xf32> -> vector<8x32xf32>
    %109 = arith.addf %85, %108 : vector<8x32xf32>
    %c0_44 = arith.constant 0 : index
    %c0_45 = arith.constant 0 : index
    %110 = vector.load %arg8[%c0_44, %c0_45] : memref<1x32xf32, #tpu.memory_space<vmem>>, vector<1x32xf32>
    %111 = vector.broadcast %110 : vector<1x32xf32> to vector<8x32xf32>
    %112 = arith.addf %109, %111 : vector<8x32xf32>
    %113 = arith.addf %112, %1 : vector<8x32xf32>
    %cst_46 = arith.constant dense<0.000000e+00> : vector<8xf32>
    %114 = vector.multi_reduction <add>, %113, %cst_46 [1] : vector<8x32xf32> to vector<8xf32>
    %115 = vector.shape_cast %114 : vector<8xf32> to vector<8x1xf32>
    %cst_47 = arith.constant 3.200000e+01 : f32
    %116 = vector.broadcast %cst_47 : f32 to vector<8x1xf32>
    %117 = arith.divf %115, %116 : vector<8x1xf32>
    %118 = vector.broadcast %117 : vector<8x1xf32> to vector<8x32xf32>
    %119 = arith.subf %113, %118 : vector<8x32xf32>
    %120 = arith.mulf %119, %119 : vector<8x32xf32>
    %cst_48 = arith.constant dense<0.000000e+00> : vector<8xf32>
    %121 = vector.multi_reduction <add>, %120, %cst_48 [1] : vector<8x32xf32> to vector<8xf32>
    %122 = vector.shape_cast %121 : vector<8xf32> to vector<8x1xf32>
    %cst_49 = arith.constant 3.200000e+01 : f32
    %123 = vector.broadcast %cst_49 : f32 to vector<8x1xf32>
    %124 = arith.divf %122, %123 : vector<8x1xf32>
    %125 = vector.broadcast %117 : vector<8x1xf32> to vector<8x32xf32>
    %126 = arith.subf %113, %125 : vector<8x32xf32>
    %cst_50 = arith.constant 9.99999974E-6 : f32
    %127 = vector.broadcast %cst_50 : f32 to vector<8x1xf32>
    %128 = arith.addf %124, %127 : vector<8x1xf32>
    %129 = math.rsqrt %128 : vector<8x1xf32>
    %130 = vector.broadcast %129 : vector<8x1xf32> to vector<8x32xf32>
    %131 = arith.mulf %126, %130 : vector<8x32xf32>
    %c0_51 = arith.constant 0 : index
    %c0_52 = arith.constant 0 : index
    %132 = vector.load %arg9[%c0_51, %c0_52] : memref<1x32xf32, #tpu.memory_space<vmem>>, vector<1x32xf32>
    %133 = vector.broadcast %132 : vector<1x32xf32> to vector<8x32xf32>
    %134 = arith.mulf %131, %133 : vector<8x32xf32>
    %c0_53 = arith.constant 0 : index
    %c0_54 = arith.constant 0 : index
    %135 = vector.load %arg10[%c0_53, %c0_54] : memref<1x32xf32, #tpu.memory_space<vmem>>, vector<1x32xf32>
    %136 = vector.broadcast %135 : vector<1x32xf32> to vector<8x32xf32>
    %137 = arith.addf %134, %136 : vector<8x32xf32>
    %c0_55 = arith.constant 0 : index
    %c0_56 = arith.constant 0 : index
    %c0_57 = arith.constant 0 : index
    %138 = vector.load %arg2[%c0_55, %c0_56, %c0_57] : memref<1x8x32xf32, #tpu.memory_space<vmem>>, vector<1x8x32xf32>
    %139 = vector.shape_cast %138 : vector<1x8x32xf32> to vector<8x32xf32>
    %c0_58 = arith.constant 0 : index
    %c0_59 = arith.constant 0 : index
    %c0_60 = arith.constant 0 : index
    %140 = vector.load %arg4[%c0_58, %c0_59, %c0_60] : memref<1x8x8xf32, #tpu.memory_space<vmem>>, vector<1x8x8xf32>
    %141 = vector.shape_cast %140 : vector<1x8x8xf32> to vector<8x8xf32>
    %c0_61 = arith.constant 0 : index
    %c0_62 = arith.constant 0 : index
    %142 = vector.load %arg11[%c0_61, %c0_62] : memref<32x32xf32, #tpu.memory_space<vmem>>, vector<32x32xf32>
    %cst_63 = arith.constant dense<0.000000e+00> : vector<8x32xf32>
    %143 = tpu.matmul %137, %142, %cst_63 {dimension_numbers = #tpu.dot_dimension_numbers<[1], [0], [0], [1], [0, 0, 1, 1], [], []>} : vector<8x32xf32>, vector<32x32xf32>, vector<8x32xf32> -> vector<8x32xf32>
    %c0_64 = arith.constant 0 : index
    %c0_65 = arith.constant 0 : index
    %144 = vector.load %arg12[%c0_64, %c0_65] : memref<1x32xf32, #tpu.memory_space<vmem>>, vector<1x32xf32>
    %145 = vector.broadcast %144 : vector<1x32xf32> to vector<8x32xf32>
    %146 = arith.addf %143, %145 : vector<8x32xf32>
    %c0_66 = arith.constant 0 : index
    %c0_67 = arith.constant 0 : index
    %147 = vector.load %arg13[%c0_66, %c0_67] : memref<32x64xf32, #tpu.memory_space<vmem>>, vector<32x64xf32>
    %cst_68 = arith.constant dense<0.000000e+00> : vector<8x64xf32>
    %148 = tpu.matmul %139, %147, %cst_68 {dimension_numbers = #tpu.dot_dimension_numbers<[1], [0], [0], [1], [0, 0, 1, 1], [], []>} : vector<8x32xf32>, vector<32x64xf32>, vector<8x64xf32> -> vector<8x64xf32>
    %c0_69 = arith.constant 0 : index
    %c0_70 = arith.constant 0 : index
    %149 = vector.load %arg14[%c0_69, %c0_70] : memref<1x64xf32, #tpu.memory_space<vmem>>, vector<1x64xf32>
    %150 = vector.broadcast %149 : vector<1x64xf32> to vector<8x64xf32>
    %151 = arith.addf %148, %150 : vector<8x64xf32>
    %152 = vector.extract_strided_slice %151 {offsets = [0, 0], sizes = [8, 32], strides = [1, 1]} : vector<8x64xf32> to vector<8x32xf32>
    %153 = vector.extract_strided_slice %151 {offsets = [0, 32], sizes = [8, 32], strides = [1, 1]} : vector<8x64xf32> to vector<8x32xf32>
    %c0_71 = arith.constant 0 : index
    %c0_72 = arith.constant 0 : index
    %154 = vector.load %arg15[%c0_71, %c0_72] : memref<32x32xf32, #tpu.memory_space<vmem>>, vector<32x32xf32>
    %cst_73 = arith.constant 0.000000e+00 : f32
    %155 = vector.broadcast %cst_73 : f32 to vector<8x32xf32>
    %156 = vector.extract_strided_slice %146 {offsets = [0, 0], sizes = [8, 8], strides = [1, 1]} : vector<8x32xf32> to vector<8x8xf32>
    %157 = vector.extract_strided_slice %152 {offsets = [0, 0], sizes = [8, 8], strides = [1, 1]} : vector<8x32xf32> to vector<8x8xf32>
    %158 = vector.extract_strided_slice %153 {offsets = [0, 0], sizes = [8, 8], strides = [1, 1]} : vector<8x32xf32> to vector<8x8xf32>
    "tpu.trace_start"() <{level = 10 : i32, message = "qd,kd->qk"}> : () -> ()
    %cst_74 = arith.constant dense<0.000000e+00> : vector<8x8xf32>
    %159 = tpu.matmul %156, %157, %cst_74 {dimension_numbers = #tpu.dot_dimension_numbers<[1], [1], [0], [0], [0, 0, 1, 0], [], []>} : vector<8x8xf32>, vector<8x8xf32>, vector<8x8xf32> -> vector<8x8xf32>
    "tpu.trace_stop"() : () -> ()
    %cst_75 = arith.constant 0.353553385 : f32
    %160 = vector.broadcast %cst_75 : f32 to vector<8x8xf32>
    %161 = arith.mulf %159, %160 : vector<8x8xf32>
    %cst_76 = arith.constant 0.000000e+00 : f32
    %162 = vector.broadcast %cst_76 : f32 to vector<8x8xf32>
    %163 = arith.cmpf oeq, %141, %162 : vector<8x8xf32>
    %cst_77 = arith.constant -1.000000e+09 : f32
    %164 = vector.broadcast %cst_77 : f32 to vector<8x8xf32>
    %165 = arith.select %163, %164, %161 : vector<8x8xi1>, vector<8x8xf32>
    %cst_78 = arith.constant dense<0xFF800000> : vector<8xf32>
    %166 = vector.multi_reduction <maximumf>, %165, %cst_78 [1] : vector<8x8xf32> to vector<8xf32>
    %167 = vector.shape_cast %166 : vector<8xf32> to vector<8x1xf32>
    %168 = vector.broadcast %167 : vector<8x1xf32> to vector<8x8xf32>
    %169 = arith.subf %165, %168 : vector<8x8xf32>
    %170 = math.exp %169 : vector<8x8xf32>
    %cst_79 = arith.constant dense<0.000000e+00> : vector<8xf32>
    %171 = vector.multi_reduction <add>, %170, %cst_79 [1] : vector<8x8xf32> to vector<8xf32>
    %172 = vector.shape_cast %171 : vector<8xf32> to vector<8x1xf32>
    %173 = tpu.reciprocal %172 {approx = true} : vector<8x1xf32> -> vector<8x1xf32>
    %174 = vector.broadcast %173 : vector<8x1xf32> to vector<8x8xf32>
    %175 = arith.mulf %170, %174 : vector<8x8xf32>
    %cst_80 = arith.constant dense<0.000000e+00> : vector<8x8xf32>
    %176 = tpu.matmul %175, %158, %cst_80 {dimension_numbers = #tpu.dot_dimension_numbers<[1], [0], [0], [1], [0, 0, 1, 1], [], []>} : vector<8x8xf32>, vector<8x8xf32>, vector<8x8xf32> -> vector<8x8xf32>
    %177 = vector.extract_strided_slice %154 {offsets = [0, 0], sizes = [8, 32], strides = [1, 1]} : vector<32x32xf32> to vector<8x32xf32>
    %cst_81 = arith.constant dense<0.000000e+00> : vector<8x32xf32>
    %178 = tpu.matmul %176, %177, %cst_81 {dimension_numbers = #tpu.dot_dimension_numbers<[1], [0], [0], [1], [0, 0, 1, 1], [], []>} : vector<8x8xf32>, vector<8x32xf32>, vector<8x32xf32> -> vector<8x32xf32>
    %179 = arith.addf %155, %178 : vector<8x32xf32>
    %180 = vector.extract_strided_slice %146 {offsets = [0, 8], sizes = [8, 8], strides = [1, 1]} : vector<8x32xf32> to vector<8x8xf32>
    %181 = vector.extract_strided_slice %152 {offsets = [0, 8], sizes = [8, 8], strides = [1, 1]} : vector<8x32xf32> to vector<8x8xf32>
    %182 = vector.extract_strided_slice %153 {offsets = [0, 8], sizes = [8, 8], strides = [1, 1]} : vector<8x32xf32> to vector<8x8xf32>
    "tpu.trace_start"() <{level = 10 : i32, message = "qd,kd->qk"}> : () -> ()
    %cst_82 = arith.constant dense<0.000000e+00> : vector<8x8xf32>
    %183 = tpu.matmul %180, %181, %cst_82 {dimension_numbers = #tpu.dot_dimension_numbers<[1], [1], [0], [0], [0, 0, 1, 0], [], []>} : vector<8x8xf32>, vector<8x8xf32>, vector<8x8xf32> -> vector<8x8xf32>
    "tpu.trace_stop"() : () -> ()
    %cst_83 = arith.constant 0.353553385 : f32
    %184 = vector.broadcast %cst_83 : f32 to vector<8x8xf32>
    %185 = arith.mulf %183, %184 : vector<8x8xf32>
    %cst_84 = arith.constant 0.000000e+00 : f32
    %186 = vector.broadcast %cst_84 : f32 to vector<8x8xf32>
    %187 = arith.cmpf oeq, %141, %186 : vector<8x8xf32>
    %cst_85 = arith.constant -1.000000e+09 : f32
    %188 = vector.broadcast %cst_85 : f32 to vector<8x8xf32>
    %189 = arith.select %187, %188, %185 : vector<8x8xi1>, vector<8x8xf32>
    %cst_86 = arith.constant dense<0xFF800000> : vector<8xf32>
    %190 = vector.multi_reduction <maximumf>, %189, %cst_86 [1] : vector<8x8xf32> to vector<8xf32>
    %191 = vector.shape_cast %190 : vector<8xf32> to vector<8x1xf32>
    %192 = vector.broadcast %191 : vector<8x1xf32> to vector<8x8xf32>
    %193 = arith.subf %189, %192 : vector<8x8xf32>
    %194 = math.exp %193 : vector<8x8xf32>
    %cst_87 = arith.constant dense<0.000000e+00> : vector<8xf32>
    %195 = vector.multi_reduction <add>, %194, %cst_87 [1] : vector<8x8xf32> to vector<8xf32>
    %196 = vector.shape_cast %195 : vector<8xf32> to vector<8x1xf32>
    %197 = tpu.reciprocal %196 {approx = true} : vector<8x1xf32> -> vector<8x1xf32>
    %198 = vector.broadcast %197 : vector<8x1xf32> to vector<8x8xf32>
    %199 = arith.mulf %194, %198 : vector<8x8xf32>
    %cst_88 = arith.constant dense<0.000000e+00> : vector<8x8xf32>
    %200 = tpu.matmul %199, %182, %cst_88 {dimension_numbers = #tpu.dot_dimension_numbers<[1], [0], [0], [1], [0, 0, 1, 1], [], []>} : vector<8x8xf32>, vector<8x8xf32>, vector<8x8xf32> -> vector<8x8xf32>
    %201 = vector.extract_strided_slice %154 {offsets = [8, 0], sizes = [8, 32], strides = [1, 1]} : vector<32x32xf32> to vector<8x32xf32>
    %cst_89 = arith.constant dense<0.000000e+00> : vector<8x32xf32>
    %202 = tpu.matmul %200, %201, %cst_89 {dimension_numbers = #tpu.dot_dimension_numbers<[1], [0], [0], [1], [0, 0, 1, 1], [], []>} : vector<8x8xf32>, vector<8x32xf32>, vector<8x32xf32> -> vector<8x32xf32>
    %203 = arith.addf %179, %202 : vector<8x32xf32>
    %204 = vector.extract_strided_slice %146 {offsets = [0, 16], sizes = [8, 8], strides = [1, 1]} : vector<8x32xf32> to vector<8x8xf32>
    %205 = vector.extract_strided_slice %152 {offsets = [0, 16], sizes = [8, 8], strides = [1, 1]} : vector<8x32xf32> to vector<8x8xf32>
    %206 = vector.extract_strided_slice %153 {offsets = [0, 16], sizes = [8, 8], strides = [1, 1]} : vector<8x32xf32> to vector<8x8xf32>
    "tpu.trace_start"() <{level = 10 : i32, message = "qd,kd->qk"}> : () -> ()
    %cst_90 = arith.constant dense<0.000000e+00> : vector<8x8xf32>
    %207 = tpu.matmul %204, %205, %cst_90 {dimension_numbers = #tpu.dot_dimension_numbers<[1], [1], [0], [0], [0, 0, 1, 0], [], []>} : vector<8x8xf32>, vector<8x8xf32>, vector<8x8xf32> -> vector<8x8xf32>
    "tpu.trace_stop"() : () -> ()
    %cst_91 = arith.constant 0.353553385 : f32
    %208 = vector.broadcast %cst_91 : f32 to vector<8x8xf32>
    %209 = arith.mulf %207, %208 : vector<8x8xf32>
    %cst_92 = arith.constant 0.000000e+00 : f32
    %210 = vector.broadcast %cst_92 : f32 to vector<8x8xf32>
    %211 = arith.cmpf oeq, %141, %210 : vector<8x8xf32>
    %cst_93 = arith.constant -1.000000e+09 : f32
    %212 = vector.broadcast %cst_93 : f32 to vector<8x8xf32>
    %213 = arith.select %211, %212, %209 : vector<8x8xi1>, vector<8x8xf32>
    %cst_94 = arith.constant dense<0xFF800000> : vector<8xf32>
    %214 = vector.multi_reduction <maximumf>, %213, %cst_94 [1] : vector<8x8xf32> to vector<8xf32>
    %215 = vector.shape_cast %214 : vector<8xf32> to vector<8x1xf32>
    %216 = vector.broadcast %215 : vector<8x1xf32> to vector<8x8xf32>
    %217 = arith.subf %213, %216 : vector<8x8xf32>
    %218 = math.exp %217 : vector<8x8xf32>
    %cst_95 = arith.constant dense<0.000000e+00> : vector<8xf32>
    %219 = vector.multi_reduction <add>, %218, %cst_95 [1] : vector<8x8xf32> to vector<8xf32>
    %220 = vector.shape_cast %219 : vector<8xf32> to vector<8x1xf32>
    %221 = tpu.reciprocal %220 {approx = true} : vector<8x1xf32> -> vector<8x1xf32>
    %222 = vector.broadcast %221 : vector<8x1xf32> to vector<8x8xf32>
    %223 = arith.mulf %218, %222 : vector<8x8xf32>
    %cst_96 = arith.constant dense<0.000000e+00> : vector<8x8xf32>
    %224 = tpu.matmul %223, %206, %cst_96 {dimension_numbers = #tpu.dot_dimension_numbers<[1], [0], [0], [1], [0, 0, 1, 1], [], []>} : vector<8x8xf32>, vector<8x8xf32>, vector<8x8xf32> -> vector<8x8xf32>
    %225 = vector.extract_strided_slice %154 {offsets = [16, 0], sizes = [8, 32], strides = [1, 1]} : vector<32x32xf32> to vector<8x32xf32>
    %cst_97 = arith.constant dense<0.000000e+00> : vector<8x32xf32>
    %226 = tpu.matmul %224, %225, %cst_97 {dimension_numbers = #tpu.dot_dimension_numbers<[1], [0], [0], [1], [0, 0, 1, 1], [], []>} : vector<8x8xf32>, vector<8x32xf32>, vector<8x32xf32> -> vector<8x32xf32>
    %227 = arith.addf %203, %226 : vector<8x32xf32>
    %228 = vector.extract_strided_slice %146 {offsets = [0, 24], sizes = [8, 8], strides = [1, 1]} : vector<8x32xf32> to vector<8x8xf32>
    %229 = vector.extract_strided_slice %152 {offsets = [0, 24], sizes = [8, 8], strides = [1, 1]} : vector<8x32xf32> to vector<8x8xf32>
    %230 = vector.extract_strided_slice %153 {offsets = [0, 24], sizes = [8, 8], strides = [1, 1]} : vector<8x32xf32> to vector<8x8xf32>
    "tpu.trace_start"() <{level = 10 : i32, message = "qd,kd->qk"}> : () -> ()
    %cst_98 = arith.constant dense<0.000000e+00> : vector<8x8xf32>
    %231 = tpu.matmul %228, %229, %cst_98 {dimension_numbers = #tpu.dot_dimension_numbers<[1], [1], [0], [0], [0, 0, 1, 0], [], []>} : vector<8x8xf32>, vector<8x8xf32>, vector<8x8xf32> -> vector<8x8xf32>
    "tpu.trace_stop"() : () -> ()
    %cst_99 = arith.constant 0.353553385 : f32
    %232 = vector.broadcast %cst_99 : f32 to vector<8x8xf32>
    %233 = arith.mulf %231, %232 : vector<8x8xf32>
    %cst_100 = arith.constant 0.000000e+00 : f32
    %234 = vector.broadcast %cst_100 : f32 to vector<8x8xf32>
    %235 = arith.cmpf oeq, %141, %234 : vector<8x8xf32>
    %cst_101 = arith.constant -1.000000e+09 : f32
    %236 = vector.broadcast %cst_101 : f32 to vector<8x8xf32>
    %237 = arith.select %235, %236, %233 : vector<8x8xi1>, vector<8x8xf32>
    %cst_102 = arith.constant dense<0xFF800000> : vector<8xf32>
    %238 = vector.multi_reduction <maximumf>, %237, %cst_102 [1] : vector<8x8xf32> to vector<8xf32>
    %239 = vector.shape_cast %238 : vector<8xf32> to vector<8x1xf32>
    %240 = vector.broadcast %239 : vector<8x1xf32> to vector<8x8xf32>
    %241 = arith.subf %237, %240 : vector<8x8xf32>
    %242 = math.exp %241 : vector<8x8xf32>
    %cst_103 = arith.constant dense<0.000000e+00> : vector<8xf32>
    %243 = vector.multi_reduction <add>, %242, %cst_103 [1] : vector<8x8xf32> to vector<8xf32>
    %244 = vector.shape_cast %243 : vector<8xf32> to vector<8x1xf32>
    %245 = tpu.reciprocal %244 {approx = true} : vector<8x1xf32> -> vector<8x1xf32>
    %246 = vector.broadcast %245 : vector<8x1xf32> to vector<8x8xf32>
    %247 = arith.mulf %242, %246 : vector<8x8xf32>
    %cst_104 = arith.constant dense<0.000000e+00> : vector<8x8xf32>
    %248 = tpu.matmul %247, %230, %cst_104 {dimension_numbers = #tpu.dot_dimension_numbers<[1], [0], [0], [1], [0, 0, 1, 1], [], []>} : vector<8x8xf32>, vector<8x8xf32>, vector<8x8xf32> -> vector<8x8xf32>
    %249 = vector.extract_strided_slice %154 {offsets = [24, 0], sizes = [8, 32], strides = [1, 1]} : vector<32x32xf32> to vector<8x32xf32>
    %cst_105 = arith.constant dense<0.000000e+00> : vector<8x32xf32>
    %250 = tpu.matmul %248, %249, %cst_105 {dimension_numbers = #tpu.dot_dimension_numbers<[1], [0], [0], [1], [0, 0, 1, 1], [], []>} : vector<8x8xf32>, vector<8x32xf32>, vector<8x32xf32> -> vector<8x32xf32>
    %251 = arith.addf %227, %250 : vector<8x32xf32>
    %c0_106 = arith.constant 0 : index
    %c0_107 = arith.constant 0 : index
    %252 = vector.load %arg16[%c0_106, %c0_107] : memref<1x32xf32, #tpu.memory_space<vmem>>, vector<1x32xf32>
    %253 = vector.broadcast %252 : vector<1x32xf32> to vector<8x32xf32>
    %254 = arith.addf %251, %253 : vector<8x32xf32>
    %255 = arith.addf %254, %137 : vector<8x32xf32>
    %cst_108 = arith.constant dense<0.000000e+00> : vector<8xf32>
    %256 = vector.multi_reduction <add>, %255, %cst_108 [1] : vector<8x32xf32> to vector<8xf32>
    %257 = vector.shape_cast %256 : vector<8xf32> to vector<8x1xf32>
    %cst_109 = arith.constant 3.200000e+01 : f32
    %258 = vector.broadcast %cst_109 : f32 to vector<8x1xf32>
    %259 = arith.divf %257, %258 : vector<8x1xf32>
    %260 = vector.broadcast %259 : vector<8x1xf32> to vector<8x32xf32>
    %261 = arith.subf %255, %260 : vector<8x32xf32>
    %262 = arith.mulf %261, %261 : vector<8x32xf32>
    %cst_110 = arith.constant dense<0.000000e+00> : vector<8xf32>
    %263 = vector.multi_reduction <add>, %262, %cst_110 [1] : vector<8x32xf32> to vector<8xf32>
    %264 = vector.shape_cast %263 : vector<8xf32> to vector<8x1xf32>
    %cst_111 = arith.constant 3.200000e+01 : f32
    %265 = vector.broadcast %cst_111 : f32 to vector<8x1xf32>
    %266 = arith.divf %264, %265 : vector<8x1xf32>
    %267 = vector.broadcast %259 : vector<8x1xf32> to vector<8x32xf32>
    %268 = arith.subf %255, %267 : vector<8x32xf32>
    %cst_112 = arith.constant 9.99999974E-6 : f32
    %269 = vector.broadcast %cst_112 : f32 to vector<8x1xf32>
    %270 = arith.addf %266, %269 : vector<8x1xf32>
    %271 = math.rsqrt %270 : vector<8x1xf32>
    %272 = vector.broadcast %271 : vector<8x1xf32> to vector<8x32xf32>
    %273 = arith.mulf %268, %272 : vector<8x32xf32>
    %c0_113 = arith.constant 0 : index
    %c0_114 = arith.constant 0 : index
    %274 = vector.load %arg17[%c0_113, %c0_114] : memref<1x32xf32, #tpu.memory_space<vmem>>, vector<1x32xf32>
    %275 = vector.broadcast %274 : vector<1x32xf32> to vector<8x32xf32>
    %276 = arith.mulf %273, %275 : vector<8x32xf32>
    %c0_115 = arith.constant 0 : index
    %c0_116 = arith.constant 0 : index
    %277 = vector.load %arg18[%c0_115, %c0_116] : memref<1x32xf32, #tpu.memory_space<vmem>>, vector<1x32xf32>
    %278 = vector.broadcast %277 : vector<1x32xf32> to vector<8x32xf32>
    %279 = arith.addf %276, %278 : vector<8x32xf32>
    %c0_117 = arith.constant 0 : index
    %c0_118 = arith.constant 0 : index
    %280 = vector.load %arg19[%c0_117, %c0_118] : memref<32x64xf32, #tpu.memory_space<vmem>>, vector<32x64xf32>
    %cst_119 = arith.constant dense<0.000000e+00> : vector<8x64xf32>
    %281 = tpu.matmul %279, %280, %cst_119 {dimension_numbers = #tpu.dot_dimension_numbers<[1], [0], [0], [1], [0, 0, 1, 1], [], []>} : vector<8x32xf32>, vector<32x64xf32>, vector<8x64xf32> -> vector<8x64xf32>
    %c0_120 = arith.constant 0 : index
    %c0_121 = arith.constant 0 : index
    %282 = vector.load %arg20[%c0_120, %c0_121] : memref<1x64xf32, #tpu.memory_space<vmem>>, vector<1x64xf32>
    %283 = vector.broadcast %282 : vector<1x64xf32> to vector<8x64xf32>
    %284 = arith.addf %281, %283 : vector<8x64xf32>
    %cst_122 = arith.constant 0.000000e+00 : f32
    %285 = vector.broadcast %cst_122 : f32 to vector<8x64xf32>
    %286 = arith.maximumf %284, %285 : vector<8x64xf32>
    %c0_123 = arith.constant 0 : index
    %c0_124 = arith.constant 0 : index
    %287 = vector.load %arg21[%c0_123, %c0_124] : memref<64x32xf32, #tpu.memory_space<vmem>>, vector<64x32xf32>
    %cst_125 = arith.constant dense<0.000000e+00> : vector<8x32xf32>
    %288 = tpu.matmul %286, %287, %cst_125 {dimension_numbers = #tpu.dot_dimension_numbers<[1], [0], [0], [1], [0, 0, 1, 1], [], []>} : vector<8x64xf32>, vector<64x32xf32>, vector<8x32xf32> -> vector<8x32xf32>
    %c0_126 = arith.constant 0 : index
    %c0_127 = arith.constant 0 : index
    %289 = vector.load %arg22[%c0_126, %c0_127] : memref<1x32xf32, #tpu.memory_space<vmem>>, vector<1x32xf32>
    %290 = vector.broadcast %289 : vector<1x32xf32> to vector<8x32xf32>
    %291 = arith.addf %288, %290 : vector<8x32xf32>
    %c0_128 = arith.constant 0 : index
    %c0_129 = arith.constant 0 : index
    %c0_130 = arith.constant 0 : index
    %292 = vector.load %arg23[%c0_128, %c0_129, %c0_130] : memref<1x8x32xf32, #tpu.memory_space<vmem>>, vector<1x8x32xf32>
    %293 = vector.shape_cast %292 : vector<1x8x32xf32> to vector<8x32xf32>
    %294 = vector.shape_cast %291 : vector<8x32xf32> to vector<1x8x32xf32>
    tpu.vector_store %arg23[%c0_128, %c0_129, %c0_130], %294 {strides = array<i32>} : memref<1x8x32xf32, #tpu.memory_space<vmem>>, vector<1x8x32xf32>,
    return
  }
  func.func @transform_0(%arg0: i32) -> (i32, i32, i32) {
    %c0_i32 = arith.constant 0 : i32
    %c0_i32_0 = arith.constant 0 : i32
    %c0_i32_1 = arith.constant 0 : i32
    return %arg0, %c0_i32, %c0_i32_0 : i32, i32, i32
  }
  func.func @transform_1(%arg0: i32) -> (i32, i32, i32) {
    %c0_i32 = arith.constant 0 : i32
    %c0_i32_0 = arith.constant 0 : i32
    %c0_i32_1 = arith.constant 0 : i32
    return %arg0, %c0_i32, %c0_i32_0 : i32, i32, i32
  }
  func.func @transform_2(%arg0: i32) -> (i32, i32, i32) {
    %c0_i32 = arith.constant 0 : i32
    %c0_i32_0 = arith.constant 0 : i32
    %c0_i32_1 = arith.constant 0 : i32
    return %arg0, %c0_i32, %c0_i32_0 : i32, i32, i32
  }
  func.func @transform_3(%arg0: i32) -> (i32, i32, i32) {
    %c0_i32 = arith.constant 0 : i32
    %c0_i32_0 = arith.constant 0 : i32
    %c0_i32_1 = arith.constant 0 : i32
    return %arg0, %c0_i32, %c0_i32_0 : i32, i32, i32
  }
  func.func @transform_4(%arg0: i32) -> (i32, i32) {
    %c0_i32 = arith.constant 0 : i32
    %c0_i32_0 = arith.constant 0 : i32
    %c0_i32_1 = arith.constant 0 : i32
    return %c0_i32, %c0_i32_0 : i32, i32
  }
  func.func @transform_5(%arg0: i32) -> (i32, i32) {
    %c0_i32 = arith.constant 0 : i32
    %c0_i32_0 = arith.constant 0 : i32
    %c0_i32_1 = arith.constant 0 : i32
    return %c0_i32, %c0_i32_0 : i32, i32
  }
  func.func @transform_6(%arg0: i32) -> (i32, i32) {
    %c0_i32 = arith.constant 0 : i32
    %c0_i32_0 = arith.constant 0 : i32
    %c0_i32_1 = arith.constant 0 : i32
    return %c0_i32, %c0_i32_0 : i32, i32
  }
  func.func @transform_7(%arg0: i32) -> (i32, i32) {
    %c0_i32 = arith.constant 0 : i32
    %c0_i32_0 = arith.constant 0 : i32
    %c0_i32_1 = arith.constant 0 : i32
    return %c0_i32, %c0_i32_0 : i32, i32
  }
  func.func @transform_8(%arg0: i32) -> (i32, i32) {
    %c0_i32 = arith.constant 0 : i32
    %c0_i32_0 = arith.constant 0 : i32
    %c0_i32_1 = arith.constant 0 : i32
    return %c0_i32, %c0_i32_0 : i32, i32
  }
  func.func @transform_9(%arg0: i32) -> (i32, i32) {
    %c0_i32 = arith.constant 0 : i32
    %c0_i32_0 = arith.constant 0 : i32
    %c0_i32_1 = arith.constant 0 : i32
    return %c0_i32, %c0_i32_0 : i32, i32
  }
  func.func @transform_10(%arg0: i32) -> (i32, i32) {
    %c0_i32 = arith.constant 0 : i32
    %c0_i32_0 = arith.constant 0 : i32
    %c0_i32_1 = arith.constant 0 : i32
    return %c0_i32, %c0_i32_0 : i32, i32
  }
  func.func @transform_11(%arg0: i32) -> (i32, i32) {
    %c0_i32 = arith.constant 0 : i32
    %c0_i32_0 = arith.constant 0 : i32
    %c0_i32_1 = arith.constant 0 : i32
    return %c0_i32, %c0_i32_0 : i32, i32
  }
  func.func @transform_12(%arg0: i32) -> (i32, i32) {
    %c0_i32 = arith.constant 0 : i32
    %c0_i32_0 = arith.constant 0 : i32
    %c0_i32_1 = arith.constant 0 : i32
    return %c0_i32, %c0_i32_0 : i32, i32
  }
  func.func @transform_13(%arg0: i32) -> (i32, i32) {
    %c0_i32 = arith.constant 0 : i32
    %c0_i32_0 = arith.constant 0 : i32
    %c0_i32_1 = arith.constant 0 : i32
    return %c0_i32, %c0_i32_0 : i32, i32
  }
  func.func @transform_14(%arg0: i32) -> (i32, i32) {
    %c0_i32 = arith.constant 0 : i32
    %c0_i32_0 = arith.constant 0 : i32
    %c0_i32_1 = arith.constant 0 : i32
    return %c0_i32, %c0_i32_0 : i32, i32
  }
  func.func @transform_15(%arg0: i32) -> (i32, i32) {
    %c0_i32 = arith.constant 0 : i32
    %c0_i32_0 = arith.constant 0 : i32
    %c0_i32_1 = arith.constant 0 : i32
    return %c0_i32, %c0_i32_0 : i32, i32
  }
  func.func @transform_16(%arg0: i32) -> (i32, i32) {
    %c0_i32 = arith.constant 0 : i32
    %c0_i32_0 = arith.constant 0 : i32
    %c0_i32_1 = arith.constant 0 : i32
    return %c0_i32, %c0_i32_0 : i32, i32
  }
  func.func @transform_17(%arg0: i32) -> (i32, i32) {
    %c0_i32 = arith.constant 0 : i32
    %c0_i32_0 = arith.constant 0 : i32
    %c0_i32_1 = arith.constant 0 : i32
    return %c0_i32, %c0_i32_0 : i32, i32
  }
  func.func @transform_18(%arg0: i32) -> (i32, i32) {
    %c0_i32 = arith.constant 0 : i32
    %c0_i32_0 = arith.constant 0 : i32
    %c0_i32_1 = arith.constant 0 : i32
    return %c0_i32, %c0_i32_0 : i32, i32
  }
  func.func @transform_19(%arg0: i32) -> (i32, i32) {
    %c0_i32 = arith.constant 0 : i32
    %c0_i32_0 = arith.constant 0 : i32
    %c0_i32_1 = arith.constant 0 : i32
    return %c0_i32, %c0_i32_0 : i32, i32
  }
  func.func @transform_20(%arg0: i32) -> (i32, i32) {
    %c0_i32 = arith.constant 0 : i32
    %c0_i32_0 = arith.constant 0 : i32
    %c0_i32_1 = arith.constant 0 : i32
    return %c0_i32, %c0_i32_0 : i32, i32
  }
  func.func @transform_21(%arg0: i32) -> (i32, i32) {
    %c0_i32 = arith.constant 0 : i32
    %c0_i32_0 = arith.constant 0 : i32
    %c0_i32_1 = arith.constant 0 : i32
    return %c0_i32, %c0_i32_0 : i32, i32
  }
  func.func @transform_22(%arg0: i32) -> (i32, i32, i32) {
    %c0_i32 = arith.constant 0 : i32
    %c0_i32_0 = arith.constant 0 : i32
    %c0_i32_1 = arith.constant 0 : i32
    return %arg0, %c0_i32, %c0_i32_0 : i32, i32, i32
  }
}

module attributes {stable_mosaic.version = 11 : i64} {
  func.func @_matmul_bias_kernel(%arg0: i32, %arg1: i32, %arg2: memref<16x32xf32, #tpu.memory_space<vmem>>, %arg3: memref<32x128xf32, #tpu.memory_space<vmem>>, %arg4: memref<1x128xf32, #tpu.memory_space<vmem>>, %arg5: memref<16x128xf32, #tpu.memory_space<vmem>>) attributes {dimension_semantics = [#tpu.dimension_semantics<parallel>, #tpu.dimension_semantics<parallel>], iteration_bounds = array<i64: 1, 1>, scalar_prefetch = 0 : i64, scratch_operands = 0 : i64, tpu.core_type = #tpu.core_type<tc>, window_params = [{transform_indices = @transform_0, window_bounds = array<i64: 16, 32>}, {transform_indices = @transform_1, window_bounds = array<i64: 32, 128>}, {transform_indices = @transform_2, window_bounds = array<i64: 1, 128>}, {transform_indices = @transform_3, window_bounds = array<i64: 16, 128>}]} {
    %c0 = arith.constant 0 : index
    %c0_0 = arith.constant 0 : index
    %0 = vector.load %arg2[%c0, %c0_0] : memref<16x32xf32, #tpu.memory_space<vmem>>, vector<16x32xf32>
    %c0_1 = arith.constant 0 : index
    %c0_2 = arith.constant 0 : index
    %1 = vector.load %arg3[%c0_1, %c0_2] : memref<32x128xf32, #tpu.memory_space<vmem>>, vector<32x128xf32>
    %cst = arith.constant dense<0.000000e+00> : vector<16x128xf32>
    %2 = tpu.matmul %0, %1, %cst {dimension_numbers = #tpu.dot_dimension_numbers<[1], [0], [0], [1], [0, 0, 1, 1], [], []>} : vector<16x32xf32>, vector<32x128xf32>, vector<16x128xf32> -> vector<16x128xf32>
    %c0_3 = arith.constant 0 : index
    %c0_4 = arith.constant 0 : index
    %3 = vector.load %arg4[%c0_3, %c0_4] : memref<1x128xf32, #tpu.memory_space<vmem>>, vector<1x128xf32>
    %4 = vector.broadcast %3 : vector<1x128xf32> to vector<16x128xf32>
    %5 = arith.addf %2, %4 : vector<16x128xf32>
    %c0_5 = arith.constant 0 : index
    %c0_6 = arith.constant 0 : index
    %6 = vector.load %arg5[%c0_5, %c0_6] : memref<16x128xf32, #tpu.memory_space<vmem>>, vector<16x128xf32>
    tpu.vector_store %arg5[%c0_5, %c0_6], %5 {strides = array<i32>} : memref<16x128xf32, #tpu.memory_space<vmem>>, vector<16x128xf32>,
    return
  }
  func.func @transform_0(%arg0: i32, %arg1: i32) -> (i32, i32) {
    %c0_i32 = arith.constant 0 : i32
    %c0_i32_0 = arith.constant 0 : i32
    return %arg0, %c0_i32 : i32, i32
  }
  func.func @transform_1(%arg0: i32, %arg1: i32) -> (i32, i32) {
    %c0_i32 = arith.constant 0 : i32
    %c0_i32_0 = arith.constant 0 : i32
    return %c0_i32, %arg1 : i32, i32
  }
  func.func @transform_2(%arg0: i32, %arg1: i32) -> (i32, i32) {
    %c0_i32 = arith.constant 0 : i32
    %c0_i32_0 = arith.constant 0 : i32
    return %c0_i32, %arg1 : i32, i32
  }
  func.func @transform_3(%arg0: i32, %arg1: i32) -> (i32, i32) {
    %c0_i32 = arith.constant 0 : i32
    return %arg0, %arg1 : i32, i32
  }
}

</mosaic_0001>

<llo_original>
// kernel: decoder_forward.4
$region0: #{decoder_forward.4}
  #allocation0 [shape = 'u32[]', space=smem, size = 0x4, offset = 0x4, fixed_abs, tag = 'smem constant byte address 0x4 - core index']
  #allocation1 [shape = 'u32[72,128]{1,0:T(1,128)}', space=vmem, size = 0x9000, scoped, tag = 'internal scratch']
  #allocation2 [shape = 's32[1]{0}', space=sflag, size = 0x4, scoped, tag = 'scoped memory for decoder_forward.4']
  #allocation3 [shape = 'u8[512]{0}', space=smem, size = 0x200, scoped, tag = 'prefetched SMEM operand 0']
  %s0 = inlined_call_operand.vmem [shape: s32[16], index: 0, kind: input, shape index: {}]
  %s1 = inlined_call_operand.vmem [shape: f32[64,32], index: 1, kind: input, shape index: {}]
  %s2 = inlined_call_operand.vmem [shape: f32[16,32], index: 2, kind: output, shape index: {}]
  %s3 = sld [smem:[#allocation0]]
  $region14: #{decoder_forward.4} parent=0
    _
  %s5 = ssub.s32 1, %s3
  %s6 = scalar_select 0, %s5, %s3
  %s8 = sshll.u32 %s0, 4
  %s9 = int_to_ptr.vmem [resolvable:$true] %s8
  %11 = dma.vmem_to_smem %s9, 16, [#allocation3], [#allocation2]
  %13 = dma.done [#allocation2], 16
  %14 = sfence
  // Predicated region
  $region2: #{decoder_forward.4} parent=0 // pred_check
    _
  $region3: #{decoder_forward.4} parent=0 // pred_check_branch
    %16 = sbr.rel (0) target = $region5
  $region4: #{decoder_forward.4} parent=0 // pred_region
    _
  $region5: #{decoder_forward.4} parent=0 // pred_fallthru
    _
  %s17 = sld [smem:[#allocation3]]
  %s18 = scalar_lea.vmem %s1, %s17
  %v19 = vld [vmem:[%s18] sm:$0x1]
  %vm20 = vcmask 253952
  %21 = vst.msk [vmem:[%s2] sm:$0x1] %vm20, %v19
  %s22 = sld [smem:[#allocation3 + $0x1]]
  %s23 = scalar_lea.vmem %s1, %s22
  %v24 = vld [vmem:[%s23] sm:$0x1]
  %25 = vst.msk [vmem:[%s2 + $0x1] sm:$0x1] %vm20, %v24
  %s26 = sld [smem:[#allocation3 + $0x2]]
  %s27 = scalar_lea.vmem %s1, %s26
  %v28 = vld [vmem:[%s27] sm:$0x1]
  %29 = vst.msk [vmem:[%s2 + $0x2] sm:$0x1] %vm20, %v28
  %s30 = sld [smem:[#allocation3 + $0x3]]
  %s31 = scalar_lea.vmem %s1, %s30
  %v32 = vld [vmem:[%s31] sm:$0x1]
  %33 = vst.msk [vmem:[%s2 + $0x3] sm:$0x1] %vm20, %v32
  %s34 = sld [smem:[#allocation3 + $0x4]]
  %s35 = scalar_lea.vmem %s1, %s34
  %v36 = vld [vmem:[%s35] sm:$0x1]
  %37 = vst.msk [vmem:[%s2 + $0x4] sm:$0x1] %vm20, %v36
  %s38 = sld [smem:[#allocation3 + $0x5]]
  %s39 = scalar_lea.vmem %s1, %s38
  %v40 = vld [vmem:[%s39] sm:$0x1]
  %41 = vst.msk [vmem:[%s2 + $0x5] sm:$0x1] %vm20, %v40
  %s42 = sld [smem:[#allocation3 + $0x6]]
  %s43 = scalar_lea.vmem %s1, %s42
  %v44 = vld [vmem:[%s43] sm:$0x1]
  %45 = vst.msk [vmem:[%s2 + $0x6] sm:$0x1] %vm20, %v44
  %s46 = sld [smem:[#allocation3 + $0x7]]
  %s47 = scalar_lea.vmem %s1, %s46
  %v48 = vld [vmem:[%s47] sm:$0x1]
  %49 = vst.msk [vmem:[%s2 + $0x7] sm:$0x1] %vm20, %v48
  %s50 = sld [smem:[#allocation3 + $0x8]]
  %s51 = scalar_lea.vmem %s1, %s50
  %v52 = vld [vmem:[%s51] sm:$0x1]
  %53 = vst.msk [vmem:[%s2 + $0x8] sm:$0x1] %vm20, %v52
  %s54 = sld [smem:[#allocation3 + $0x9]]
  %s55 = scalar_lea.vmem %s1, %s54
  %v56 = vld [vmem:[%s55] sm:$0x1]
  %57 = vst.msk [vmem:[%s2 + $0x9] sm:$0x1] %vm20, %v56
  %s58 = sld [smem:[#allocation3 + $0xa]]
  %s59 = scalar_lea.vmem %s1, %s58
  %v60 = vld [vmem:[%s59] sm:$0x1]
  %61 = vst.msk [vmem:[%s2 + $0xa] sm:$0x1] %vm20, %v60
  %s62 = sld [smem:[#allocation3 + $0xb]]
  %s63 = scalar_lea.vmem %s1, %s62
  %v64 = vld [vmem:[%s63] sm:$0x1]
  %65 = vst.msk [vmem:[%s2 + $0xb] sm:$0x1] %vm20, %v64
  %s66 = sld [smem:[#allocation3 + $0xc]]
  %s67 = scalar_lea.vmem %s1, %s66
  %v68 = vld [vmem:[%s67] sm:$0x1]
  %69 = vst.msk [vmem:[%s2 + $0xc] sm:$0x1] %vm20, %v68
  %s70 = sld [smem:[#allocation3 + $0xd]]
  %s71 = scalar_lea.vmem %s1, %s70
  %v72 = vld [vmem:[%s71] sm:$0x1]
  %73 = vst.msk [vmem:[%s2 + $0xd] sm:$0x1] %vm20, %v72
  %s74 = sld [smem:[#allocation3 + $0xe]]
  %s75 = scalar_lea.vmem %s1, %s74
  %v76 = vld [vmem:[%s75] sm:$0x1]
  %77 = vst.msk [vmem:[%s2 + $0xe] sm:$0x1] %vm20, %v76
  %s78 = sld [smem:[#allocation3 + $0xf]]
  %s79 = scalar_lea.vmem %s1, %s78
  %v80 = vld [vmem:[%s79] sm:$0x1]
  %81 = vst.msk [vmem:[%s2 + $0xf] sm:$0x1] %vm20, %v80
  // Predicated region
  $region6: #{decoder_forward.4} parent=0 // pred_check
    _
  $region7: #{decoder_forward.4} parent=0 // pred_check_branch
    %83 = sbr.rel (0) target = $region9
  $region8: #{decoder_forward.4} parent=0 // pred_region
    _
  $region9: #{decoder_forward.4} parent=0 // pred_fallthru
    _
  // Predicated region
  $region10: #{decoder_forward.4} parent=0 // pred_check
    _
  $region11: #{decoder_forward.4} parent=0 // pred_check_branch
    %85 = sbr.rel (0) target = $region13
  $region12: #{decoder_forward.4} parent=0 // pred_region
    _
  $region13: #{decoder_forward.4} parent=0 // pred_fallthru
    _

// kernel: decoder_forward.7
$region0: #{decoder_forward.7}
  #allocation0 [shape = 'u32[]', space=smem, size = 0x4, offset = 0x4, fixed_abs, tag = 'smem constant byte address 0x4 - core index']
  #allocation1 [shape = 'u32[72,128]{1,0:T(1,128)}', space=vmem, size = 0x9000, scoped, tag = 'internal scratch']
  %s0 = inlined_call_operand.vmem [shape: f32[16,32], index: 0, kind: input, shape index: {}]
  %s1 = inlined_call_operand.vmem [shape: f32[32,128], index: 1, kind: input, shape index: {}]
  %s2 = inlined_call_operand.vmem [shape: f32[1,128], index: 2, kind: input, shape index: {}]
  %s3 = inlined_call_operand.vmem [shape: f32[16,128], index: 3, kind: output, shape index: {}]
  %s4 = sld [smem:[#allocation0]]
  $region22: #{decoder_forward.7} parent=0
    _
  %s6 = ssub.s32 1, %s4
  %s7 = scalar_select 0, %s6, %s4
  // Predicated region
  $region2: #{decoder_forward.7} parent=0 // pred_check
    _
  $region3: #{decoder_forward.7} parent=0 // pred_check_branch
    %9 = sbr.rel (0) target = $region5
  $region4: #{decoder_forward.7} parent=0 // pred_region
    _
  $region5: #{decoder_forward.7} parent=0 // pred_fallthru
    _
  // Predicated region
  $region6: #{decoder_forward.7} parent=0 // pred_check
    _
  $region7: #{decoder_forward.7} parent=0 // pred_check_branch
    %11 = sbr.rel (0) target = $region9
  $region8: #{decoder_forward.7} parent=0 // pred_region
    _
  $region9: #{decoder_forward.7} parent=0 // pred_fallthru
    _
  // Predicated region
  $region10: #{decoder_forward.7} parent=0 // pred_check
    _
  $region11: #{decoder_forward.7} parent=0 // pred_check_branch
    %13 = sbr.rel (0) target = $region13
  $region12: #{decoder_forward.7} parent=0 // pred_region
    _
  $region13: #{decoder_forward.7} parent=0 // pred_fallthru
    _
  %v14 = vld [vmem:[%s0] sm:$0xff]
  %v15 = vld [vmem:[%s0 + $0x8] sm:$0xff]
  %v16 = vld [vmem:[%s1] sm:$0xff]
  %v17 = vld [vmem:[%s1 + $0x8] sm:$0xff]
  %v18 = vld [vmem:[%s1 + $0x10] sm:$0xff]
  %v19 = vld [vmem:[%s1 + $0x18] sm:$0xff]
  %v20 = vld [vmem:[%s2] sm:$0x1]
  %v22 = vperm.slane %v20, 0
  %vm24 = vcmask 261120
  %v26 = vsel %vm24, %v14, 0
  %v29 = vsel %vm24, %v15, 0
  %31 = vmatpush.msra.mxu0 0.0
  %32 = vmatpush.msra.mxu0 0.0
  %33 = vmatpush.msra.mxu0 0.0
  %34 = vmatpush.msra.mxu0 0.0
  %35 = vmatpush.msra.mxu0 0.0
  %36 = vmatpush.msra.mxu0 0.0
  %37 = vmatpush.msra.mxu0 0.0
  %38 = vmatpush.msra.mxu0 0.0
  %39 = vmatpush.msra.mxu0 0.0
  %40 = vmatpush.msra.mxu0 0.0
  %41 = vmatpush.msra.mxu0 0.0
  %42 = vmatpush.msra.mxu0 0.0
  %43 = vmatpush.msra.mxu0 %v19
  %44 = vmatpush.msra.mxu0 %v18
  %45 = vmatpush.msra.mxu0 %v17
  %46 = vmatpush.msra.mxu0 %v16
  %47 = vmatmul.f32.gmra.mxu0 %v26
  %v48 = vpop.f32.mrf.mxu0
  %v49 = vadd.f32 %v22, %v48
  %50 = vmatmul.f32.gmra.mxu0 %v29
  %v51 = vpop.f32.mrf.mxu0
  %v52 = vadd.f32 %v22, %v51
  %53 = vdwg.mxu0
  %54 = vst [vmem:[%s3] sm:$0xff] %v49
  %55 = vst [vmem:[%s3 + $0x8] sm:$0xff] %v52
  // Predicated region
  $region14: #{decoder_forward.7} parent=0 // pred_check
    _
  $region15: #{decoder_forward.7} parent=0 // pred_check_branch
    %57 = sbr.rel (0) target = $region17
  $region16: #{decoder_forward.7} parent=0 // pred_region
    _
  $region17: #{decoder_forward.7} parent=0 // pred_fallthru
    _
  // Predicated region
  $region18: #{decoder_forward.7} parent=0 // pred_check
    _
  $region19: #{decoder_forward.7} parent=0 // pred_check_branch
    %59 = sbr.rel (0) target = $region21
  $region20: #{decoder_forward.7} parent=0 // pred_region
    _
  $region21: #{decoder_forward.7} parent=0 // pred_fallthru
    _

// kernel: decoder_forward.5
$region0: #{decoder_forward.5}
  #allocation0 [shape = 'u32[]', space=smem, size = 0x4, offset = 0x4, fixed_abs, tag = 'smem constant byte address 0x4 - core index']
  #allocation1 [shape = 'u32[72,128]{1,0:T(1,128)}', space=vmem, size = 0x9000, scoped, tag = 'internal scratch']
  %s0 = inlined_call_operand.vmem [shape: f32[2,8,32], index: 0, kind: input, shape index: {}]
  %s1 = inlined_call_operand.hbm [shape: f32[2,8,32], index: 1, kind: input, shape index: {}]
  %s2 = inlined_call_operand.hbm [shape: f32[2,8,8], index: 2, kind: input, shape index: {}]
  %s3 = inlined_call_operand.hbm [shape: f32[2,8,8], index: 3, kind: input, shape index: {}]
  %s4 = inlined_call_operand.vmem [shape: f32[32,96], index: 4, kind: input, shape index: {}]
  %s5 = inlined_call_operand.vmem [shape: f32[1,96], index: 5, kind: input, shape index: {}]
  %s6 = inlined_call_operand.vmem [shape: f32[32,32], index: 6, kind: input, shape index: {}]
  %s7 = inlined_call_operand.vmem [shape: f32[1,32], index: 7, kind: input, shape index: {}]
  %s8 = inlined_call_operand.vmem [shape: f32[1,32], index: 8, kind: input, shape index: {}]
  %s9 = inlined_call_operand.vmem [shape: f32[1,32], index: 9, kind: input, shape index: {}]
  %s10 = inlined_call_operand.vmem [shape: f32[32,32], index: 10, kind: input, shape index: {}]
  %s11 = inlined_call_operand.vmem [shape: f32[1,32], index: 11, kind: input, shape index: {}]
  %s12 = inlined_call_operand.vmem [shape: f32[32,64], index: 12, kind: input, shape index: {}]
  %s13 = inlined_call_operand.vmem [shape: f32[1,64], index: 13, kind: input, shape index: {}]
  %s14 = inlined_call_operand.hbm [shape: f32[32,32], index: 14, kind: input, shape index: {}]
  %s15 = inlined_call_operand.vmem [shape: f32[1,32], index: 15, kind: input, shape index: {}]
  %s16 = inlined_call_operand.vmem [shape: f32[1,32], index: 16, kind: input, shape index: {}]
  %s17 = inlined_call_operand.vmem [shape: f32[1,32], index: 17, kind: input, shape index: {}]
  %s18 = inlined_call_operand.hbm [shape: f32[32,64], index: 18, kind: input, shape index: {}]
  %s19 = inlined_call_operand.vmem [shape: f32[1,64], index: 19, kind: input, shape index: {}]
  %s20 = inlined_call_operand.vmem [shape: f32[64,32], index: 20, kind: input, shape index: {}]
  %s21 = inlined_call_operand.vmem [shape: f32[1,32], index: 21, kind: input, shape index: {}]
  %s22 = inlined_call_operand.vmem [shape: f32[2,8,32], index: 22, kind: output, shape index: {}]
  %s23 = sld [smem:[#allocation0]]
  $region141: #{decoder_forward.5} parent=0
    _
  %s25 = ssub.s32 1, %s23
  %s26 = scalar_select 0, %s25, %s23
  $region1: #{decoder_forward.5} parent=0
    #allocation2 [shape = 'u8[8192]{0}', space=vmem, size = 0x2000, scoped, tag = 'input window, operand 1']
    #allocation3 [shape = 's32[2]{0}', space=sflag, size = 0x8, scoped, tag = 'scoped memory for decoder_forward.5']
    #allocation4 [shape = 'u8[8192]{0}', space=vmem, size = 0x2000, scoped, tag = 'input window, operand 2']
    #allocation5 [shape = 's32[2]{0}', space=sflag, size = 0x8, scoped, tag = 'scoped memory for decoder_forward.5']
    #allocation6 [shape = 'u8[8192]{0}', space=vmem, size = 0x2000, scoped, tag = 'input window, operand 3']
    #allocation7 [shape = 'u8[16384]{0}', space=vmem, size = 0x4000, scoped, tag = 'input window, operand 14, single buffered']
    #allocation8 [shape = 's32[1]{0}', space=sflag, size = 0x4, scoped, tag = 'scoped memory for decoder_forward.5']
    #allocation9 [shape = 'u8[16384]{0}', space=vmem, size = 0x4000, scoped, tag = 'input window, operand 18, single buffered']
    %27 = vsyncpa [#allocation3], 0
    %s28 = scalar_lea.sflag [#allocation3], 1
    %29 = vsyncpa %s28, 0
    %30 = vsyncpa [#allocation5], 0
    %s31 = scalar_lea.sflag [#allocation5], 1
    %32 = vsyncpa %s31, 0
    %33 = vsyncpa [#allocation8], 0
    loop: start=0, step=1, limit=4
    $region2: #{decoder_forward.5} parent=1 // loop_pre_header
      _
    $region3: #{decoder_forward.5} parent=1 // loop_header
      %s35 = sphi 0, %s39
      %p36 = scmp.ge.s32.totalorder %s35, 4
      %s45 = sphi 0, %s47
      %s48 = sphi 0, %s45
      %s49 = sphi 0, %s48
      %s65 = sphi 0, %s49
      %s71 = sphi 0, %s73
      %s74 = sphi 0, %s71
      %s75 = sphi 0, %s74
      %s91 = sphi 0, %s75
      %s97 = sphi 0, %s99
      %s100 = sphi 0, %s97
      %s101 = sphi 0, %s100
      %s117 = sphi 0, %s101
      %s123 = sphi 0, %s125
      %s126 = sphi 0, %s123
      %s127 = sphi 0, %s126
      %s143 = sphi 0, %s127
      %s147 = sphi 0, %s147
      %s149 = sphi 0, %s147
      %s150 = sphi 0, %s149
      %s164 = sphi 0, %s150
      %s168 = sphi 0, %s168
      %s170 = sphi 0, %s168
      %s171 = sphi 0, %s170
      %s185 = sphi 0, %s171
      %s189 = sphi 0, %s189
      %s191 = sphi 0, %s189
      %s192 = sphi 0, %s191
      %s206 = sphi 0, %s192
      %s210 = sphi 0, %s210
      %s212 = sphi 0, %s210
      %s213 = sphi 0, %s212
      %s227 = sphi 0, %s213
      %s231 = sphi 0, %s231
      %s233 = sphi 0, %s231
      %s234 = sphi 0, %s233
      %s248 = sphi 0, %s234
      %s252 = sphi 0, %s252
      %s254 = sphi 0, %s252
      %s255 = sphi 0, %s254
      %s269 = sphi 0, %s255
      %s273 = sphi 0, %s273
      %s275 = sphi 0, %s273
      %s276 = sphi 0, %s275
      %s290 = sphi 0, %s276
      %s294 = sphi 0, %s294
      %s296 = sphi 0, %s294
      %s297 = sphi 0, %s296
      %s311 = sphi 0, %s297
      %s315 = sphi 0, %s315
      %s317 = sphi 0, %s315
      %s318 = sphi 0, %s317
      %s332 = sphi 0, %s318
      %s336 = sphi 0, %s336
      %s338 = sphi 0, %s336
      %s339 = sphi 0, %s338
      %s353 = sphi 0, %s339
      %s357 = sphi 0, %s357
      %s359 = sphi 0, %s357
      %s360 = sphi 0, %s359
      %s374 = sphi 0, %s360
      %s378 = sphi 0, %s378
      %s380 = sphi 0, %s378
      %s381 = sphi 0, %s380
      %s395 = sphi 0, %s381
      %s399 = sphi 0, %s399
      %s401 = sphi 0, %s399
      %s402 = sphi 0, %s401
      %s416 = sphi 0, %s402
      %s420 = sphi 0, %s420
      %s422 = sphi 0, %s420
      %s423 = sphi 0, %s422
      %s437 = sphi 0, %s423
      %s441 = sphi 0, %s441
      %s443 = sphi 0, %s441
      %s444 = sphi 0, %s443
      %s458 = sphi 0, %s444
      %s462 = sphi 0, %s462
      %s464 = sphi 0, %s462
      %s465 = sphi 0, %s464
      %s479 = sphi 0, %s465
      %s483 = sphi 0, %s483
      %s485 = sphi 0, %s483
      %s486 = sphi 0, %s485
      %s500 = sphi 0, %s486
      %s504 = sphi 0, %s504
      %s506 = sphi 0, %s504
      %s507 = sphi 0, %s506
      %s521 = sphi 0, %s507
      %s527 = sphi 0, %s529
      %s530 = sphi 0, %s527
      %s531 = sphi 0, %s530
      %s547 = sphi 0, %s531
    $region4: #{decoder_forward.5} parent=1 // loop_header_branch
      %38 = sbr.rel (%p36) target = $region8
    $region5: #{decoder_forward.5} parent=1 // loop_body
      %s40 = ssub.s32 %s35, 1
      %s41 = ssub.s32 %s35, 2
      %s42 = sadd.s32 %s35, 1
      %s43 = ssub.s32 %s35, %s42
      %p44 = scmp.eq.s32.totalorder %s43, 0
      %s46 = sadd.s32 %s45, 1
      %s47 = scalar_select %p44, %s45, %s46
      %p50 = pneg %p44
      %p51 = scmp.eq.s32.totalorder %s35, 1
      %p52 = por %p50, %p51
      %p53 = scmp.ne.s32.totalorder %s45, %s48
      %p54 = scmp.eq.s32.totalorder %s35, 0
      %p55 = por %p53, %p54
      %p56 = scmp.ne.s32.totalorder %s45, %s48
      %p57 = scmp.eq.s32.totalorder %s40, 1
      %p58 = por %p56, %p57
      %p59 = scmp.ne.s32.totalorder %s48, %s49
      %p60 = scmp.eq.s32.totalorder %s40, 0
      %p61 = por %p59, %p60
      %p62 = scmp.ne.s32.totalorder %s48, %s49
      %p63 = scmp.eq.s32.totalorder %s41, 1
      %p64 = por %p62, %p63
      %p66 = scmp.ne.s32.totalorder %s49, %s65
      %p67 = scmp.eq.s32.totalorder %s41, 0
      %p68 = por %p66, %p67
      %s69 = ssub.s32 %s35, %s42
      %p70 = scmp.eq.s32.totalorder %s69, 0
      %s72 = sadd.s32 %s71, 1
      %s73 = scalar_select %p70, %s71, %s72
      %p76 = pneg %p70
      %p77 = scmp.eq.s32.totalorder %s35, 1
      %p78 = por %p76, %p77
      %p79 = scmp.ne.s32.totalorder %s71, %s74
      %p80 = scmp.eq.s32.totalorder %s35, 0
      %p81 = por %p79, %p80
      %p82 = scmp.ne.s32.totalorder %s71, %s74
      %p83 = scmp.eq.s32.totalorder %s40, 1
      %p84 = por %p82, %p83
      %p85 = scmp.ne.s32.totalorder %s74, %s75
      %p86 = scmp.eq.s32.totalorder %s40, 0
      %p87 = por %p85, %p86
      %p88 = scmp.ne.s32.totalorder %s74, %s75
      %p89 = scmp.eq.s32.totalorder %s41, 1
      %p90 = por %p88, %p89
      %p92 = scmp.ne.s32.totalorder %s75, %s91
      %p93 = scmp.eq.s32.totalorder %s41, 0
      %p94 = por %p92, %p93
      %s95 = ssub.s32 %s35, %s42
      %p96 = scmp.eq.s32.totalorder %s95, 0
      %s98 = sadd.s32 %s97, 1
      %s99 = scalar_select %p96, %s97, %s98
      %p102 = pneg %p96
      %p103 = scmp.eq.s32.totalorder %s35, 1
      %p104 = por %p102, %p103
      %p105 = scmp.ne.s32.totalorder %s97, %s100
      %p106 = scmp.eq.s32.totalorder %s35, 0
      %p107 = por %p105, %p106
      %p108 = scmp.ne.s32.totalorder %s97, %s100
      %p109 = scmp.eq.s32.totalorder %s40, 1
      %p110 = por %p108, %p109
      %p111 = scmp.ne.s32.totalorder %s100, %s101
      %p112 = scmp.eq.s32.totalorder %s40, 0
      %p113 = por %p111, %p112
      %p114 = scmp.ne.s32.totalorder %s100, %s101
      %p115 = scmp.eq.s32.totalorder %s41, 1
      %p116 = por %p114, %p115
      %p118 = scmp.ne.s32.totalorder %s101, %s117
      %p119 = scmp.eq.s32.totalorder %s41, 0
      %p120 = por %p118, %p119
      %s121 = ssub.s32 %s35, %s42
      %p122 = scmp.eq.s32.totalorder %s121, 0
      %s124 = sadd.s32 %s123, 1
      %s125 = scalar_select %p122, %s123, %s124
      %p128 = pneg %p122
      %p129 = scmp.eq.s32.totalorder %s35, 1
      %p130 = por %p128, %p129
      %p131 = scmp.ne.s32.totalorder %s123, %s126
      %p132 = scmp.eq.s32.totalorder %s35, 0
      %p133 = por %p131, %p132
      %p134 = scmp.ne.s32.totalorder %s123, %s126
      %p135 = scmp.eq.s32.totalorder %s40, 1
      %p136 = por %p134, %p135
      %p137 = scmp.ne.s32.totalorder %s126, %s127
      %p138 = scmp.eq.s32.totalorder %s40, 0
      %p139 = por %p137, %p138
      %p140 = scmp.ne.s32.totalorder %s126, %s127
      %p141 = scmp.eq.s32.totalorder %s41, 1
      %p142 = por %p140, %p141
      %p144 = scmp.ne.s32.totalorder %s127, %s143
      %p145 = scmp.eq.s32.totalorder %s41, 0
      %p146 = por %p144, %p145
      %s148 = sadd.s32 %s147, 1
      %p151 = scmp.eq.s32.totalorder %s35, 1
      %p152 = scmp.ne.s32.totalorder %s147, %s149
      %p153 = scmp.eq.s32.totalorder %s35, 0
      %p154 = por %p152, %p153
      %p155 = scmp.ne.s32.totalorder %s147, %s149
      %p156 = scmp.eq.s32.totalorder %s40, 1
      %p157 = por %p155, %p156
      %p158 = scmp.ne.s32.totalorder %s149, %s150
      %p159 = scmp.eq.s32.totalorder %s40, 0
      %p160 = por %p158, %p159
      %p161 = scmp.ne.s32.totalorder %s149, %s150
      %p162 = scmp.eq.s32.totalorder %s41, 1
      %p163 = por %p161, %p162
      %p165 = scmp.ne.s32.totalorder %s150, %s164
      %p166 = scmp.eq.s32.totalorder %s41, 0
      %p167 = por %p165, %p166
      %s169 = sadd.s32 %s168, 1
      %p172 = scmp.eq.s32.totalorder %s35, 1
      %p173 = scmp.ne.s32.totalorder %s168, %s170
      %p174 = scmp.eq.s32.totalorder %s35, 0
      %p175 = por %p173, %p174
      %p176 = scmp.ne.s32.totalorder %s168, %s170
      %p177 = scmp.eq.s32.totalorder %s40, 1
      %p178 = por %p176, %p177
      %p179 = scmp.ne.s32.totalorder %s170, %s171
      %p180 = scmp.eq.s32.totalorder %s40, 0
      %p181 = por %p179, %p180
      %p182 = scmp.ne.s32.totalorder %s170, %s171
      %p183 = scmp.eq.s32.totalorder %s41, 1
      %p184 = por %p182, %p183
      %p186 = scmp.ne.s32.totalorder %s171, %s185
      %p187 = scmp.eq.s32.totalorder %s41, 0
      %p188 = por %p186, %p187
      %s190 = sadd.s32 %s189, 1
      %p193 = scmp.eq.s32.totalorder %s35, 1
      %p194 = scmp.ne.s32.totalorder %s189, %s191
      %p195 = scmp.eq.s32.totalorder %s35, 0
      %p196 = por %p194, %p195
      %p197 = scmp.ne.s32.totalorder %s189, %s191
      %p198 = scmp.eq.s32.totalorder %s40, 1
      %p199 = por %p197, %p198
      %p200 = scmp.ne.s32.totalorder %s191, %s192
      %p201 = scmp.eq.s32.totalorder %s40, 0
      %p202 = por %p200, %p201
      %p203 = scmp.ne.s32.totalorder %s191, %s192
      %p204 = scmp.eq.s32.totalorder %s41, 1
      %p205 = por %p203, %p204
      %p207 = scmp.ne.s32.totalorder %s192, %s206
      %p208 = scmp.eq.s32.totalorder %s41, 0
      %p209 = por %p207, %p208
      %s211 = sadd.s32 %s210, 1
      %p214 = scmp.eq.s32.totalorder %s35, 1
      %p215 = scmp.ne.s32.totalorder %s210, %s212
      %p216 = scmp.eq.s32.totalorder %s35, 0
      %p217 = por %p215, %p216
      %p218 = scmp.ne.s32.totalorder %s210, %s212
      %p219 = scmp.eq.s32.totalorder %s40, 1
      %p220 = por %p218, %p219
      %p221 = scmp.ne.s32.totalorder %s212, %s213
      %p222 = scmp.eq.s32.totalorder %s40, 0
      %p223 = por %p221, %p222
      %p224 = scmp.ne.s32.totalorder %s212, %s213
      %p225 = scmp.eq.s32.totalorder %s41, 1
      %p226 = por %p224, %p225
      %p228 = scmp.ne.s32.totalorder %s213, %s227
      %p229 = scmp.eq.s32.totalorder %s41, 0
      %p230 = por %p228, %p229
      %s232 = sadd.s32 %s231, 1
      %p235 = scmp.eq.s32.totalorder %s35, 1
      %p236 = scmp.ne.s32.totalorder %s231, %s233
      %p237 = scmp.eq.s32.totalorder %s35, 0
      %p238 = por %p236, %p237
      %p239 = scmp.ne.s32.totalorder %s231, %s233
      %p240 = scmp.eq.s32.totalorder %s40, 1
      %p241 = por %p239, %p240
      %p242 = scmp.ne.s32.totalorder %s233, %s234
      %p243 = scmp.eq.s32.totalorder %s40, 0
      %p244 = por %p242, %p243
      %p245 = scmp.ne.s32.totalorder %s233, %s234
      %p246 = scmp.eq.s32.totalorder %s41, 1
      %p247 = por %p245, %p246
      %p249 = scmp.ne.s32.totalorder %s234, %s248
      %p250 = scmp.eq.s32.totalorder %s41, 0
      %p251 = por %p249, %p250
      %s253 = sadd.s32 %s252, 1
      %p256 = scmp.eq.s32.totalorder %s35, 1
      %p257 = scmp.ne.s32.totalorder %s252, %s254
      %p258 = scmp.eq.s32.totalorder %s35, 0
      %p259 = por %p257, %p258
      %p260 = scmp.ne.s32.totalorder %s252, %s254
      %p261 = scmp.eq.s32.totalorder %s40, 1
      %p262 = por %p260, %p261
      %p263 = scmp.ne.s32.totalorder %s254, %s255
      %p264 = scmp.eq.s32.totalorder %s40, 0
      %p265 = por %p263, %p264
      %p266 = scmp.ne.s32.totalorder %s254, %s255
      %p267 = scmp.eq.s32.totalorder %s41, 1
      %p268 = por %p266, %p267
      %p270 = scmp.ne.s32.totalorder %s255, %s269
      %p271 = scmp.eq.s32.totalorder %s41, 0
      %p272 = por %p270, %p271
      %s274 = sadd.s32 %s273, 1
      %p277 = scmp.eq.s32.totalorder %s35, 1
      %p278 = scmp.ne.s32.totalorder %s273, %s275
      %p279 = scmp.eq.s32.totalorder %s35, 0
      %p280 = por %p278, %p279
      %p281 = scmp.ne.s32.totalorder %s273, %s275
      %p282 = scmp.eq.s32.totalorder %s40, 1
      %p283 = por %p281, %p282
      %p284 = scmp.ne.s32.totalorder %s275, %s276
      %p285 = scmp.eq.s32.totalorder %s40, 0
      %p286 = por %p284, %p285
      %p287 = scmp.ne.s32.totalorder %s275, %s276
      %p288 = scmp.eq.s32.totalorder %s41, 1
      %p289 = por %p287, %p288
      %p291 = scmp.ne.s32.totalorder %s276, %s290
      %p292 = scmp.eq.s32.totalorder %s41, 0
      %p293 = por %p291, %p292
      %s295 = sadd.s32 %s294, 1
      %p298 = scmp.eq.s32.totalorder %s35, 1
      %p299 = scmp.ne.s32.totalorder %s294, %s296
      %p300 = scmp.eq.s32.totalorder %s35, 0
      %p301 = por %p299, %p300
      %p302 = scmp.ne.s32.totalorder %s294, %s296
      %p303 = scmp.eq.s32.totalorder %s40, 1
      %p304 = por %p302, %p303
      %p305 = scmp.ne.s32.totalorder %s296, %s297
      %p306 = scmp.eq.s32.totalorder %s40, 0
      %p307 = por %p305, %p306
      %p308 = scmp.ne.s32.totalorder %s296, %s297
      %p309 = scmp.eq.s32.totalorder %s41, 1
      %p310 = por %p308, %p309
      %p312 = scmp.ne.s32.totalorder %s297, %s311
      %p313 = scmp.eq.s32.totalorder %s41, 0
      %p314 = por %p312, %p313
      %s316 = sadd.s32 %s315, 1
      %p319 = scmp.eq.s32.totalorder %s35, 1
      %p320 = scmp.ne.s32.totalorder %s315, %s317
      %p321 = scmp.eq.s32.totalorder %s35, 0
      %p322 = por %p320, %p321
      %p323 = scmp.ne.s32.totalorder %s315, %s317
      %p324 = scmp.eq.s32.totalorder %s40, 1
      %p325 = por %p323, %p324
      %p326 = scmp.ne.s32.totalorder %s317, %s318
      %p327 = scmp.eq.s32.totalorder %s40, 0
      %p328 = por %p326, %p327
      %p329 = scmp.ne.s32.totalorder %s317, %s318
      %p330 = scmp.eq.s32.totalorder %s41, 1
      %p331 = por %p329, %p330
      %p333 = scmp.ne.s32.totalorder %s318, %s332
      %p334 = scmp.eq.s32.totalorder %s41, 0
      %p335 = por %p333, %p334
      %s337 = sadd.s32 %s336, 1
      %p340 = scmp.eq.s32.totalorder %s35, 1
      %p341 = scmp.ne.s32.totalorder %s336, %s338
      %p342 = scmp.eq.s32.totalorder %s35, 0
      %p343 = por %p341, %p342
      %p344 = scmp.ne.s32.totalorder %s336, %s338
      %p345 = scmp.eq.s32.totalorder %s40, 1
      %p346 = por %p344, %p345
      %p347 = scmp.ne.s32.totalorder %s338, %s339
      %p348 = scmp.eq.s32.totalorder %s40, 0
      %p349 = por %p347, %p348
      %p350 = scmp.ne.s32.totalorder %s338, %s339
      %p351 = scmp.eq.s32.totalorder %s41, 1
      %p352 = por %p350, %p351
      %p354 = scmp.ne.s32.totalorder %s339, %s353
      %p355 = scmp.eq.s32.totalorder %s41, 0
      %p356 = por %p354, %p355
      %s358 = sadd.s32 %s357, 1
      %p361 = scmp.eq.s32.totalorder %s35, 1
      %p362 = scmp.ne.s32.totalorder %s357, %s359
      %p363 = scmp.eq.s32.totalorder %s35, 0
      %p364 = por %p362, %p363
      %p365 = scmp.ne.s32.totalorder %s357, %s359
      %p366 = scmp.eq.s32.totalorder %s40, 1
      %p367 = por %p365, %p366
      %p368 = scmp.ne.s32.totalorder %s359, %s360
      %p369 = scmp.eq.s32.totalorder %s40, 0
      %p370 = por %p368, %p369
      %p371 = scmp.ne.s32.totalorder %s359, %s360
      %p372 = scmp.eq.s32.totalorder %s41, 1
      %p373 = por %p371, %p372
      %p375 = scmp.ne.s32.totalorder %s360, %s374
      %p376 = scmp.eq.s32.totalorder %s41, 0
      %p377 = por %p375, %p376
      %s379 = sadd.s32 %s378, 1
      %p382 = scmp.eq.s32.totalorder %s35, 1
      %p383 = scmp.ne.s32.totalorder %s378, %s380
      %p384 = scmp.eq.s32.totalorder %s35, 0
      %p385 = por %p383, %p384
      %p386 = scmp.ne.s32.totalorder %s378, %s380
      %p387 = scmp.eq.s32.totalorder %s40, 1
      %p388 = por %p386, %p387
      %p389 = scmp.ne.s32.totalorder %s380, %s381
      %p390 = scmp.eq.s32.totalorder %s40, 0
      %p391 = por %p389, %p390
      %p392 = scmp.ne.s32.totalorder %s380, %s381
      %p393 = scmp.eq.s32.totalorder %s41, 1
      %p394 = por %p392, %p393
      %p396 = scmp.ne.s32.totalorder %s381, %s395
      %p397 = scmp.eq.s32.totalorder %s41, 0
      %p398 = por %p396, %p397
      %s400 = sadd.s32 %s399, 1
      %p403 = scmp.eq.s32.totalorder %s35, 1
      %p404 = scmp.ne.s32.totalorder %s399, %s401
      %p405 = scmp.eq.s32.totalorder %s35, 0
      %p406 = por %p404, %p405
      %p407 = scmp.ne.s32.totalorder %s399, %s401
      %p408 = scmp.eq.s32.totalorder %s40, 1
      %p409 = por %p407, %p408
      %p410 = scmp.ne.s32.totalorder %s401, %s402
      %p411 = scmp.eq.s32.totalorder %s40, 0
      %p412 = por %p410, %p411
      %p413 = scmp.ne.s32.totalorder %s401, %s402
      %p414 = scmp.eq.s32.totalorder %s41, 1
      %p415 = por %p413, %p414
      %p417 = scmp.ne.s32.totalorder %s402, %s416
      %p418 = scmp.eq.s32.totalorder %s41, 0
      %p419 = por %p417, %p418
      %s421 = sadd.s32 %s420, 1
      %p424 = scmp.eq.s32.totalorder %s35, 1
      %p425 = scmp.ne.s32.totalorder %s420, %s422
      %p426 = scmp.eq.s32.totalorder %s35, 0
      %p427 = por %p425, %p426
      %p428 = scmp.ne.s32.totalorder %s420, %s422
      %p429 = scmp.eq.s32.totalorder %s40, 1
      %p430 = por %p428, %p429
      %p431 = scmp.ne.s32.totalorder %s422, %s423
      %p432 = scmp.eq.s32.totalorder %s40, 0
      %p433 = por %p431, %p432
      %p434 = scmp.ne.s32.totalorder %s422, %s423
      %p435 = scmp.eq.s32.totalorder %s41, 1
      %p436 = por %p434, %p435
      %p438 = scmp.ne.s32.totalorder %s423, %s437
      %p439 = scmp.eq.s32.totalorder %s41, 0
      %p440 = por %p438, %p439
      %s442 = sadd.s32 %s441, 1
      %p445 = scmp.eq.s32.totalorder %s35, 1
      %p446 = scmp.ne.s32.totalorder %s441, %s443
      %p447 = scmp.eq.s32.totalorder %s35, 0
      %p448 = por %p446, %p447
      %p449 = scmp.ne.s32.totalorder %s441, %s443
      %p450 = scmp.eq.s32.totalorder %s40, 1
      %p451 = por %p449, %p450
      %p452 = scmp.ne.s32.totalorder %s443, %s444
      %p453 = scmp.eq.s32.totalorder %s40, 0
      %p454 = por %p452, %p453
      %p455 = scmp.ne.s32.totalorder %s443, %s444
      %p456 = scmp.eq.s32.totalorder %s41, 1
      %p457 = por %p455, %p456
      %p459 = scmp.ne.s32.totalorder %s444, %s458
      %p460 = scmp.eq.s32.totalorder %s41, 0
      %p461 = por %p459, %p460
      %s463 = sadd.s32 %s462, 1
      %p466 = scmp.eq.s32.totalorder %s35, 1
      %p467 = scmp.ne.s32.totalorder %s462, %s464
      %p468 = scmp.eq.s32.totalorder %s35, 0
      %p469 = por %p467, %p468
      %p470 = scmp.ne.s32.totalorder %s462, %s464
      %p471 = scmp.eq.s32.totalorder %s40, 1
      %p472 = por %p470, %p471
      %p473 = scmp.ne.s32.totalorder %s464, %s465
      %p474 = scmp.eq.s32.totalorder %s40, 0
      %p475 = por %p473, %p474
      %p476 = scmp.ne.s32.totalorder %s464, %s465
      %p477 = scmp.eq.s32.totalorder %s41, 1
      %p478 = por %p476, %p477
      %p480 = scmp.ne.s32.totalorder %s465, %s479
      %p481 = scmp.eq.s32.totalorder %s41, 0
      %p482 = por %p480, %p481
      %s484 = sadd.s32 %s483, 1
      %p487 = scmp.eq.s32.totalorder %s35, 1
      %p488 = scmp.ne.s32.totalorder %s483, %s485
      %p489 = scmp.eq.s32.totalorder %s35, 0
      %p490 = por %p488, %p489
      %p491 = scmp.ne.s32.totalorder %s483, %s485
      %p492 = scmp.eq.s32.totalorder %s40, 1
      %p493 = por %p491, %p492
      %p494 = scmp.ne.s32.totalorder %s485, %s486
      %p495 = scmp.eq.s32.totalorder %s40, 0
      %p496 = por %p494, %p495
      %p497 = scmp.ne.s32.totalorder %s485, %s486
      %p498 = scmp.eq.s32.totalorder %s41, 1
      %p499 = por %p497, %p498
      %p501 = scmp.ne.s32.totalorder %s486, %s500
      %p502 = scmp.eq.s32.totalorder %s41, 0
      %p503 = por %p501, %p502
      %s505 = sadd.s32 %s504, 1
      %p508 = scmp.eq.s32.totalorder %s35, 1
      %p509 = scmp.ne.s32.totalorder %s504, %s506
      %p510 = scmp.eq.s32.totalorder %s35, 0
      %p511 = por %p509, %p510
      %p512 = scmp.ne.s32.totalorder %s504, %s506
      %p513 = scmp.eq.s32.totalorder %s40, 1
      %p514 = por %p512, %p513
      %p515 = scmp.ne.s32.totalorder %s506, %s507
      %p516 = scmp.eq.s32.totalorder %s40, 0
      %p517 = por %p515, %p516
      %p518 = scmp.ne.s32.totalorder %s506, %s507
      %p519 = scmp.eq.s32.totalorder %s41, 1
      %p520 = por %p518, %p519
      %p522 = scmp.ne.s32.totalorder %s507, %s521
      %p523 = scmp.eq.s32.totalorder %s41, 0
      %p524 = por %p522, %p523
      %s525 = ssub.s32 %s35, %s42
      %p526 = scmp.eq.s32.totalorder %s525, 0
      %s528 = sadd.s32 %s527, 1
      %s529 = scalar_select %p526, %s527, %s528
      %p532 = pneg %p526
      %p533 = scmp.eq.s32.totalorder %s35, 1
      %p534 = por %p532, %p533
      %p535 = scmp.ne.s32.totalorder %s527, %s530
      %p536 = scmp.eq.s32.totalorder %s35, 0
      %p537 = por %p535, %p536
      %p538 = scmp.ne.s32.totalorder %s527, %s530
      %p539 = scmp.eq.s32.totalorder %s40, 1
      %p540 = por %p538, %p539
      %p541 = scmp.ne.s32.totalorder %s530, %s531
      %p542 = scmp.eq.s32.totalorder %s40, 0
      %p543 = por %p541, %p542
      %p544 = scmp.ne.s32.totalorder %s530, %s531
      %p545 = scmp.eq.s32.totalorder %s41, 1
      %p546 = por %p544, %p545
      %p548 = scmp.ne.s32.totalorder %s531, %s547
      %p549 = scmp.eq.s32.totalorder %s41, 0
      %p550 = por %p548, %p549
      %p551 = scmp.le.s32.totalorder 1, %s35
      %p552 = scmp.lt.s32.totalorder %s35, 3
      %p553 = pnand %p551, %p552
      %p554 = pneg %p553
      // Predicated region
      $region9: #{decoder_forward.5} parent=5 // pred_check
        _
      $region10: #{decoder_forward.5} parent=5 // pred_check_branch
        %556 = sbr.rel (%p553) target = $region12
      $region11: #{decoder_forward.5} parent=5 // pred_region
        %s557 = ssub.s32 %s35, 1
        // Predicated region
        $region13: #{decoder_forward.5} parent=11 // pred_check
          %p558 = pneg %p160
        $region14: #{decoder_forward.5} parent=11 // pred_check_branch
          %560 = sbr.rel (%p558) target = $region16
        $region15: #{decoder_forward.5} parent=11 // pred_region
          _
        $region16: #{decoder_forward.5} parent=11 // pred_fallthru
          _
        // Predicated region
        $region17: #{decoder_forward.5} parent=11 // pred_check
          %p561 = pneg %p181
        $region18: #{decoder_forward.5} parent=11 // pred_check_branch
          %563 = sbr.rel (%p561) target = $region20
        $region19: #{decoder_forward.5} parent=11 // pred_region
          _
        $region20: #{decoder_forward.5} parent=11 // pred_fallthru
          _
        // Predicated region
        $region21: #{decoder_forward.5} parent=11 // pred_check
          %p564 = pneg %p202
        $region22: #{decoder_forward.5} parent=11 // pred_check_branch
          %566 = sbr.rel (%p564) target = $region24
        $region23: #{decoder_forward.5} parent=11 // pred_region
          _
        $region24: #{decoder_forward.5} parent=11 // pred_fallthru
          _
        // Predicated region
        $region25: #{decoder_forward.5} parent=11 // pred_check
          %p567 = pneg %p223
        $region26: #{decoder_forward.5} parent=11 // pred_check_branch
          %569 = sbr.rel (%p567) target = $region28
        $region27: #{decoder_forward.5} parent=11 // pred_region
          _
        $region28: #{decoder_forward.5} parent=11 // pred_fallthru
          _
        // Predicated region
        $region29: #{decoder_forward.5} parent=11 // pred_check
          %p570 = pneg %p244
        $region30: #{decoder_forward.5} parent=11 // pred_check_branch
          %572 = sbr.rel (%p570) target = $region32
        $region31: #{decoder_forward.5} parent=11 // pred_region
          _
        $region32: #{decoder_forward.5} parent=11 // pred_fallthru
          _
        // Predicated region
        $region33: #{decoder_forward.5} parent=11 // pred_check
          %p573 = pneg %p265
        $region34: #{decoder_forward.5} parent=11 // pred_check_branch
          %575 = sbr.rel (%p573) target = $region36
        $region35: #{decoder_forward.5} parent=11 // pred_region
          _
        $region36: #{decoder_forward.5} parent=11 // pred_fallthru
          _
        // Predicated region
        $region37: #{decoder_forward.5} parent=11 // pred_check
          %p576 = pneg %p286
        $region38: #{decoder_forward.5} parent=11 // pred_check_branch
          %578 = sbr.rel (%p576) target = $region40
        $region39: #{decoder_forward.5} parent=11 // pred_region
          _
        $region40: #{decoder_forward.5} parent=11 // pred_fallthru
          _
        // Predicated region
        $region41: #{decoder_forward.5} parent=11 // pred_check
          %p579 = pneg %p307
        $region42: #{decoder_forward.5} parent=11 // pred_check_branch
          %581 = sbr.rel (%p579) target = $region44
        $region43: #{decoder_forward.5} parent=11 // pred_region
          _
        $region44: #{decoder_forward.5} parent=11 // pred_fallthru
          _
        // Predicated region
        $region45: #{decoder_forward.5} parent=11 // pred_check
          %p582 = pneg %p328
        $region46: #{decoder_forward.5} parent=11 // pred_check_branch
          %584 = sbr.rel (%p582) target = $region48
        $region47: #{decoder_forward.5} parent=11 // pred_region
          _
        $region48: #{decoder_forward.5} parent=11 // pred_fallthru
          _
        // Predicated region
        $region49: #{decoder_forward.5} parent=11 // pred_check
          %p585 = pneg %p349
        $region50: #{decoder_forward.5} parent=11 // pred_check_branch
          %587 = sbr.rel (%p585) target = $region52
        $region51: #{decoder_forward.5} parent=11 // pred_region
          _
        $region52: #{decoder_forward.5} parent=11 // pred_fallthru
          _
        // Predicated region
        $region53: #{decoder_forward.5} parent=11 // pred_check
          %p588 = pneg %p370
        $region54: #{decoder_forward.5} parent=11 // pred_check_branch
          %590 = sbr.rel (%p588) target = $region56
        $region55: #{decoder_forward.5} parent=11 // pred_region
          %592 = vsyncadd [#allocation8], 0
          %s593 = sshll.u32 %s14, 4
          %s594 = int_to_ptr.hbm [resolvable:$true] %s593
          %s595 = sshll.u32 [#allocation7], 4
          %s596 = int_to_ptr.vmem [resolvable:$true] %s595
          %601 = dma.hbm_to_vmem [thread:$0]  %s594, 512, %s596, [#allocation8], 128, 128, 8
        $region56: #{decoder_forward.5} parent=11 // pred_fallthru
          _
        // Predicated region
        $region57: #{decoder_forward.5} parent=11 // pred_check
          %p602 = pneg %p391
        $region58: #{decoder_forward.5} parent=11 // pred_check_branch
          %604 = sbr.rel (%p602) target = $region60
        $region59: #{decoder_forward.5} parent=11 // pred_region
          _
        $region60: #{decoder_forward.5} parent=11 // pred_fallthru
          _
        // Predicated region
        $region61: #{decoder_forward.5} parent=11 // pred_check
          %p605 = pneg %p412
        $region62: #{decoder_forward.5} parent=11 // pred_check_branch
          %607 = sbr.rel (%p605) target = $region64
        $region63: #{decoder_forward.5} parent=11 // pred_region
          _
        $region64: #{decoder_forward.5} parent=11 // pred_fallthru
          _
        // Predicated region
        $region65: #{decoder_forward.5} parent=11 // pred_check
          %p608 = pneg %p433
        $region66: #{decoder_forward.5} parent=11 // pred_check_branch
          %610 = sbr.rel (%p608) target = $region68
        $region67: #{decoder_forward.5} parent=11 // pred_region
          _
        $region68: #{decoder_forward.5} parent=11 // pred_fallthru
          _
        // Predicated region
        $region69: #{decoder_forward.5} parent=11 // pred_check
          %p611 = pneg %p454
        $region70: #{decoder_forward.5} parent=11 // pred_check_branch
          %613 = sbr.rel (%p611) target = $region72
        $region71: #{decoder_forward.5} parent=11 // pred_region
          %615 = vsyncadd [#allocation8], 0
          %s616 = sshll.u32 %s18, 4
          %s617 = int_to_ptr.hbm [resolvable:$true] %s616
          %s618 = sshll.u32 [#allocation9], 4
          %s619 = int_to_ptr.vmem [resolvable:$true] %s618
          %624 = dma.hbm_to_vmem [thread:$0]  %s617, 512, %s619, [#allocation8], 128, 128, 8
        $region72: #{decoder_forward.5} parent=11 // pred_fallthru
          _
        // Predicated region
        $region73: #{decoder_forward.5} parent=11 // pred_check
          %p625 = pneg %p475
        $region74: #{decoder_forward.5} parent=11 // pred_check_branch
          %627 = sbr.rel (%p625) target = $region76
        $region75: #{decoder_forward.5} parent=11 // pred_region
          _
        $region76: #{decoder_forward.5} parent=11 // pred_fallthru
          _
        // Predicated region
        $region77: #{decoder_forward.5} parent=11 // pred_check
          %p628 = pneg %p496
        $region78: #{decoder_forward.5} parent=11 // pred_check_branch
          %630 = sbr.rel (%p628) target = $region80
        $region79: #{decoder_forward.5} parent=11 // pred_region
          _
        $region80: #{decoder_forward.5} parent=11 // pred_fallthru
          _
        // Predicated region
        $region81: #{decoder_forward.5} parent=11 // pred_check
          %p631 = pneg %p517
        $region82: #{decoder_forward.5} parent=11 // pred_check_branch
          %633 = sbr.rel (%p631) target = $region84
        $region83: #{decoder_forward.5} parent=11 // pred_region
          _
        $region84: #{decoder_forward.5} parent=11 // pred_fallthru
          _
      $region12: #{decoder_forward.5} parent=5 // pred_fallthru
        _
      %p634 = scmp.lt.s32.totalorder %s35, 2
      // Predicated region
      $region85: #{decoder_forward.5} parent=5 // pred_check
        %p635 = pneg %p634
      $region86: #{decoder_forward.5} parent=5 // pred_check_branch
        %637 = sbr.rel (%p635) target = $region88
      $region87: #{decoder_forward.5} parent=5 // pred_region
        // Predicated region
        $region89: #{decoder_forward.5} parent=87 // pred_check
          %p638 = pneg %p55
        $region90: #{decoder_forward.5} parent=87 // pred_check_branch
          %640 = sbr.rel (%p638) target = $region92
        $region91: #{decoder_forward.5} parent=87 // pred_region
          %p641 = scmp.lt.s32.totalorder %s35, 1
          %s642 = scalar_select %p641, %s35, 1
          %s643 = smul.addr %s642, 8
          %s644 = scalar_lea.vmem %s0, %s643
        $region92: #{decoder_forward.5} parent=87 // pred_fallthru
          _
        // Predicated region
        $region93: #{decoder_forward.5} parent=87 // pred_check
          %p645 = pneg %p81
        $region94: #{decoder_forward.5} parent=87 // pred_check_branch
          %647 = sbr.rel (%p645) target = $region96
        $region95: #{decoder_forward.5} parent=87 // pred_region
          %s648 = sand.u32 %s71, 1
          %s649 = scalar_lea.sflag [#allocation3], %s648
          %s650 = sand.u32 %s71, 1
          %s651 = smul.addr %s650, 8
          %s652 = scalar_lea.vmem [#allocation2], %s651
          %654 = vsyncadd %s649, 0
          %s655 = smul.addr %s35, 8
          %s656 = scalar_lea.hbm %s1, %s655
          %s658 = sshll.u32 %s656, 4
          %s659 = int_to_ptr.hbm [resolvable:$true] %s658
          %s660 = sshll.u32 %s652, 4
          %s661 = int_to_ptr.vmem [resolvable:$true] %s660
          %663 = dma.hbm_to_vmem [thread:$0]  %s659, 128, %s661, %s649
        $region96: #{decoder_forward.5} parent=87 // pred_fallthru
          _
        // Predicated region
        $region97: #{decoder_forward.5} parent=87 // pred_check
          %p664 = pneg %p107
        $region98: #{decoder_forward.5} parent=87 // pred_check_branch
          %666 = sbr.rel (%p664) target = $region100
        $region99: #{decoder_forward.5} parent=87 // pred_region
          %s667 = sand.u32 %s35, 1
          %s668 = scalar_lea.sflag [#allocation5], %s667
          %s669 = sand.u32 %s97, 1
          %s670 = smul.addr %s669, 8
          %s671 = scalar_lea.vmem [#allocation4], %s670
          %673 = vsyncadd %s668, 0
          %s674 = smul.addr %s35, 8
          %s675 = scalar_lea.hbm %s2, %s674
          %s677 = sshll.u32 %s675, 4
          %s678 = int_to_ptr.hbm [resolvable:$true] %s677
          %s679 = sshll.u32 %s671, 4
          %s680 = int_to_ptr.vmem [resolvable:$true] %s679
          %682 = dma.hbm_to_vmem [thread:$0]  %s678, 128, %s680, %s668
        $region100: #{decoder_forward.5} parent=87 // pred_fallthru
          _
        // Predicated region
        $region101: #{decoder_forward.5} parent=87 // pred_check
          %p683 = pneg %p133
        $region102: #{decoder_forward.5} parent=87 // pred_check_branch
          %685 = sbr.rel (%p683) target = $region104
        $region103: #{decoder_forward.5} parent=87 // pred_region
          %s686 = sand.u32 %s35, 1
          %s687 = scalar_lea.sflag [#allocation5], %s686
          %s688 = sand.u32 %s123, 1
          %s689 = smul.addr %s688, 8
          %s690 = scalar_lea.vmem [#allocation6], %s689
          %692 = vsyncadd %s687, 0
          %s693 = smul.addr %s35, 8
          %s694 = scalar_lea.hbm %s3, %s693
          %s696 = sshll.u32 %s694, 4
          %s697 = int_to_ptr.hbm [resolvable:$true] %s696
          %s698 = sshll.u32 %s690, 4
          %s699 = int_to_ptr.vmem [resolvable:$true] %s698
          %701 = dma.hbm_to_vmem [thread:$0]  %s697, 128, %s699, %s687
        $region104: #{decoder_forward.5} parent=87 // pred_fallthru
          _
      $region88: #{decoder_forward.5} parent=5 // pred_fallthru
        _
      %p702 = scmp.le.s32.totalorder 1, %s35
      %p703 = scmp.lt.s32.totalorder %s35, 3
      %p704 = pnand %p702, %p703
      %p705 = pneg %p704
      // Predicated region
      $region105: #{decoder_forward.5} parent=5 // pred_check
        _
      $region106: #{decoder_forward.5} parent=5 // pred_check_branch
        %707 = sbr.rel (%p704) target = $region108
      $region107: #{decoder_forward.5} parent=5 // pred_region
        %s708 = ssub.s32 %s35, 1
        %s709 = sand.u32 %s74, 1
        %s710 = scalar_lea.sflag [#allocation3], %s709
        %s711 = sand.u32 %s74, 1
        %s712 = smul.addr %s711, 8
        %s713 = scalar_lea.vmem [#allocation2], %s712
        // Predicated region
        $region109: #{decoder_forward.5} parent=107 // pred_check
          %p714 = pneg %p87
        $region110: #{decoder_forward.5} parent=107 // pred_check_branch
          %716 = sbr.rel (%p714) target = $region112
        $region111: #{decoder_forward.5} parent=107 // pred_region
          %718 = dma.done %s710, 128
        $region112: #{decoder_forward.5} parent=107 // pred_fallthru
          _
        %s719 = sand.u32 %s40, 1
        %s720 = scalar_lea.sflag [#allocation5], %s719
        %s721 = sand.u32 %s100, 1
        %s722 = smul.addr %s721, 8
        %s723 = scalar_lea.vmem [#allocation4], %s722
        // Predicated region
        $region113: #{decoder_forward.5} parent=107 // pred_check
          %p724 = pneg %p113
        $region114: #{decoder_forward.5} parent=107 // pred_check_branch
          %726 = sbr.rel (%p724) target = $region116
        $region115: #{decoder_forward.5} parent=107 // pred_region
          %728 = dma.done %s720, 128
        $region116: #{decoder_forward.5} parent=107 // pred_fallthru
          _
        %s729 = sand.u32 %s40, 1
        %s730 = scalar_lea.sflag [#allocation5], %s729
        %s731 = sand.u32 %s126, 1
        %s732 = smul.addr %s731, 8
        %s733 = scalar_lea.vmem [#allocation6], %s732
        // Predicated region
        $region117: #{decoder_forward.5} parent=107 // pred_check
          %p734 = pneg %p139
        $region118: #{decoder_forward.5} parent=107 // pred_check_branch
          %736 = sbr.rel (%p734) target = $region120
        $region119: #{decoder_forward.5} parent=107 // pred_region
          %738 = dma.done %s730, 128
        $region120: #{decoder_forward.5} parent=107 // pred_fallthru
          _
        // Predicated region
        $region121: #{decoder_forward.5} parent=107 // pred_check
          %p739 = pneg %p370
        $region122: #{decoder_forward.5} parent=107 // pred_check_branch
          %741 = sbr.rel (%p739) target = $region124
        $region123: #{decoder_forward.5} parent=107 // pred_region
          %743 = dma.done [#allocation8], 512
        $region124: #{decoder_forward.5} parent=107 // pred_fallthru
          _
        // Predicated region
        $region125: #{decoder_forward.5} parent=107 // pred_check
          %p744 = pneg %p454
        $region126: #{decoder_forward.5} parent=107 // pred_check_branch
          %746 = sbr.rel (%p744) target = $region128
        $region127: #{decoder_forward.5} parent=107 // pred_region
          %748 = dma.done [#allocation8], 512
        $region128: #{decoder_forward.5} parent=107 // pred_fallthru
          _
        %p749 = scmp.lt.s32.totalorder %s40, 1
        %s750 = scalar_select %p749, %s40, 1
        %s751 = smul.addr %s750, 8
        %s752 = scalar_lea.vmem %s0, %s751
        %p753 = pneg %p61
        %p754 = pneg %p58
        %s755 = sand.u32 %s74, 1
        %s756 = scalar_lea.sflag [#allocation3], %s755
        %s757 = sand.u32 %s74, 1
        %s758 = smul.addr %s757, 8
        %s759 = scalar_lea.vmem [#allocation2], %s758
        %p760 = pneg %p87
        %p761 = pneg %p84
        %s762 = sand.u32 %s40, 1
        %s763 = scalar_lea.sflag [#allocation5], %s762
        %s764 = sand.u32 %s100, 1
        %s765 = smul.addr %s764, 8
        %s766 = scalar_lea.vmem [#allocation4], %s765
        %p767 = pneg %p113
        %p768 = pneg %p110
        %s769 = sand.u32 %s40, 1
        %s770 = scalar_lea.sflag [#allocation5], %s769
        %s771 = sand.u32 %s126, 1
        %s772 = smul.addr %s771, 8
        %s773 = scalar_lea.vmem [#allocation6], %s772
        %p774 = pneg %p139
        %p775 = pneg %p136
        %p776 = pneg %p160
        %p777 = pneg %p157
        %p778 = pneg %p181
        %p779 = pneg %p178
        %p780 = pneg %p202
        %p781 = pneg %p199
        %p782 = pneg %p223
        %p783 = pneg %p220
        %p784 = pneg %p244
        %p785 = pneg %p241
        %p786 = pneg %p265
        %p787 = pneg %p262
        %p788 = pneg %p286
        %p789 = pneg %p283
        %p790 = pneg %p307
        %p791 = pneg %p304
        %p792 = pneg %p328
        %p793 = pneg %p325
        %p794 = pneg %p349
        %p795 = pneg %p346
        %p796 = pneg %p370
        %p797 = pneg %p367
        %p798 = pneg %p391
        %p799 = pneg %p388
        %p800 = pneg %p412
        %p801 = pneg %p409
        %p802 = pneg %p433
        %p803 = pneg %p430
        %p804 = pneg %p454
        %p805 = pneg %p451
        %p806 = pneg %p475
        %p807 = pneg %p472
        %p808 = pneg %p496
        %p809 = pneg %p493
        %p810 = pneg %p517
        %p811 = pneg %p514
        %p812 = pneg %p543
        %p813 = pneg %p540
        %p814 = scmp.lt.s32.totalorder %s40, 1
        %s815 = scalar_select %p814, %s40, 1
        %s816 = smul.addr %s815, 8
        %s817 = scalar_lea.vmem %s22, %s816
        %p818 = scmp.lt.s32.totalorder %s40, 1
        %s819 = scalar_select %p818, %s40, 1
        %s820 = smul.addr %s819, 8
        %s821 = scalar_lea.vmem %s0, %s820
        %p822 = scmp.lt.s32.totalorder %s40, 1
        %s823 = scalar_select %p822, %s40, 1
        %s824 = smul.addr %s823, 8
        %s825 = scalar_lea.vmem %s22, %s824
        %v826 = vld [vmem:[%s821] sm:$0xff]
        %v827 = vld [vmem:[%s723] sm:$0xff]
        %v828 = vld [vmem:[%s4] sm:$0xff]
        %v829 = vld [vmem:[%s4 + $0x8] sm:$0xff]
        %v830 = vld [vmem:[%s4 + $0x10] sm:$0xff]
        %v831 = vld [vmem:[%s4 + $0x18] sm:$0xff]
        %v832 = vld [vmem:[%s5] sm:$0x1]
        %v834 = vperm.slane %v832, 0
        %vm836 = vcmask 261120
        %v838 = vsel %vm836, %v826, 0
        %840 = vmatpush.msra.mxu0 0.0
        %841 = vmatpush.msra.mxu0 0.0
        %842 = vmatpush.msra.mxu0 0.0
        %843 = vmatpush.msra.mxu0 0.0
        %844 = vmatpush.msra.mxu0 0.0
        %845 = vmatpush.msra.mxu0 0.0
        %846 = vmatpush.msra.mxu0 0.0
        %847 = vmatpush.msra.mxu0 0.0
        %848 = vmatpush.msra.mxu0 0.0
        %849 = vmatpush.msra.mxu0 0.0
        %850 = vmatpush.msra.mxu0 0.0
        %851 = vmatpush.msra.mxu0 0.0
        %852 = vmatpush.msra.mxu0 %v831
        %853 = vmatpush.msra.mxu0 %v830
        %854 = vmatpush.msra.mxu0 %v829
        %855 = vmatpush.msra.mxu0 %v828
        %856 = vmatmul.f32.gmra.mxu0 %v838
        %v857 = vpop.f32.mrf.mxu0
        %v858 = vadd.f32 %v834, %v857
        %859 = vdwg.mxu0
        %v860 = vld [vmem:[%s6] sm:$0xff]
        %v861 = vld [vmem:[%s6 + $0x8] sm:$0xff]
        %v862 = vld [vmem:[%s6 + $0x10] sm:$0xff]
        %v863 = vld [vmem:[%s6 + $0x18] sm:$0xff]
        %865 = vrot.lane.b32.xlu0 %v858, 96
        %v866 = vpop.permute.xlu0 %865
        %vm867 = vcmask 64512
        %v868 = vsel %vm867, %v858, 0
        %v870 = vsel %vm867, %v866, 0
        %872 = vmatpush.xpose.msra.mxu0 0.0
        %873 = vmatpush.xpose.msra.mxu0 0.0
        %874 = vmatpush.xpose.msra.mxu0 0.0
        %875 = vmatpush.xpose.msra.mxu0 0.0
        %876 = vmatpush.xpose.msra.mxu0 0.0
        %877 = vmatpush.xpose.msra.mxu0 0.0
        %878 = vmatpush.xpose.msra.mxu0 0.0
        %879 = vmatpush.xpose.msra.mxu0 0.0
        %880 = vmatpush.xpose.msra.mxu0 0.0
        %881 = vmatpush.xpose.msra.mxu0 0.0
        %882 = vmatpush.xpose.msra.mxu0 0.0
        %883 = vmatpush.xpose.msra.mxu0 0.0
        %884 = vmatpush.xpose.msra.mxu0 0.0
        %885 = vmatpush.xpose.msra.mxu0 0.0
        %886 = vmatpush.xpose.msra.mxu0 0.0
        %887 = vmatpush.xpose.msra.mxu0 %v870
        %888 = vmatmul.f32.gmra.mxu0 %v868
        %v889 = vpop.f32.mrf.mxu0
        %v890 = vadd.f32 0.0, %v889
        %891 = vdwg.mxu0
        %v892 = vmul.f32 %v890, 0.35355338
        %vm893 = vcmp.eq.f32.partialorder %v827, 0.0
        %v894 = vsel %vm893, -1e+09, %v892
        %v895 = vsel %vm867, %v894, -inf
        %896 = vmax.xlane.f32.xlu0 %v895
        %v897 = vpop.xlane.xlu0 %896
        %v898 = vsub.f32 %v894, %v897
        %v899 = vmul.f32 %v898, 1.442695
        %v900 = vpow.pop %v899
        %v901 = vsel %vm867, %v900, 0.0
        %902 = vadd.xlane.f32.xlu0 %v901
        %v903 = vpop.xlane.xlu0 %902
        %v904 = vrcp.pop %v903
        %v905 = vmul.f32 %v900, %v904
        %906 = vrot.lane.b32.xlu0 %v858, 64
        %v907 = vpop.permute.xlu0 %906
        %v910 = vsel %vm867, %v905, 0
        %912 = vmatpush.msra.mxu0 0.0
        %913 = vmatpush.msra.mxu0 0.0
        %914 = vmatpush.msra.mxu0 0.0
        %915 = vmatpush.msra.mxu0 0.0
        %916 = vmatpush.msra.mxu0 0.0
        %917 = vmatpush.msra.mxu0 0.0
        %918 = vmatpush.msra.mxu0 0.0
        %919 = vmatpush.msra.mxu0 0.0
        %920 = vmatpush.msra.mxu0 0.0
        %921 = vmatpush.msra.mxu0 0.0
        %922 = vmatpush.msra.mxu0 0.0
        %923 = vmatpush.msra.mxu0 0.0
        %924 = vmatpush.msra.mxu0 0.0
        %925 = vmatpush.msra.mxu0 0.0
        %926 = vmatpush.msra.mxu0 0.0
        %927 = vmatpush.msra.mxu0 %v907
        %928 = vmatmul.f32.gmra.mxu0 %v910
        %v929 = vpop.f32.mrf.mxu0
        %v930 = vadd.f32 0.0, %v929
        %931 = vdwg.mxu0
        %932 = vrot.lane.b32.xlu0 %v858, 120
        %v933 = vpop.permute.xlu0 %932
        %934 = vrot.lane.b32.xlu0 %v858, 88
        %v935 = vpop.permute.xlu0 %934
        %v936 = vsel %vm867, %v933, 0
        %v938 = vsel %vm867, %v935, 0
        %940 = vmatpush.xpose.msra.mxu0 0.0
        %941 = vmatpush.xpose.msra.mxu0 0.0
        %942 = vmatpush.xpose.msra.mxu0 0.0
        %943 = vmatpush.xpose.msra.mxu0 0.0
        %944 = vmatpush.xpose.msra.mxu0 0.0
        %945 = vmatpush.xpose.msra.mxu0 0.0
        %946 = vmatpush.xpose.msra.mxu0 0.0
        %947 = vmatpush.xpose.msra.mxu0 0.0
        %948 = vmatpush.xpose.msra.mxu0 0.0
        %949 = vmatpush.xpose.msra.mxu0 0.0
        %950 = vmatpush.xpose.msra.mxu0 0.0
        %951 = vmatpush.xpose.msra.mxu0 0.0
        %952 = vmatpush.xpose.msra.mxu0 0.0
        %953 = vmatpush.xpose.msra.mxu0 0.0
        %954 = vmatpush.xpose.msra.mxu0 0.0
        %955 = vmatpush.xpose.msra.mxu0 %v938
        %956 = vmatmul.f32.gmra.mxu0 %v936
        %v957 = vpop.f32.mrf.mxu0
        %v958 = vadd.f32 0.0, %v957
        %959 = vdwg.mxu0
        %v960 = vmul.f32 %v958, 0.35355338
        %v961 = vsel %vm893, -1e+09, %v960
        %v962 = vsel %vm867, %v961, -inf
        %963 = vmax.xlane.f32.xlu0 %v962
        %v964 = vpop.xlane.xlu0 %963
        %v965 = vsub.f32 %v961, %v964
        %v966 = vmul.f32 %v965, 1.442695
        %v967 = vpow.pop %v966
        %v968 = vsel %vm867, %v967, 0.0
        %969 = vadd.xlane.f32.xlu0 %v968
        %v970 = vpop.xlane.xlu0 %969
        %v971 = vrcp.pop %v970
        %v972 = vmul.f32 %v967, %v971
        %973 = vrot.lane.b32.xlu0 %v858, 56
        %v974 = vpop.permute.xlu0 %973
        %v977 = vsel %vm867, %v972, 0
        %979 = vmatpush.msra.mxu0 0.0
        %980 = vmatpush.msra.mxu0 0.0
        %981 = vmatpush.msra.mxu0 0.0
        %982 = vmatpush.msra.mxu0 0.0
        %983 = vmatpush.msra.mxu0 0.0
        %984 = vmatpush.msra.mxu0 0.0
        %985 = vmatpush.msra.mxu0 0.0
        %986 = vmatpush.msra.mxu0 0.0
        %987 = vmatpush.msra.mxu0 0.0
        %988 = vmatpush.msra.mxu0 0.0
        %989 = vmatpush.msra.mxu0 0.0
        %990 = vmatpush.msra.mxu0 0.0
        %991 = vmatpush.msra.mxu0 0.0
        %992 = vmatpush.msra.mxu0 0.0
        %993 = vmatpush.msra.mxu0 0.0
        %994 = vmatpush.msra.mxu0 %v974
        %995 = vmatmul.f32.gmra.mxu0 %v977
        %v996 = vpop.f32.mrf.mxu0
        %v997 = vadd.f32 0.0, %v996
        %998 = vdwg.mxu0
        %v1000 = vsel %vm867, %v997, 0
        %1002 = vmatpush.msra.mxu0 0.0
        %1003 = vmatpush.msra.mxu0 0.0
        %1004 = vmatpush.msra.mxu0 0.0
        %1005 = vmatpush.msra.mxu0 0.0
        %1006 = vmatpush.msra.mxu0 0.0
        %1007 = vmatpush.msra.mxu0 0.0
        %1008 = vmatpush.msra.mxu0 0.0
        %1009 = vmatpush.msra.mxu0 0.0
        %1010 = vmatpush.msra.mxu0 0.0
        %1011 = vmatpush.msra.mxu0 0.0
        %1012 = vmatpush.msra.mxu0 0.0
        %1013 = vmatpush.msra.mxu0 0.0
        %1014 = vmatpush.msra.mxu0 0.0
        %1015 = vmatpush.msra.mxu0 0.0
        %1016 = vmatpush.msra.mxu0 0.0
        %1017 = vmatpush.msra.mxu0 %v861
        %1018 = vmatmul.f32.gmra.mxu0 %v1000
        %v1019 = vpop.f32.mrf.mxu0
        %v1020 = vadd.f32 0.0, %v1019
        %1021 = vdwg.mxu0
        %v1023 = vsel %vm867, %v930, 0
        %1025 = vmatpush.msra.mxu0 0.0
        %1026 = vmatpush.msra.mxu0 0.0
        %1027 = vmatpush.msra.mxu0 0.0
        %1028 = vmatpush.msra.mxu0 0.0
        %1029 = vmatpush.msra.mxu0 0.0
        %1030 = vmatpush.msra.mxu0 0.0
        %1031 = vmatpush.msra.mxu0 0.0
        %1032 = vmatpush.msra.mxu0 0.0
        %1033 = vmatpush.msra.mxu0 0.0
        %1034 = vmatpush.msra.mxu0 0.0
        %1035 = vmatpush.msra.mxu0 0.0
        %1036 = vmatpush.msra.mxu0 0.0
        %1037 = vmatpush.msra.mxu0 0.0
        %1038 = vmatpush.msra.mxu0 0.0
        %1039 = vmatpush.msra.mxu0 0.0
        %1040 = vmatpush.msra.mxu0 %v860
        %1041 = vmatmul.f32.gmra.mxu0 %v1023
        %v1042 = vpop.f32.mrf.mxu0
        %v1043 = vadd.f32 %v1020, %v1042
        %1044 = vdwg.mxu0
        %1045 = vrot.lane.b32.xlu0 %v858, 112
        %v1046 = vpop.permute.xlu0 %1045
        %1047 = vrot.lane.b32.xlu0 %v858, 80
        %v1048 = vpop.permute.xlu0 %1047
        %v1049 = vsel %vm867, %v1046, 0
        %v1051 = vsel %vm867, %v1048, 0
        %1053 = vmatpush.xpose.msra.mxu0 0.0
        %1054 = vmatpush.xpose.msra.mxu0 0.0
        %1055 = vmatpush.xpose.msra.mxu0 0.0
        %1056 = vmatpush.xpose.msra.mxu0 0.0
        %1057 = vmatpush.xpose.msra.mxu0 0.0
        %1058 = vmatpush.xpose.msra.mxu0 0.0
        %1059 = vmatpush.xpose.msra.mxu0 0.0
        %1060 = vmatpush.xpose.msra.mxu0 0.0
        %1061 = vmatpush.xpose.msra.mxu0 0.0
        %1062 = vmatpush.xpose.msra.mxu0 0.0
        %1063 = vmatpush.xpose.msra.mxu0 0.0
        %1064 = vmatpush.xpose.msra.mxu0 0.0
        %1065 = vmatpush.xpose.msra.mxu0 0.0
        %1066 = vmatpush.xpose.msra.mxu0 0.0
        %1067 = vmatpush.xpose.msra.mxu0 0.0
        %1068 = vmatpush.xpose.msra.mxu0 %v1051
        %1069 = vmatmul.f32.gmra.mxu0 %v1049
        %v1070 = vpop.f32.mrf.mxu0
        %v1071 = vadd.f32 0.0, %v1070
        %1072 = vdwg.mxu0
        %v1073 = vmul.f32 %v1071, 0.35355338
        %v1074 = vsel %vm893, -1e+09, %v1073
        %v1075 = vsel %vm867, %v1074, -inf
        %1076 = vmax.xlane.f32.xlu0 %v1075
        %v1077 = vpop.xlane.xlu0 %1076
        %v1078 = vsub.f32 %v1074, %v1077
        %v1079 = vmul.f32 %v1078, 1.442695
        %v1080 = vpow.pop %v1079
        %v1081 = vsel %vm867, %v1080, 0.0
        %1082 = vadd.xlane.f32.xlu0 %v1081
        %v1083 = vpop.xlane.xlu0 %1082
        %v1084 = vrcp.pop %v1083
        %v1085 = vmul.f32 %v1080, %v1084
        %1086 = vrot.lane.b32.xlu0 %v858, 48
        %v1087 = vpop.permute.xlu0 %1086
        %v1090 = vsel %vm867, %v1085, 0
        %1092 = vmatpush.msra.mxu0 0.0
        %1093 = vmatpush.msra.mxu0 0.0
        %1094 = vmatpush.msra.mxu0 0.0
        %1095 = vmatpush.msra.mxu0 0.0
        %1096 = vmatpush.msra.mxu0 0.0
        %1097 = vmatpush.msra.mxu0 0.0
        %1098 = vmatpush.msra.mxu0 0.0
        %1099 = vmatpush.msra.mxu0 0.0
        %1100 = vmatpush.msra.mxu0 0.0
        %1101 = vmatpush.msra.mxu0 0.0
        %1102 = vmatpush.msra.mxu0 0.0
        %1103 = vmatpush.msra.mxu0 0.0
        %1104 = vmatpush.msra.mxu0 0.0
        %1105 = vmatpush.msra.mxu0 0.0
        %1106 = vmatpush.msra.mxu0 0.0
        %1107 = vmatpush.msra.mxu0 %v1087
        %1108 = vmatmul.f32.gmra.mxu0 %v1090
        %v1109 = vpop.f32.mrf.mxu0
        %v1110 = vadd.f32 0.0, %v1109
        %1111 = vdwg.mxu0
        %v1113 = vsel %vm867, %v1110, 0
        %1115 = vmatpush.msra.mxu0 0.0
        %1116 = vmatpush.msra.mxu0 0.0
        %1117 = vmatpush.msra.mxu0 0.0
        %1118 = vmatpush.msra.mxu0 0.0
        %1119 = vmatpush.msra.mxu0 0.0
        %1120 = vmatpush.msra.mxu0 0.0
        %1121 = vmatpush.msra.mxu0 0.0
        %1122 = vmatpush.msra.mxu0 0.0
        %1123 = vmatpush.msra.mxu0 0.0
        %1124 = vmatpush.msra.mxu0 0.0
        %1125 = vmatpush.msra.mxu0 0.0
        %1126 = vmatpush.msra.mxu0 0.0
        %1127 = vmatpush.msra.mxu0 0.0
        %1128 = vmatpush.msra.mxu0 0.0
        %1129 = vmatpush.msra.mxu0 0.0
        %1130 = vmatpush.msra.mxu0 %v862
        %1131 = vmatmul.f32.gmra.mxu0 %v1113
        %v1132 = vpop.f32.mrf.mxu0
        %v1133 = vadd.f32 0.0, %v1132
        %1134 = vdwg.mxu0
        %v1135 = vadd.f32 %v1043, %v1133
        %1136 = vrot.lane.b32.xlu0 %v858, 104
        %v1137 = vpop.permute.xlu0 %1136
        %1138 = vrot.lane.b32.xlu0 %v858, 72
        %v1139 = vpop.permute.xlu0 %1138
        %v1140 = vsel %vm867, %v1137, 0
        %v1142 = vsel %vm867, %v1139, 0
        %1144 = vmatpush.xpose.msra.mxu0 0.0
        %1145 = vmatpush.xpose.msra.mxu0 0.0
        %1146 = vmatpush.xpose.msra.mxu0 0.0
        %1147 = vmatpush.xpose.msra.mxu0 0.0
        %1148 = vmatpush.xpose.msra.mxu0 0.0
        %1149 = vmatpush.xpose.msra.mxu0 0.0
        %1150 = vmatpush.xpose.msra.mxu0 0.0
        %1151 = vmatpush.xpose.msra.mxu0 0.0
        %1152 = vmatpush.xpose.msra.mxu0 0.0
        %1153 = vmatpush.xpose.msra.mxu0 0.0
        %1154 = vmatpush.xpose.msra.mxu0 0.0
        %1155 = vmatpush.xpose.msra.mxu0 0.0
        %1156 = vmatpush.xpose.msra.mxu0 0.0
        %1157 = vmatpush.xpose.msra.mxu0 0.0
        %1158 = vmatpush.xpose.msra.mxu0 0.0
        %1159 = vmatpush.xpose.msra.mxu0 %v1142
        %1160 = vmatmul.f32.gmra.mxu0 %v1140
        %v1161 = vpop.f32.mrf.mxu0
        %v1162 = vadd.f32 0.0, %v1161
        %1163 = vdwg.mxu0
        %v1164 = vmul.f32 %v1162, 0.35355338
        %v1165 = vsel %vm893, -1e+09, %v1164
        %v1166 = vsel %vm867, %v1165, -inf
        %1167 = vmax.xlane.f32.xlu0 %v1166
        %v1168 = vpop.xlane.xlu0 %1167
        %v1169 = vsub.f32 %v1165, %v1168
        %v1170 = vmul.f32 %v1169, 1.442695
        %v1171 = vpow.pop %v1170
        %v1172 = vsel %vm867, %v1171, 0.0
        %1173 = vadd.xlane.f32.xlu0 %v1172
        %v1174 = vpop.xlane.xlu0 %1173
        %v1175 = vrcp.pop %v1174
        %v1176 = vmul.f32 %v1171, %v1175
        %1177 = vrot.lane.b32.xlu0 %v858, 40
        %v1178 = vpop.permute.xlu0 %1177
        %v1181 = vsel %vm867, %v1176, 0
        %1183 = vmatpush.msra.mxu0 0.0
        %1184 = vmatpush.msra.mxu0 0.0
        %1185 = vmatpush.msra.mxu0 0.0
        %1186 = vmatpush.msra.mxu0 0.0
        %1187 = vmatpush.msra.mxu0 0.0
        %1188 = vmatpush.msra.mxu0 0.0
        %1189 = vmatpush.msra.mxu0 0.0
        %1190 = vmatpush.msra.mxu0 0.0
        %1191 = vmatpush.msra.mxu0 0.0
        %1192 = vmatpush.msra.mxu0 0.0
        %1193 = vmatpush.msra.mxu0 0.0
        %1194 = vmatpush.msra.mxu0 0.0
        %1195 = vmatpush.msra.mxu0 0.0
        %1196 = vmatpush.msra.mxu0 0.0
        %1197 = vmatpush.msra.mxu0 0.0
        %1198 = vmatpush.msra.mxu0 %v1178
        %1199 = vmatmul.f32.gmra.mxu0 %v1181
        %v1200 = vpop.f32.mrf.mxu0
        %v1201 = vadd.f32 0.0, %v1200
        %1202 = vdwg.mxu0
        %v1204 = vsel %vm867, %v1201, 0
        %1206 = vmatpush.msra.mxu0 0.0
        %1207 = vmatpush.msra.mxu0 0.0
        %1208 = vmatpush.msra.mxu0 0.0
        %1209 = vmatpush.msra.mxu0 0.0
        %1210 = vmatpush.msra.mxu0 0.0
        %1211 = vmatpush.msra.mxu0 0.0
        %1212 = vmatpush.msra.mxu0 0.0
        %1213 = vmatpush.msra.mxu0 0.0
        %1214 = vmatpush.msra.mxu0 0.0
        %1215 = vmatpush.msra.mxu0 0.0
        %1216 = vmatpush.msra.mxu0 0.0
        %1217 = vmatpush.msra.mxu0 0.0
        %1218 = vmatpush.msra.mxu0 0.0
        %1219 = vmatpush.msra.mxu0 0.0
        %1220 = vmatpush.msra.mxu0 0.0
        %1221 = vmatpush.msra.mxu0 %v863
        %1222 = vmatmul.f32.gmra.mxu0 %v1204
        %v1223 = vpop.f32.mrf.mxu0
        %v1224 = vadd.f32 0.0, %v1223
        %1225 = vdwg.mxu0
        %v1226 = vadd.f32 %v1135, %v1224
        %v1227 = vld [vmem:[%s7] sm:$0x1]
        %v1229 = vperm.slane %v1227, 0
        %v1231 = vadd.f32 %v1226, %v1229
        %v1232 = vadd.f32 %v1231, %v826
        %v1233 = vsel %vm836, %v1232, 0.0
        %1234 = vadd.xlane.f32.xlu0 %v1233
        %v1235 = vpop.xlane.xlu0 %1234
        %v1236 = vrcp.pop 32.0
        %v1237 = vmul.f32 32.0, %v1236
        %v1238 = vsub.f32 1.0, %v1237
        %v1239 = vmul.f32 %v1236, %v1238
        %v1240 = vadd.f32 %v1236, %v1239
        %vm1241 = vweird.f32 %v1236
        %v1242 = vsel %vm1241, %v1236, %v1240
        %v1243 = vmul.f32 %v1235, %v1242
        %v1244 = vsub.f32 %v1232, %v1243
        %v1245 = vmul.f32 %v1244, %v1244
        %v1246 = vsel %vm836, %v1245, 0.0
        %1247 = vadd.xlane.f32.xlu0 %v1246
        %v1248 = vpop.xlane.xlu0 %1247
        %v1249 = vmul.f32 %v1248, %v1242
        %v1250 = vadd.f32 %v1249, 1e-05
        %v1251 = vrsqrt.pop %v1250
        %v1252 = vmul.f32 %v1251, %v1250
        %v1253 = vmul.f32 %v1252, %v1251
        %v1254 = vmul.f32 0.5, %v1253
        %v1255 = vsub.f32 1.5, %v1254
        %v1256 = vmul.f32 %v1251, %v1255
        %vm1257 = vweird.f32 %v1250
        %vm1258 = vweird.f32 %v1251
        %vm1259 = vmor %vm1257, %vm1258
        %v1260 = vsel %vm1259, %v1251, %v1256
        %v1261 = vmul.f32 %v1244, %v1260
        %v1262 = vld [vmem:[%s8] sm:$0x1]
        %v1264 = vperm.slane %v1262, 0
        %v1266 = vmul.f32 %v1261, %v1264
        %v1267 = vld [vmem:[%s9] sm:$0x1]
        %v1269 = vperm.slane %v1267, 0
        %v1271 = vadd.f32 %v1266, %v1269
        %v1272 = vld [vmem:[%s713] sm:$0xff]
        %v1273 = vld [vmem:[%s733] sm:$0xff]
        %v1274 = vld [vmem:[%s10] sm:$0xff]
        %v1275 = vld [vmem:[%s10 + $0x8] sm:$0xff]
        %v1276 = vld [vmem:[%s10 + $0x10] sm:$0xff]
        %v1277 = vld [vmem:[%s10 + $0x18] sm:$0xff]
        %v1278 = vld [vmem:[%s11] sm:$0x1]
        %v1280 = vperm.slane %v1278, 0
        %v1283 = vsel %vm836, %v1271, 0
        %1285 = vmatpush.msra.mxu0 0.0
        %1286 = vmatpush.msra.mxu0 0.0
        %1287 = vmatpush.msra.mxu0 0.0
        %1288 = vmatpush.msra.mxu0 0.0
        %1289 = vmatpush.msra.mxu0 0.0
        %1290 = vmatpush.msra.mxu0 0.0
        %1291 = vmatpush.msra.mxu0 0.0
        %1292 = vmatpush.msra.mxu0 0.0
        %1293 = vmatpush.msra.mxu0 0.0
        %1294 = vmatpush.msra.mxu0 0.0
        %1295 = vmatpush.msra.mxu0 0.0
        %1296 = vmatpush.msra.mxu0 0.0
        %1297 = vmatpush.msra.mxu0 %v1277
        %1298 = vmatpush.msra.mxu0 %v1276
        %1299 = vmatpush.msra.mxu0 %v1275
        %1300 = vmatpush.msra.mxu0 %v1274
        %1301 = vmatmul.f32.gmra.mxu0 %v1283
        %v1302 = vpop.f32.mrf.mxu0
        %v1303 = vadd.f32 %v1280, %v1302
        %1304 = vdwg.mxu0
        %v1305 = vld [vmem:[%s12] sm:$0xff]
        %v1306 = vld [vmem:[%s12 + $0x8] sm:$0xff]
        %v1307 = vld [vmem:[%s12 + $0x10] sm:$0xff]
        %v1308 = vld [vmem:[%s12 + $0x18] sm:$0xff]
        %v1309 = vld [vmem:[%s13] sm:$0x1]
        %v1311 = vperm.slane %v1309, 0
        %v1314 = vsel %vm836, %v1272, 0
        %1316 = vmatpush.msra.mxu0 0.0
        %1317 = vmatpush.msra.mxu0 0.0
        %1318 = vmatpush.msra.mxu0 0.0
        %1319 = vmatpush.msra.mxu0 0.0
        %1320 = vmatpush.msra.mxu0 0.0
        %1321 = vmatpush.msra.mxu0 0.0
        %1322 = vmatpush.msra.mxu0 0.0
        %1323 = vmatpush.msra.mxu0 0.0
        %1324 = vmatpush.msra.mxu0 0.0
        %1325 = vmatpush.msra.mxu0 0.0
        %1326 = vmatpush.msra.mxu0 0.0
        %1327 = vmatpush.msra.mxu0 0.0
        %1328 = vmatpush.msra.mxu0 %v1308
        %1329 = vmatpush.msra.mxu0 %v1307
        %1330 = vmatpush.msra.mxu0 %v1306
        %1331 = vmatpush.msra.mxu0 %v1305
        %1332 = vmatmul.f32.gmra.mxu0 %v1314
        %v1333 = vpop.f32.mrf.mxu0
        %v1334 = vadd.f32 %v1311, %v1333
        %1335 = vdwg.mxu0
        %v1336 = vld [vmem:[#allocation7] sm:$0xff]
        %v1337 = vld [vmem:[#allocation7 + $0x8] sm:$0xff]
        %v1338 = vld [vmem:[#allocation7 + $0x10] sm:$0xff]
        %v1339 = vld [vmem:[#allocation7 + $0x18] sm:$0xff]
        %v1341 = vsel %vm867, %v1303, 0
        %v1344 = vsel %vm867, %v1334, 0
        %1346 = vmatpush.xpose.msra.mxu0 0.0
        %1347 = vmatpush.xpose.msra.mxu0 0.0
        %1348 = vmatpush.xpose.msra.mxu0 0.0
        %1349 = vmatpush.xpose.msra.mxu0 0.0
        %1350 = vmatpush.xpose.msra.mxu0 0.0
        %1351 = vmatpush.xpose.msra.mxu0 0.0
        %1352 = vmatpush.xpose.msra.mxu0 0.0
        %1353 = vmatpush.xpose.msra.mxu0 0.0
        %1354 = vmatpush.xpose.msra.mxu0 0.0
        %1355 = vmatpush.xpose.msra.mxu0 0.0
        %1356 = vmatpush.xpose.msra.mxu0 0.0
        %1357 = vmatpush.xpose.msra.mxu0 0.0
        %1358 = vmatpush.xpose.msra.mxu0 0.0
        %1359 = vmatpush.xpose.msra.mxu0 0.0
        %1360 = vmatpush.xpose.msra.mxu0 0.0
        %1361 = vmatpush.xpose.msra.mxu0 %v1344
        %1362 = vmatmul.f32.gmra.mxu0 %v1341
        %v1363 = vpop.f32.mrf.mxu0
        %v1364 = vadd.f32 0.0, %v1363
        %1365 = vdwg.mxu0
        %v1366 = vmul.f32 %v1364, 0.35355338
        %vm1367 = vcmp.eq.f32.partialorder %v1273, 0.0
        %v1368 = vsel %vm1367, -1e+09, %v1366
        %v1369 = vsel %vm867, %v1368, -inf
        %1370 = vmax.xlane.f32.xlu0 %v1369
        %v1371 = vpop.xlane.xlu0 %1370
        %v1372 = vsub.f32 %v1368, %v1371
        %v1373 = vmul.f32 %v1372, 1.442695
        %v1374 = vpow.pop %v1373
        %v1375 = vsel %vm867, %v1374, 0.0
        %1376 = vadd.xlane.f32.xlu0 %v1375
        %v1377 = vpop.xlane.xlu0 %1376
        %v1378 = vrcp.pop %v1377
        %v1379 = vmul.f32 %v1374, %v1378
        %1380 = vrot.lane.b32.xlu0 %v1334, 96
        %v1381 = vpop.permute.xlu0 %1380
        %v1384 = vsel %vm867, %v1379, 0
        %1386 = vmatpush.msra.mxu0 0.0
        %1387 = vmatpush.msra.mxu0 0.0
        %1388 = vmatpush.msra.mxu0 0.0
        %1389 = vmatpush.msra.mxu0 0.0
        %1390 = vmatpush.msra.mxu0 0.0
        %1391 = vmatpush.msra.mxu0 0.0
        %1392 = vmatpush.msra.mxu0 0.0
        %1393 = vmatpush.msra.mxu0 0.0
        %1394 = vmatpush.msra.mxu0 0.0
        %1395 = vmatpush.msra.mxu0 0.0
        %1396 = vmatpush.msra.mxu0 0.0
        %1397 = vmatpush.msra.mxu0 0.0
        %1398 = vmatpush.msra.mxu0 0.0
        %1399 = vmatpush.msra.mxu0 0.0
        %1400 = vmatpush.msra.mxu0 0.0
        %1401 = vmatpush.msra.mxu0 %v1381
        %1402 = vmatmul.f32.gmra.mxu0 %v1384
        %v1403 = vpop.f32.mrf.mxu0
        %v1404 = vadd.f32 0.0, %v1403
        %1405 = vdwg.mxu0
        %1406 = vrot.lane.b32.xlu0 %v1303, 120
        %v1407 = vpop.permute.xlu0 %1406
        %1408 = vrot.lane.b32.xlu0 %v1334, 120
        %v1409 = vpop.permute.xlu0 %1408
        %v1410 = vsel %vm867, %v1407, 0
        %v1412 = vsel %vm867, %v1409, 0
        %1414 = vmatpush.xpose.msra.mxu0 0.0
        %1415 = vmatpush.xpose.msra.mxu0 0.0
        %1416 = vmatpush.xpose.msra.mxu0 0.0
        %1417 = vmatpush.xpose.msra.mxu0 0.0
        %1418 = vmatpush.xpose.msra.mxu0 0.0
        %1419 = vmatpush.xpose.msra.mxu0 0.0
        %1420 = vmatpush.xpose.msra.mxu0 0.0
        %1421 = vmatpush.xpose.msra.mxu0 0.0
        %1422 = vmatpush.xpose.msra.mxu0 0.0
        %1423 = vmatpush.xpose.msra.mxu0 0.0
        %1424 = vmatpush.xpose.msra.mxu0 0.0
        %1425 = vmatpush.xpose.msra.mxu0 0.0
        %1426 = vmatpush.xpose.msra.mxu0 0.0
        %1427 = vmatpush.xpose.msra.mxu0 0.0
        %1428 = vmatpush.xpose.msra.mxu0 0.0
        %1429 = vmatpush.xpose.msra.mxu0 %v1412
        %1430 = vmatmul.f32.gmra.mxu0 %v1410
        %v1431 = vpop.f32.mrf.mxu0
        %v1432 = vadd.f32 0.0, %v1431
        %1433 = vdwg.mxu0
        %v1434 = vmul.f32 %v1432, 0.35355338
        %v1435 = vsel %vm1367, -1e+09, %v1434
        %v1436 = vsel %vm867, %v1435, -inf
        %1437 = vmax.xlane.f32.xlu0 %v1436
        %v1438 = vpop.xlane.xlu0 %1437
        %v1439 = vsub.f32 %v1435, %v1438
        %v1440 = vmul.f32 %v1439, 1.442695
        %v1441 = vpow.pop %v1440
        %v1442 = vsel %vm867, %v1441, 0.0
        %1443 = vadd.xlane.f32.xlu0 %v1442
        %v1444 = vpop.xlane.xlu0 %1443
        %v1445 = vrcp.pop %v1444
        %v1446 = vmul.f32 %v1441, %v1445
        %1447 = vrot.lane.b32.xlu0 %v1334, 88
        %v1448 = vpop.permute.xlu0 %1447
        %v1451 = vsel %vm867, %v1446, 0
        %1453 = vmatpush.msra.mxu0 0.0
        %1454 = vmatpush.msra.mxu0 0.0
        %1455 = vmatpush.msra.mxu0 0.0
        %1456 = vmatpush.msra.mxu0 0.0
        %1457 = vmatpush.msra.mxu0 0.0
        %1458 = vmatpush.msra.mxu0 0.0
        %1459 = vmatpush.msra.mxu0 0.0
        %1460 = vmatpush.msra.mxu0 0.0
        %1461 = vmatpush.msra.mxu0 0.0
        %1462 = vmatpush.msra.mxu0 0.0
        %1463 = vmatpush.msra.mxu0 0.0
        %1464 = vmatpush.msra.mxu0 0.0
        %1465 = vmatpush.msra.mxu0 0.0
        %1466 = vmatpush.msra.mxu0 0.0
        %1467 = vmatpush.msra.mxu0 0.0
        %1468 = vmatpush.msra.mxu0 %v1448
        %1469 = vmatmul.f32.gmra.mxu0 %v1451
        %v1470 = vpop.f32.mrf.mxu0
        %v1471 = vadd.f32 0.0, %v1470
        %1472 = vdwg.mxu0
        %v1474 = vsel %vm867, %v1471, 0
        %1476 = vmatpush.msra.mxu0 0.0
        %1477 = vmatpush.msra.mxu0 0.0
        %1478 = vmatpush.msra.mxu0 0.0
        %1479 = vmatpush.msra.mxu0 0.0
        %1480 = vmatpush.msra.mxu0 0.0
        %1481 = vmatpush.msra.mxu0 0.0
        %1482 = vmatpush.msra.mxu0 0.0
        %1483 = vmatpush.msra.mxu0 0.0
        %1484 = vmatpush.msra.mxu0 0.0
        %1485 = vmatpush.msra.mxu0 0.0
        %1486 = vmatpush.msra.mxu0 0.0
        %1487 = vmatpush.msra.mxu0 0.0
        %1488 = vmatpush.msra.mxu0 0.0
        %1489 = vmatpush.msra.mxu0 0.0
        %1490 = vmatpush.msra.mxu0 0.0
        %1491 = vmatpush.msra.mxu0 %v1337
        %1492 = vmatmul.f32.gmra.mxu0 %v1474
        %v1493 = vpop.f32.mrf.mxu0
        %v1494 = vadd.f32 0.0, %v1493
        %1495 = vdwg.mxu0
        %v1497 = vsel %vm867, %v1404, 0
        %1499 = vmatpush.msra.mxu0 0.0
        %1500 = vmatpush.msra.mxu0 0.0
        %1501 = vmatpush.msra.mxu0 0.0
        %1502 = vmatpush.msra.mxu0 0.0
        %1503 = vmatpush.msra.mxu0 0.0
        %1504 = vmatpush.msra.mxu0 0.0
        %1505 = vmatpush.msra.mxu0 0.0
        %1506 = vmatpush.msra.mxu0 0.0
        %1507 = vmatpush.msra.mxu0 0.0
        %1508 = vmatpush.msra.mxu0 0.0
        %1509 = vmatpush.msra.mxu0 0.0
        %1510 = vmatpush.msra.mxu0 0.0
        %1511 = vmatpush.msra.mxu0 0.0
        %1512 = vmatpush.msra.mxu0 0.0
        %1513 = vmatpush.msra.mxu0 0.0
        %1514 = vmatpush.msra.mxu0 %v1336
        %1515 = vmatmul.f32.gmra.mxu0 %v1497
        %v1516 = vpop.f32.mrf.mxu0
        %v1517 = vadd.f32 %v1494, %v1516
        %1518 = vdwg.mxu0
        %1519 = vrot.lane.b32.xlu0 %v1303, 112
        %v1520 = vpop.permute.xlu0 %1519
        %1521 = vrot.lane.b32.xlu0 %v1334, 112
        %v1522 = vpop.permute.xlu0 %1521
        %v1523 = vsel %vm867, %v1520, 0
        %v1525 = vsel %vm867, %v1522, 0
        %1527 = vmatpush.xpose.msra.mxu0 0.0
        %1528 = vmatpush.xpose.msra.mxu0 0.0
        %1529 = vmatpush.xpose.msra.mxu0 0.0
        %1530 = vmatpush.xpose.msra.mxu0 0.0
        %1531 = vmatpush.xpose.msra.mxu0 0.0
        %1532 = vmatpush.xpose.msra.mxu0 0.0
        %1533 = vmatpush.xpose.msra.mxu0 0.0
        %1534 = vmatpush.xpose.msra.mxu0 0.0
        %1535 = vmatpush.xpose.msra.mxu0 0.0
        %1536 = vmatpush.xpose.msra.mxu0 0.0
        %1537 = vmatpush.xpose.msra.mxu0 0.0
        %1538 = vmatpush.xpose.msra.mxu0 0.0
        %1539 = vmatpush.xpose.msra.mxu0 0.0
        %1540 = vmatpush.xpose.msra.mxu0 0.0
        %1541 = vmatpush.xpose.msra.mxu0 0.0
        %1542 = vmatpush.xpose.msra.mxu0 %v1525
        %1543 = vmatmul.f32.gmra.mxu0 %v1523
        %v1544 = vpop.f32.mrf.mxu0
        %v1545 = vadd.f32 0.0, %v1544
        %1546 = vdwg.mxu0
        %v1547 = vmul.f32 %v1545, 0.35355338
        %v1548 = vsel %vm1367, -1e+09, %v1547
        %v1549 = vsel %vm867, %v1548, -inf
        %1550 = vmax.xlane.f32.xlu0 %v1549
        %v1551 = vpop.xlane.xlu0 %1550
        %v1552 = vsub.f32 %v1548, %v1551
        %v1553 = vmul.f32 %v1552, 1.442695
        %v1554 = vpow.pop %v1553
        %v1555 = vsel %vm867, %v1554, 0.0
        %1556 = vadd.xlane.f32.xlu0 %v1555
        %v1557 = vpop.xlane.xlu0 %1556
        %v1558 = vrcp.pop %v1557
        %v1559 = vmul.f32 %v1554, %v1558
        %1560 = vrot.lane.b32.xlu0 %v1334, 80
        %v1561 = vpop.permute.xlu0 %1560
        %v1564 = vsel %vm867, %v1559, 0
        %1566 = vmatpush.msra.mxu0 0.0
        %1567 = vmatpush.msra.mxu0 0.0
        %1568 = vmatpush.msra.mxu0 0.0
        %1569 = vmatpush.msra.mxu0 0.0
        %1570 = vmatpush.msra.mxu0 0.0
        %1571 = vmatpush.msra.mxu0 0.0
        %1572 = vmatpush.msra.mxu0 0.0
        %1573 = vmatpush.msra.mxu0 0.0
        %1574 = vmatpush.msra.mxu0 0.0
        %1575 = vmatpush.msra.mxu0 0.0
        %1576 = vmatpush.msra.mxu0 0.0
        %1577 = vmatpush.msra.mxu0 0.0
        %1578 = vmatpush.msra.mxu0 0.0
        %1579 = vmatpush.msra.mxu0 0.0
        %1580 = vmatpush.msra.mxu0 0.0
        %1581 = vmatpush.msra.mxu0 %v1561
        %1582 = vmatmul.f32.gmra.mxu0 %v1564
        %v1583 = vpop.f32.mrf.mxu0
        %v1584 = vadd.f32 0.0, %v1583
        %1585 = vdwg.mxu0
        %v1587 = vsel %vm867, %v1584, 0
        %1589 = vmatpush.msra.mxu0 0.0
        %1590 = vmatpush.msra.mxu0 0.0
        %1591 = vmatpush.msra.mxu0 0.0
        %1592 = vmatpush.msra.mxu0 0.0
        %1593 = vmatpush.msra.mxu0 0.0
        %1594 = vmatpush.msra.mxu0 0.0
        %1595 = vmatpush.msra.mxu0 0.0
        %1596 = vmatpush.msra.mxu0 0.0
        %1597 = vmatpush.msra.mxu0 0.0
        %1598 = vmatpush.msra.mxu0 0.0
        %1599 = vmatpush.msra.mxu0 0.0
        %1600 = vmatpush.msra.mxu0 0.0
        %1601 = vmatpush.msra.mxu0 0.0
        %1602 = vmatpush.msra.mxu0 0.0
        %1603 = vmatpush.msra.mxu0 0.0
        %1604 = vmatpush.msra.mxu0 %v1338
        %1605 = vmatmul.f32.gmra.mxu0 %v1587
        %v1606 = vpop.f32.mrf.mxu0
        %v1607 = vadd.f32 0.0, %v1606
        %1608 = vdwg.mxu0
        %v1609 = vadd.f32 %v1517, %v1607
        %1610 = vrot.lane.b32.xlu0 %v1303, 104
        %v1611 = vpop.permute.xlu0 %1610
        %1612 = vrot.lane.b32.xlu0 %v1334, 104
        %v1613 = vpop.permute.xlu0 %1612
        %v1614 = vsel %vm867, %v1611, 0
        %v1616 = vsel %vm867, %v1613, 0
        %1618 = vmatpush.xpose.msra.mxu0 0.0
        %1619 = vmatpush.xpose.msra.mxu0 0.0
        %1620 = vmatpush.xpose.msra.mxu0 0.0
        %1621 = vmatpush.xpose.msra.mxu0 0.0
        %1622 = vmatpush.xpose.msra.mxu0 0.0
        %1623 = vmatpush.xpose.msra.mxu0 0.0
        %1624 = vmatpush.xpose.msra.mxu0 0.0
        %1625 = vmatpush.xpose.msra.mxu0 0.0
        %1626 = vmatpush.xpose.msra.mxu0 0.0
        %1627 = vmatpush.xpose.msra.mxu0 0.0
        %1628 = vmatpush.xpose.msra.mxu0 0.0
        %1629 = vmatpush.xpose.msra.mxu0 0.0
        %1630 = vmatpush.xpose.msra.mxu0 0.0
        %1631 = vmatpush.xpose.msra.mxu0 0.0
        %1632 = vmatpush.xpose.msra.mxu0 0.0
        %1633 = vmatpush.xpose.msra.mxu0 %v1616
        %1634 = vmatmul.f32.gmra.mxu0 %v1614
        %v1635 = vpop.f32.mrf.mxu0
        %v1636 = vadd.f32 0.0, %v1635
        %1637 = vdwg.mxu0
        %v1638 = vmul.f32 %v1636, 0.35355338
        %v1639 = vsel %vm1367, -1e+09, %v1638
        %v1640 = vsel %vm867, %v1639, -inf
        %1641 = vmax.xlane.f32.xlu0 %v1640
        %v1642 = vpop.xlane.xlu0 %1641
        %v1643 = vsub.f32 %v1639, %v1642
        %v1644 = vmul.f32 %v1643, 1.442695
        %v1645 = vpow.pop %v1644
        %v1646 = vsel %vm867, %v1645, 0.0
        %1647 = vadd.xlane.f32.xlu0 %v1646
        %v1648 = vpop.xlane.xlu0 %1647
        %v1649 = vrcp.pop %v1648
        %v1650 = vmul.f32 %v1645, %v1649
        %1651 = vrot.lane.b32.xlu0 %v1334, 72
        %v1652 = vpop.permute.xlu0 %1651
        %v1655 = vsel %vm867, %v1650, 0
        %1657 = vmatpush.msra.mxu0 0.0
        %1658 = vmatpush.msra.mxu0 0.0
        %1659 = vmatpush.msra.mxu0 0.0
        %1660 = vmatpush.msra.mxu0 0.0
        %1661 = vmatpush.msra.mxu0 0.0
        %1662 = vmatpush.msra.mxu0 0.0
        %1663 = vmatpush.msra.mxu0 0.0
        %1664 = vmatpush.msra.mxu0 0.0
        %1665 = vmatpush.msra.mxu0 0.0
        %1666 = vmatpush.msra.mxu0 0.0
        %1667 = vmatpush.msra.mxu0 0.0
        %1668 = vmatpush.msra.mxu0 0.0
        %1669 = vmatpush.msra.mxu0 0.0
        %1670 = vmatpush.msra.mxu0 0.0
        %1671 = vmatpush.msra.mxu0 0.0
        %1672 = vmatpush.msra.mxu0 %v1652
        %1673 = vmatmul.f32.gmra.mxu0 %v1655
        %v1674 = vpop.f32.mrf.mxu0
        %v1675 = vadd.f32 0.0, %v1674
        %1676 = vdwg.mxu0
        %v1678 = vsel %vm867, %v1675, 0
        %1680 = vmatpush.msra.mxu0 0.0
        %1681 = vmatpush.msra.mxu0 0.0
        %1682 = vmatpush.msra.mxu0 0.0
        %1683 = vmatpush.msra.mxu0 0.0
        %1684 = vmatpush.msra.mxu0 0.0
        %1685 = vmatpush.msra.mxu0 0.0
        %1686 = vmatpush.msra.mxu0 0.0
        %1687 = vmatpush.msra.mxu0 0.0
        %1688 = vmatpush.msra.mxu0 0.0
        %1689 = vmatpush.msra.mxu0 0.0
        %1690 = vmatpush.msra.mxu0 0.0
        %1691 = vmatpush.msra.mxu0 0.0
        %1692 = vmatpush.msra.mxu0 0.0
        %1693 = vmatpush.msra.mxu0 0.0
        %1694 = vmatpush.msra.mxu0 0.0
        %1695 = vmatpush.msra.mxu0 %v1339
        %1696 = vmatmul.f32.gmra.mxu0 %v1678
        %v1697 = vpop.f32.mrf.mxu0
        %v1698 = vadd.f32 0.0, %v1697
        %1699 = vdwg.mxu0
        %v1700 = vadd.f32 %v1609, %v1698
        %v1701 = vld [vmem:[%s15] sm:$0x1]
        %v1703 = vperm.slane %v1701, 0
        %v1705 = vadd.f32 %v1700, %v1703
        %v1706 = vadd.f32 %v1705, %v1271
        %v1707 = vsel %vm836, %v1706, 0.0
        %1708 = vadd.xlane.f32.xlu0 %v1707
        %v1709 = vpop.xlane.xlu0 %1708
        %v1710 = vmul.f32 %v1709, %v1242
        %v1711 = vsub.f32 %v1706, %v1710
        %v1712 = vmul.f32 %v1711, %v1711
        %v1713 = vsel %vm836, %v1712, 0.0
        %1714 = vadd.xlane.f32.xlu0 %v1713
        %v1715 = vpop.xlane.xlu0 %1714
        %v1716 = vmul.f32 %v1715, %v1242
        %v1717 = vadd.f32 %v1716, 1e-05
        %v1718 = vrsqrt.pop %v1717
        %v1719 = vmul.f32 %v1718, %v1717
        %v1720 = vmul.f32 %v1719, %v1718
        %v1721 = vmul.f32 0.5, %v1720
        %v1722 = vsub.f32 1.5, %v1721
        %v1723 = vmul.f32 %v1718, %v1722
        %vm1724 = vweird.f32 %v1717
        %vm1725 = vweird.f32 %v1718
        %vm1726 = vmor %vm1724, %vm1725
        %v1727 = vsel %vm1726, %v1718, %v1723
        %v1728 = vmul.f32 %v1711, %v1727
        %v1729 = vld [vmem:[%s16] sm:$0x1]
        %v1731 = vperm.slane %v1729, 0
        %v1733 = vmul.f32 %v1728, %v1731
        %v1734 = vld [vmem:[%s17] sm:$0x1]
        %v1736 = vperm.slane %v1734, 0
        %v1738 = vadd.f32 %v1733, %v1736
        %v1739 = vld [vmem:[#allocation9] sm:$0xff]
        %v1740 = vld [vmem:[#allocation9 + $0x8] sm:$0xff]
        %v1741 = vld [vmem:[#allocation9 + $0x10] sm:$0xff]
        %v1742 = vld [vmem:[#allocation9 + $0x18] sm:$0xff]
        %v1743 = vld [vmem:[%s19] sm:$0x1]
        %v1745 = vperm.slane %v1743, 0
        %v1748 = vsel %vm836, %v1738, 0
        %1750 = vmatpush.msra.mxu0 0.0
        %1751 = vmatpush.msra.mxu0 0.0
        %1752 = vmatpush.msra.mxu0 0.0
        %1753 = vmatpush.msra.mxu0 0.0
        %1754 = vmatpush.msra.mxu0 0.0
        %1755 = vmatpush.msra.mxu0 0.0
        %1756 = vmatpush.msra.mxu0 0.0
        %1757 = vmatpush.msra.mxu0 0.0
        %1758 = vmatpush.msra.mxu0 0.0
        %1759 = vmatpush.msra.mxu0 0.0
        %1760 = vmatpush.msra.mxu0 0.0
        %1761 = vmatpush.msra.mxu0 0.0
        %1762 = vmatpush.msra.mxu0 %v1742
        %1763 = vmatpush.msra.mxu0 %v1741
        %1764 = vmatpush.msra.mxu0 %v1740
        %1765 = vmatpush.msra.mxu0 %v1739
        %1766 = vmatmul.f32.gmra.mxu0 %v1748
        %v1767 = vpop.f32.mrf.mxu0
        %v1768 = vadd.f32 %v1745, %v1767
        %1769 = vdwg.mxu0
        %v1770 = vmax.f32 %v1768, 0.0
        %v1771 = vld [vmem:[%s20] sm:$0xff]
        %v1772 = vld [vmem:[%s20 + $0x8] sm:$0xff]
        %v1773 = vld [vmem:[%s20 + $0x10] sm:$0xff]
        %v1774 = vld [vmem:[%s20 + $0x18] sm:$0xff]
        %v1775 = vld [vmem:[%s20 + $0x20] sm:$0xff]
        %v1776 = vld [vmem:[%s20 + $0x28] sm:$0xff]
        %v1777 = vld [vmem:[%s20 + $0x30] sm:$0xff]
        %v1778 = vld [vmem:[%s20 + $0x38] sm:$0xff]
        %v1779 = vld [vmem:[%s21] sm:$0x1]
        %v1781 = vperm.slane %v1779, 0
        %vm1783 = vcmask 523264
        %v1785 = vsel %vm1783, %v1770, 0
        %1787 = vmatpush.msra.mxu0 0.0
        %1788 = vmatpush.msra.mxu0 0.0
        %1789 = vmatpush.msra.mxu0 0.0
        %1790 = vmatpush.msra.mxu0 0.0
        %1791 = vmatpush.msra.mxu0 0.0
        %1792 = vmatpush.msra.mxu0 0.0
        %1793 = vmatpush.msra.mxu0 0.0
        %1794 = vmatpush.msra.mxu0 0.0
        %1795 = vmatpush.msra.mxu0 %v1778
        %1796 = vmatpush.msra.mxu0 %v1777
        %1797 = vmatpush.msra.mxu0 %v1776
        %1798 = vmatpush.msra.mxu0 %v1775
        %1799 = vmatpush.msra.mxu0 %v1774
        %1800 = vmatpush.msra.mxu0 %v1773
        %1801 = vmatpush.msra.mxu0 %v1772
        %1802 = vmatpush.msra.mxu0 %v1771
        %1803 = vmatmul.f32.gmra.mxu0 %v1785
        %v1804 = vpop.f32.mrf.mxu0
        %v1805 = vadd.f32 %v1781, %v1804
        %1806 = vdwg.mxu0
        %1807 = vst.msk [vmem:[%s825] sm:$0xff] %vm836, %v1805
        %p1808 = scmp.lt.s32.totalorder %s40, 1
        %s1809 = scalar_select %p1808, %s40, 1
        %s1810 = smul.addr %s1809, 8
        %s1811 = scalar_lea.vmem %s22, %s1810
        // Predicated region
        $region129: #{decoder_forward.5} parent=107 // pred_check
          %p1812 = pneg %p540
        $region130: #{decoder_forward.5} parent=107 // pred_check_branch
          %1814 = sbr.rel (%p1812) target = $region132
        $region131: #{decoder_forward.5} parent=107 // pred_region
          _
        $region132: #{decoder_forward.5} parent=107 // pred_fallthru
          _
      $region108: #{decoder_forward.5} parent=5 // pred_fallthru
        _
      %p1815 = scmp.le.s32.totalorder 2, %s35
      // Predicated region
      $region133: #{decoder_forward.5} parent=5 // pred_check
        %p1816 = pneg %p1815
      $region134: #{decoder_forward.5} parent=5 // pred_check_branch
        %1818 = sbr.rel (%p1816) target = $region136
      $region135: #{decoder_forward.5} parent=5 // pred_region
        %s1819 = ssub.s32 %s35, 2
        // Predicated region
        $region137: #{decoder_forward.5} parent=135 // pred_check
          %p1820 = pneg %p546
        $region138: #{decoder_forward.5} parent=135 // pred_check_branch
          %1822 = sbr.rel (%p1820) target = $region140
        $region139: #{decoder_forward.5} parent=135 // pred_region
          %p1823 = scmp.lt.s32.totalorder %s41, 1
          %s1824 = scalar_select %p1823, %s41, 1
          %s1825 = smul.addr %s1824, 8
          %s1826 = scalar_lea.vmem %s22, %s1825
        $region140: #{decoder_forward.5} parent=135 // pred_fallthru
          _
      $region136: #{decoder_forward.5} parent=5 // pred_fallthru
        _
    $region6: #{decoder_forward.5} parent=1 // loop_footer
      %s39 = sadd.s32 1, %s35
    $region7: #{decoder_forward.5} parent=1 // loop_footer_branch
      %34 = sbr.rel target = $region3
    $region8: #{decoder_forward.5} parent=1 // loop_exit
      _
    %1827 = vsyncpa [#allocation3], 1
    %s1828 = scalar_lea.sflag [#allocation3], 1
    %1829 = vsyncpa %s1828, 1
    %1830 = vsyncpa [#allocation5], 1
    %s1831 = scalar_lea.sflag [#allocation5], 1
    %1832 = vsyncpa %s1831, 1
    %1833 = vsyncpa [#allocation8], 1

// kernel: decoder_forward.6
$region0: #{decoder_forward.6}
  #allocation0 [shape = 'u32[]', space=smem, size = 0x4, offset = 0x4, fixed_abs, tag = 'smem constant byte address 0x4 - core index']
  #allocation1 [shape = 'u32[72,128]{1,0:T(1,128)}', space=vmem, size = 0x9000, scoped, tag = 'internal scratch']
  %s0 = inlined_call_operand.vmem [shape: f32[2,8,32], index: 0, kind: input, shape index: {}]
  %s1 = inlined_call_operand.hbm [shape: f32[2,8,32], index: 1, kind: input, shape index: {}]
  %s2 = inlined_call_operand.hbm [shape: f32[2,8,8], index: 2, kind: input, shape index: {}]
  %s3 = inlined_call_operand.hbm [shape: f32[2,8,8], index: 3, kind: input, shape index: {}]
  %s4 = inlined_call_operand.vmem [shape: f32[32,96], index: 4, kind: input, shape index: {}]
  %s5 = inlined_call_operand.hbm [shape: f32[1,96], index: 5, kind: input, shape index: {}]
  %s6 = inlined_call_operand.vmem [shape: f32[32,32], index: 6, kind: input, shape index: {}]
  %s7 = inlined_call_operand.hbm [shape: f32[1,32], index: 7, kind: input, shape index: {}]
  %s8 = inlined_call_operand.hbm [shape: f32[1,32], index: 8, kind: input, shape index: {}]
  %s9 = inlined_call_operand.hbm [shape: f32[1,32], index: 9, kind: input, shape index: {}]
  %s10 = inlined_call_operand.hbm [shape: f32[32,32], index: 10, kind: input, shape index: {}]
  %s11 = inlined_call_operand.hbm [shape: f32[1,32], index: 11, kind: input, shape index: {}]
  %s12 = inlined_call_operand.hbm [shape: f32[32,64], index: 12, kind: input, shape index: {}]
  %s13 = inlined_call_operand.hbm [shape: f32[1,64], index: 13, kind: input, shape index: {}]
  %s14 = inlined_call_operand.hbm [shape: f32[32,32], index: 14, kind: input, shape index: {}]
  %s15 = inlined_call_operand.hbm [shape: f32[1,32], index: 15, kind: input, shape index: {}]
  %s16 = inlined_call_operand.hbm [shape: f32[1,32], index: 16, kind: input, shape index: {}]
  %s17 = inlined_call_operand.hbm [shape: f32[1,32], index: 17, kind: input, shape index: {}]
  %s18 = inlined_call_operand.hbm [shape: f32[32,64], index: 18, kind: input, shape index: {}]
  %s19 = inlined_call_operand.hbm [shape: f32[1,64], index: 19, kind: input, shape index: {}]
  %s20 = inlined_call_operand.vmem [shape: f32[64,32], index: 20, kind: input, shape index: {}]
  %s21 = inlined_call_operand.hbm [shape: f32[1,32], index: 21, kind: input, shape index: {}]
  %s22 = inlined_call_operand.vmem [shape: f32[2,8,32], index: 22, kind: output, shape index: {}]
  %s23 = sld [smem:[#allocation0]]
  $region193: #{decoder_forward.6} parent=0
    _
  %s25 = ssub.s32 1, %s23
  %s26 = scalar_select 0, %s25, %s23
  $region1: #{decoder_forward.6} parent=0
    #allocation2 [shape = 'u8[8192]{0}', space=vmem, size = 0x2000, scoped, tag = 'input window, operand 1']
    #allocation3 [shape = 's32[2]{0}', space=sflag, size = 0x8, scoped, tag = 'scoped memory for decoder_forward.6']
    #allocation4 [shape = 'u8[8192]{0}', space=vmem, size = 0x2000, scoped, tag = 'input window, operand 2']
    #allocation5 [shape = 's32[2]{0}', space=sflag, size = 0x8, scoped, tag = 'scoped memory for decoder_forward.6']
    #allocation6 [shape = 'u8[8192]{0}', space=vmem, size = 0x2000, scoped, tag = 'input window, operand 3']
    #allocation7 [shape = 'u8[512]{0}', space=vmem, size = 0x400, scoped, tag = 'input window, operand 5, single buffered']
    #allocation8 [shape = 's32[1]{0}', space=sflag, size = 0x4, scoped, tag = 'scoped memory for decoder_forward.6']
    #allocation9 [shape = 'u8[512]{0}', space=vmem, size = 0x400, scoped, tag = 'input window, operand 7, single buffered']
    #allocation10 [shape = 'u8[512]{0}', space=vmem, size = 0x400, scoped, tag = 'input window, operand 8, single buffered']
    #allocation11 [shape = 's32[1]{0}', space=sflag, size = 0x4, scoped, tag = 'scoped memory for decoder_forward.6']
    #allocation12 [shape = 'u8[512]{0}', space=vmem, size = 0x400, scoped, tag = 'input window, operand 9, single buffered']
    #allocation13 [shape = 'u8[16384]{0}', space=vmem, size = 0x4000, scoped, tag = 'input window, operand 10, single buffered']
    #allocation14 [shape = 's32[1]{0}', space=sflag, size = 0x4, scoped, tag = 'scoped memory for decoder_forward.6']
    #allocation15 [shape = 'u8[512]{0}', space=vmem, size = 0x400, scoped, tag = 'input window, operand 11, single buffered']
    #allocation16 [shape = 'u8[16384]{0}', space=vmem, size = 0x4000, scoped, tag = 'input window, operand 12, single buffered']
    #allocation17 [shape = 's32[1]{0}', space=sflag, size = 0x4, scoped, tag = 'scoped memory for decoder_forward.6']
    #allocation18 [shape = 'u8[512]{0}', space=vmem, size = 0x400, scoped, tag = 'input window, operand 13, single buffered']
    #allocation19 [shape = 'u8[16384]{0}', space=vmem, size = 0x4000, scoped, tag = 'input window, operand 14, single buffered']
    #allocation20 [shape = 's32[1]{0}', space=sflag, size = 0x4, scoped, tag = 'scoped memory for decoder_forward.6']
    #allocation21 [shape = 'u8[512]{0}', space=vmem, size = 0x400, scoped, tag = 'input window, operand 15, single buffered']
    #allocation22 [shape = 'u8[512]{0}', space=vmem, size = 0x400, scoped, tag = 'input window, operand 16, single buffered']
    #allocation23 [shape = 's32[1]{0}', space=sflag, size = 0x4, scoped, tag = 'scoped memory for decoder_forward.6']
    #allocation24 [shape = 'u8[512]{0}', space=vmem, size = 0x400, scoped, tag = 'input window, operand 17, single buffered']
    #allocation25 [shape = 'u8[16384]{0}', space=vmem, size = 0x4000, scoped, tag = 'input window, operand 18, single buffered']
    #allocation26 [shape = 's32[1]{0}', space=sflag, size = 0x4, scoped, tag = 'scoped memory for decoder_forward.6']
    #allocation27 [shape = 'u8[512]{0}', space=vmem, size = 0x400, scoped, tag = 'input window, operand 19, single buffered']
    #allocation28 [shape = 'u8[512]{0}', space=vmem, size = 0x400, scoped, tag = 'input window, operand 21, single buffered']
    #allocation29 [shape = 's32[1]{0}', space=sflag, size = 0x4, scoped, tag = 'scoped memory for decoder_forward.6']
    %27 = vsyncpa [#allocation3], 0
    %s28 = scalar_lea.sflag [#allocation3], 1
    %29 = vsyncpa %s28, 0
    %30 = vsyncpa [#allocation5], 0
    %s31 = scalar_lea.sflag [#allocation5], 1
    %32 = vsyncpa %s31, 0
    %33 = vsyncpa [#allocation8], 0
    %34 = vsyncpa [#allocation11], 0
    %35 = vsyncpa [#allocation14], 0
    %36 = vsyncpa [#allocation17], 0
    %37 = vsyncpa [#allocation20], 0
    %38 = vsyncpa [#allocation23], 0
    %39 = vsyncpa [#allocation26], 0
    %40 = vsyncpa [#allocation29], 0
    loop: start=0, step=1, limit=4
    $region2: #{decoder_forward.6} parent=1 // loop_pre_header
      _
    $region3: #{decoder_forward.6} parent=1 // loop_header
      %s42 = sphi 0, %s46
      %p43 = scmp.ge.s32.totalorder %s42, 4
      %s52 = sphi 0, %s54
      %s55 = sphi 0, %s52
      %s56 = sphi 0, %s55
      %s72 = sphi 0, %s56
      %s78 = sphi 0, %s80
      %s81 = sphi 0, %s78
      %s82 = sphi 0, %s81
      %s98 = sphi 0, %s82
      %s104 = sphi 0, %s106
      %s107 = sphi 0, %s104
      %s108 = sphi 0, %s107
      %s124 = sphi 0, %s108
      %s130 = sphi 0, %s132
      %s133 = sphi 0, %s130
      %s134 = sphi 0, %s133
      %s150 = sphi 0, %s134
      %s154 = sphi 0, %s154
      %s156 = sphi 0, %s154
      %s157 = sphi 0, %s156
      %s171 = sphi 0, %s157
      %s175 = sphi 0, %s175
      %s177 = sphi 0, %s175
      %s178 = sphi 0, %s177
      %s192 = sphi 0, %s178
      %s196 = sphi 0, %s196
      %s198 = sphi 0, %s196
      %s199 = sphi 0, %s198
      %s213 = sphi 0, %s199
      %s217 = sphi 0, %s217
      %s219 = sphi 0, %s217
      %s220 = sphi 0, %s219
      %s234 = sphi 0, %s220
      %s238 = sphi 0, %s238
      %s240 = sphi 0, %s238
      %s241 = sphi 0, %s240
      %s255 = sphi 0, %s241
      %s259 = sphi 0, %s259
      %s261 = sphi 0, %s259
      %s262 = sphi 0, %s261
      %s276 = sphi 0, %s262
      %s280 = sphi 0, %s280
      %s282 = sphi 0, %s280
      %s283 = sphi 0, %s282
      %s297 = sphi 0, %s283
      %s301 = sphi 0, %s301
      %s303 = sphi 0, %s301
      %s304 = sphi 0, %s303
      %s318 = sphi 0, %s304
      %s322 = sphi 0, %s322
      %s324 = sphi 0, %s322
      %s325 = sphi 0, %s324
      %s339 = sphi 0, %s325
      %s343 = sphi 0, %s343
      %s345 = sphi 0, %s343
      %s346 = sphi 0, %s345
      %s360 = sphi 0, %s346
      %s364 = sphi 0, %s364
      %s366 = sphi 0, %s364
      %s367 = sphi 0, %s366
      %s381 = sphi 0, %s367
      %s385 = sphi 0, %s385
      %s387 = sphi 0, %s385
      %s388 = sphi 0, %s387
      %s402 = sphi 0, %s388
      %s406 = sphi 0, %s406
      %s408 = sphi 0, %s406
      %s409 = sphi 0, %s408
      %s423 = sphi 0, %s409
      %s427 = sphi 0, %s427
      %s429 = sphi 0, %s427
      %s430 = sphi 0, %s429
      %s444 = sphi 0, %s430
      %s448 = sphi 0, %s448
      %s450 = sphi 0, %s448
      %s451 = sphi 0, %s450
      %s465 = sphi 0, %s451
      %s469 = sphi 0, %s469
      %s471 = sphi 0, %s469
      %s472 = sphi 0, %s471
      %s486 = sphi 0, %s472
      %s490 = sphi 0, %s490
      %s492 = sphi 0, %s490
      %s493 = sphi 0, %s492
      %s507 = sphi 0, %s493
      %s511 = sphi 0, %s511
      %s513 = sphi 0, %s511
      %s514 = sphi 0, %s513
      %s528 = sphi 0, %s514
      %s534 = sphi 0, %s536
      %s537 = sphi 0, %s534
      %s538 = sphi 0, %s537
      %s554 = sphi 0, %s538
    $region4: #{decoder_forward.6} parent=1 // loop_header_branch
      %45 = sbr.rel (%p43) target = $region8
    $region5: #{decoder_forward.6} parent=1 // loop_body
      %s47 = ssub.s32 %s42, 1
      %s48 = ssub.s32 %s42, 2
      %s49 = sadd.s32 %s42, 1
      %s50 = ssub.s32 %s42, %s49
      %p51 = scmp.eq.s32.totalorder %s50, 0
      %s53 = sadd.s32 %s52, 1
      %s54 = scalar_select %p51, %s52, %s53
      %p57 = pneg %p51
      %p58 = scmp.eq.s32.totalorder %s42, 1
      %p59 = por %p57, %p58
      %p60 = scmp.ne.s32.totalorder %s52, %s55
      %p61 = scmp.eq.s32.totalorder %s42, 0
      %p62 = por %p60, %p61
      %p63 = scmp.ne.s32.totalorder %s52, %s55
      %p64 = scmp.eq.s32.totalorder %s47, 1
      %p65 = por %p63, %p64
      %p66 = scmp.ne.s32.totalorder %s55, %s56
      %p67 = scmp.eq.s32.totalorder %s47, 0
      %p68 = por %p66, %p67
      %p69 = scmp.ne.s32.totalorder %s55, %s56
      %p70 = scmp.eq.s32.totalorder %s48, 1
      %p71 = por %p69, %p70
      %p73 = scmp.ne.s32.totalorder %s56, %s72
      %p74 = scmp.eq.s32.totalorder %s48, 0
      %p75 = por %p73, %p74
      %s76 = ssub.s32 %s42, %s49
      %p77 = scmp.eq.s32.totalorder %s76, 0
      %s79 = sadd.s32 %s78, 1
      %s80 = scalar_select %p77, %s78, %s79
      %p83 = pneg %p77
      %p84 = scmp.eq.s32.totalorder %s42, 1
      %p85 = por %p83, %p84
      %p86 = scmp.ne.s32.totalorder %s78, %s81
      %p87 = scmp.eq.s32.totalorder %s42, 0
      %p88 = por %p86, %p87
      %p89 = scmp.ne.s32.totalorder %s78, %s81
      %p90 = scmp.eq.s32.totalorder %s47, 1
      %p91 = por %p89, %p90
      %p92 = scmp.ne.s32.totalorder %s81, %s82
      %p93 = scmp.eq.s32.totalorder %s47, 0
      %p94 = por %p92, %p93
      %p95 = scmp.ne.s32.totalorder %s81, %s82
      %p96 = scmp.eq.s32.totalorder %s48, 1
      %p97 = por %p95, %p96
      %p99 = scmp.ne.s32.totalorder %s82, %s98
      %p100 = scmp.eq.s32.totalorder %s48, 0
      %p101 = por %p99, %p100
      %s102 = ssub.s32 %s42, %s49
      %p103 = scmp.eq.s32.totalorder %s102, 0
      %s105 = sadd.s32 %s104, 1
      %s106 = scalar_select %p103, %s104, %s105
      %p109 = pneg %p103
      %p110 = scmp.eq.s32.totalorder %s42, 1
      %p111 = por %p109, %p110
      %p112 = scmp.ne.s32.totalorder %s104, %s107
      %p113 = scmp.eq.s32.totalorder %s42, 0
      %p114 = por %p112, %p113
      %p115 = scmp.ne.s32.totalorder %s104, %s107
      %p116 = scmp.eq.s32.totalorder %s47, 1
      %p117 = por %p115, %p116
      %p118 = scmp.ne.s32.totalorder %s107, %s108
      %p119 = scmp.eq.s32.totalorder %s47, 0
      %p120 = por %p118, %p119
      %p121 = scmp.ne.s32.totalorder %s107, %s108
      %p122 = scmp.eq.s32.totalorder %s48, 1
      %p123 = por %p121, %p122
      %p125 = scmp.ne.s32.totalorder %s108, %s124
      %p126 = scmp.eq.s32.totalorder %s48, 0
      %p127 = por %p125, %p126
      %s128 = ssub.s32 %s42, %s49
      %p129 = scmp.eq.s32.totalorder %s128, 0
      %s131 = sadd.s32 %s130, 1
      %s132 = scalar_select %p129, %s130, %s131
      %p135 = pneg %p129
      %p136 = scmp.eq.s32.totalorder %s42, 1
      %p137 = por %p135, %p136
      %p138 = scmp.ne.s32.totalorder %s130, %s133
      %p139 = scmp.eq.s32.totalorder %s42, 0
      %p140 = por %p138, %p139
      %p141 = scmp.ne.s32.totalorder %s130, %s133
      %p142 = scmp.eq.s32.totalorder %s47, 1
      %p143 = por %p141, %p142
      %p144 = scmp.ne.s32.totalorder %s133, %s134
      %p145 = scmp.eq.s32.totalorder %s47, 0
      %p146 = por %p144, %p145
      %p147 = scmp.ne.s32.totalorder %s133, %s134
      %p148 = scmp.eq.s32.totalorder %s48, 1
      %p149 = por %p147, %p148
      %p151 = scmp.ne.s32.totalorder %s134, %s150
      %p152 = scmp.eq.s32.totalorder %s48, 0
      %p153 = por %p151, %p152
      %s155 = sadd.s32 %s154, 1
      %p158 = scmp.eq.s32.totalorder %s42, 1
      %p159 = scmp.ne.s32.totalorder %s154, %s156
      %p160 = scmp.eq.s32.totalorder %s42, 0
      %p161 = por %p159, %p160
      %p162 = scmp.ne.s32.totalorder %s154, %s156
      %p163 = scmp.eq.s32.totalorder %s47, 1
      %p164 = por %p162, %p163
      %p165 = scmp.ne.s32.totalorder %s156, %s157
      %p166 = scmp.eq.s32.totalorder %s47, 0
      %p167 = por %p165, %p166
      %p168 = scmp.ne.s32.totalorder %s156, %s157
      %p169 = scmp.eq.s32.totalorder %s48, 1
      %p170 = por %p168, %p169
      %p172 = scmp.ne.s32.totalorder %s157, %s171
      %p173 = scmp.eq.s32.totalorder %s48, 0
      %p174 = por %p172, %p173
      %s176 = sadd.s32 %s175, 1
      %p179 = scmp.eq.s32.totalorder %s42, 1
      %p180 = scmp.ne.s32.totalorder %s175, %s177
      %p181 = scmp.eq.s32.totalorder %s42, 0
      %p182 = por %p180, %p181
      %p183 = scmp.ne.s32.totalorder %s175, %s177
      %p184 = scmp.eq.s32.totalorder %s47, 1
      %p185 = por %p183, %p184
      %p186 = scmp.ne.s32.totalorder %s177, %s178
      %p187 = scmp.eq.s32.totalorder %s47, 0
      %p188 = por %p186, %p187
      %p189 = scmp.ne.s32.totalorder %s177, %s178
      %p190 = scmp.eq.s32.totalorder %s48, 1
      %p191 = por %p189, %p190
      %p193 = scmp.ne.s32.totalorder %s178, %s192
      %p194 = scmp.eq.s32.totalorder %s48, 0
      %p195 = por %p193, %p194
      %s197 = sadd.s32 %s196, 1
      %p200 = scmp.eq.s32.totalorder %s42, 1
      %p201 = scmp.ne.s32.totalorder %s196, %s198
      %p202 = scmp.eq.s32.totalorder %s42, 0
      %p203 = por %p201, %p202
      %p204 = scmp.ne.s32.totalorder %s196, %s198
      %p205 = scmp.eq.s32.totalorder %s47, 1
      %p206 = por %p204, %p205
      %p207 = scmp.ne.s32.totalorder %s198, %s199
      %p208 = scmp.eq.s32.totalorder %s47, 0
      %p209 = por %p207, %p208
      %p210 = scmp.ne.s32.totalorder %s198, %s199
      %p211 = scmp.eq.s32.totalorder %s48, 1
      %p212 = por %p210, %p211
      %p214 = scmp.ne.s32.totalorder %s199, %s213
      %p215 = scmp.eq.s32.totalorder %s48, 0
      %p216 = por %p214, %p215
      %s218 = sadd.s32 %s217, 1
      %p221 = scmp.eq.s32.totalorder %s42, 1
      %p222 = scmp.ne.s32.totalorder %s217, %s219
      %p223 = scmp.eq.s32.totalorder %s42, 0
      %p224 = por %p222, %p223
      %p225 = scmp.ne.s32.totalorder %s217, %s219
      %p226 = scmp.eq.s32.totalorder %s47, 1
      %p227 = por %p225, %p226
      %p228 = scmp.ne.s32.totalorder %s219, %s220
      %p229 = scmp.eq.s32.totalorder %s47, 0
      %p230 = por %p228, %p229
      %p231 = scmp.ne.s32.totalorder %s219, %s220
      %p232 = scmp.eq.s32.totalorder %s48, 1
      %p233 = por %p231, %p232
      %p235 = scmp.ne.s32.totalorder %s220, %s234
      %p236 = scmp.eq.s32.totalorder %s48, 0
      %p237 = por %p235, %p236
      %s239 = sadd.s32 %s238, 1
      %p242 = scmp.eq.s32.totalorder %s42, 1
      %p243 = scmp.ne.s32.totalorder %s238, %s240
      %p244 = scmp.eq.s32.totalorder %s42, 0
      %p245 = por %p243, %p244
      %p246 = scmp.ne.s32.totalorder %s238, %s240
      %p247 = scmp.eq.s32.totalorder %s47, 1
      %p248 = por %p246, %p247
      %p249 = scmp.ne.s32.totalorder %s240, %s241
      %p250 = scmp.eq.s32.totalorder %s47, 0
      %p251 = por %p249, %p250
      %p252 = scmp.ne.s32.totalorder %s240, %s241
      %p253 = scmp.eq.s32.totalorder %s48, 1
      %p254 = por %p252, %p253
      %p256 = scmp.ne.s32.totalorder %s241, %s255
      %p257 = scmp.eq.s32.totalorder %s48, 0
      %p258 = por %p256, %p257
      %s260 = sadd.s32 %s259, 1
      %p263 = scmp.eq.s32.totalorder %s42, 1
      %p264 = scmp.ne.s32.totalorder %s259, %s261
      %p265 = scmp.eq.s32.totalorder %s42, 0
      %p266 = por %p264, %p265
      %p267 = scmp.ne.s32.totalorder %s259, %s261
      %p268 = scmp.eq.s32.totalorder %s47, 1
      %p269 = por %p267, %p268
      %p270 = scmp.ne.s32.totalorder %s261, %s262
      %p271 = scmp.eq.s32.totalorder %s47, 0
      %p272 = por %p270, %p271
      %p273 = scmp.ne.s32.totalorder %s261, %s262
      %p274 = scmp.eq.s32.totalorder %s48, 1
      %p275 = por %p273, %p274
      %p277 = scmp.ne.s32.totalorder %s262, %s276
      %p278 = scmp.eq.s32.totalorder %s48, 0
      %p279 = por %p277, %p278
      %s281 = sadd.s32 %s280, 1
      %p284 = scmp.eq.s32.totalorder %s42, 1
      %p285 = scmp.ne.s32.totalorder %s280, %s282
      %p286 = scmp.eq.s32.totalorder %s42, 0
      %p287 = por %p285, %p286
      %p288 = scmp.ne.s32.totalorder %s280, %s282
      %p289 = scmp.eq.s32.totalorder %s47, 1
      %p290 = por %p288, %p289
      %p291 = scmp.ne.s32.totalorder %s282, %s283
      %p292 = scmp.eq.s32.totalorder %s47, 0
      %p293 = por %p291, %p292
      %p294 = scmp.ne.s32.totalorder %s282, %s283
      %p295 = scmp.eq.s32.totalorder %s48, 1
      %p296 = por %p294, %p295
      %p298 = scmp.ne.s32.totalorder %s283, %s297
      %p299 = scmp.eq.s32.totalorder %s48, 0
      %p300 = por %p298, %p299
      %s302 = sadd.s32 %s301, 1
      %p305 = scmp.eq.s32.totalorder %s42, 1
      %p306 = scmp.ne.s32.totalorder %s301, %s303
      %p307 = scmp.eq.s32.totalorder %s42, 0
      %p308 = por %p306, %p307
      %p309 = scmp.ne.s32.totalorder %s301, %s303
      %p310 = scmp.eq.s32.totalorder %s47, 1
      %p311 = por %p309, %p310
      %p312 = scmp.ne.s32.totalorder %s303, %s304
      %p313 = scmp.eq.s32.totalorder %s47, 0
      %p314 = por %p312, %p313
      %p315 = scmp.ne.s32.totalorder %s303, %s304
      %p316 = scmp.eq.s32.totalorder %s48, 1
      %p317 = por %p315, %p316
      %p319 = scmp.ne.s32.totalorder %s304, %s318
      %p320 = scmp.eq.s32.totalorder %s48, 0
      %p321 = por %p319, %p320
      %s323 = sadd.s32 %s322, 1
      %p326 = scmp.eq.s32.totalorder %s42, 1
      %p327 = scmp.ne.s32.totalorder %s322, %s324
      %p328 = scmp.eq.s32.totalorder %s42, 0
      %p329 = por %p327, %p328
      %p330 = scmp.ne.s32.totalorder %s322, %s324
      %p331 = scmp.eq.s32.totalorder %s47, 1
      %p332 = por %p330, %p331
      %p333 = scmp.ne.s32.totalorder %s324, %s325
      %p334 = scmp.eq.s32.totalorder %s47, 0
      %p335 = por %p333, %p334
      %p336 = scmp.ne.s32.totalorder %s324, %s325
      %p337 = scmp.eq.s32.totalorder %s48, 1
      %p338 = por %p336, %p337
      %p340 = scmp.ne.s32.totalorder %s325, %s339
      %p341 = scmp.eq.s32.totalorder %s48, 0
      %p342 = por %p340, %p341
      %s344 = sadd.s32 %s343, 1
      %p347 = scmp.eq.s32.totalorder %s42, 1
      %p348 = scmp.ne.s32.totalorder %s343, %s345
      %p349 = scmp.eq.s32.totalorder %s42, 0
      %p350 = por %p348, %p349
      %p351 = scmp.ne.s32.totalorder %s343, %s345
      %p352 = scmp.eq.s32.totalorder %s47, 1
      %p353 = por %p351, %p352
      %p354 = scmp.ne.s32.totalorder %s345, %s346
      %p355 = scmp.eq.s32.totalorder %s47, 0
      %p356 = por %p354, %p355
      %p357 = scmp.ne.s32.totalorder %s345, %s346
      %p358 = scmp.eq.s32.totalorder %s48, 1
      %p359 = por %p357, %p358
      %p361 = scmp.ne.s32.totalorder %s346, %s360
      %p362 = scmp.eq.s32.totalorder %s48, 0
      %p363 = por %p361, %p362
      %s365 = sadd.s32 %s364, 1
      %p368 = scmp.eq.s32.totalorder %s42, 1
      %p369 = scmp.ne.s32.totalorder %s364, %s366
      %p370 = scmp.eq.s32.totalorder %s42, 0
      %p371 = por %p369, %p370
      %p372 = scmp.ne.s32.totalorder %s364, %s366
      %p373 = scmp.eq.s32.totalorder %s47, 1
      %p374 = por %p372, %p373
      %p375 = scmp.ne.s32.totalorder %s366, %s367
      %p376 = scmp.eq.s32.totalorder %s47, 0
      %p377 = por %p375, %p376
      %p378 = scmp.ne.s32.totalorder %s366, %s367
      %p379 = scmp.eq.s32.totalorder %s48, 1
      %p380 = por %p378, %p379
      %p382 = scmp.ne.s32.totalorder %s367, %s381
      %p383 = scmp.eq.s32.totalorder %s48, 0
      %p384 = por %p382, %p383
      %s386 = sadd.s32 %s385, 1
      %p389 = scmp.eq.s32.totalorder %s42, 1
      %p390 = scmp.ne.s32.totalorder %s385, %s387
      %p391 = scmp.eq.s32.totalorder %s42, 0
      %p392 = por %p390, %p391
      %p393 = scmp.ne.s32.totalorder %s385, %s387
      %p394 = scmp.eq.s32.totalorder %s47, 1
      %p395 = por %p393, %p394
      %p396 = scmp.ne.s32.totalorder %s387, %s388
      %p397 = scmp.eq.s32.totalorder %s47, 0
      %p398 = por %p396, %p397
      %p399 = scmp.ne.s32.totalorder %s387, %s388
      %p400 = scmp.eq.s32.totalorder %s48, 1
      %p401 = por %p399, %p400
      %p403 = scmp.ne.s32.totalorder %s388, %s402
      %p404 = scmp.eq.s32.totalorder %s48, 0
      %p405 = por %p403, %p404
      %s407 = sadd.s32 %s406, 1
      %p410 = scmp.eq.s32.totalorder %s42, 1
      %p411 = scmp.ne.s32.totalorder %s406, %s408
      %p412 = scmp.eq.s32.totalorder %s42, 0
      %p413 = por %p411, %p412
      %p414 = scmp.ne.s32.totalorder %s406, %s408
      %p415 = scmp.eq.s32.totalorder %s47, 1
      %p416 = por %p414, %p415
      %p417 = scmp.ne.s32.totalorder %s408, %s409
      %p418 = scmp.eq.s32.totalorder %s47, 0
      %p419 = por %p417, %p418
      %p420 = scmp.ne.s32.totalorder %s408, %s409
      %p421 = scmp.eq.s32.totalorder %s48, 1
      %p422 = por %p420, %p421
      %p424 = scmp.ne.s32.totalorder %s409, %s423
      %p425 = scmp.eq.s32.totalorder %s48, 0
      %p426 = por %p424, %p425
      %s428 = sadd.s32 %s427, 1
      %p431 = scmp.eq.s32.totalorder %s42, 1
      %p432 = scmp.ne.s32.totalorder %s427, %s429
      %p433 = scmp.eq.s32.totalorder %s42, 0
      %p434 = por %p432, %p433
      %p435 = scmp.ne.s32.totalorder %s427, %s429
      %p436 = scmp.eq.s32.totalorder %s47, 1
      %p437 = por %p435, %p436
      %p438 = scmp.ne.s32.totalorder %s429, %s430
      %p439 = scmp.eq.s32.totalorder %s47, 0
      %p440 = por %p438, %p439
      %p441 = scmp.ne.s32.totalorder %s429, %s430
      %p442 = scmp.eq.s32.totalorder %s48, 1
      %p443 = por %p441, %p442
      %p445 = scmp.ne.s32.totalorder %s430, %s444
      %p446 = scmp.eq.s32.totalorder %s48, 0
      %p447 = por %p445, %p446
      %s449 = sadd.s32 %s448, 1
      %p452 = scmp.eq.s32.totalorder %s42, 1
      %p453 = scmp.ne.s32.totalorder %s448, %s450
      %p454 = scmp.eq.s32.totalorder %s42, 0
      %p455 = por %p453, %p454
      %p456 = scmp.ne.s32.totalorder %s448, %s450
      %p457 = scmp.eq.s32.totalorder %s47, 1
      %p458 = por %p456, %p457
      %p459 = scmp.ne.s32.totalorder %s450, %s451
      %p460 = scmp.eq.s32.totalorder %s47, 0
      %p461 = por %p459, %p460
      %p462 = scmp.ne.s32.totalorder %s450, %s451
      %p463 = scmp.eq.s32.totalorder %s48, 1
      %p464 = por %p462, %p463
      %p466 = scmp.ne.s32.totalorder %s451, %s465
      %p467 = scmp.eq.s32.totalorder %s48, 0
      %p468 = por %p466, %p467
      %s470 = sadd.s32 %s469, 1
      %p473 = scmp.eq.s32.totalorder %s42, 1
      %p474 = scmp.ne.s32.totalorder %s469, %s471
      %p475 = scmp.eq.s32.totalorder %s42, 0
      %p476 = por %p474, %p475
      %p477 = scmp.ne.s32.totalorder %s469, %s471
      %p478 = scmp.eq.s32.totalorder %s47, 1
      %p479 = por %p477, %p478
      %p480 = scmp.ne.s32.totalorder %s471, %s472
      %p481 = scmp.eq.s32.totalorder %s47, 0
      %p482 = por %p480, %p481
      %p483 = scmp.ne.s32.totalorder %s471, %s472
      %p484 = scmp.eq.s32.totalorder %s48, 1
      %p485 = por %p483, %p484
      %p487 = scmp.ne.s32.totalorder %s472, %s486
      %p488 = scmp.eq.s32.totalorder %s48, 0
      %p489 = por %p487, %p488
      %s491 = sadd.s32 %s490, 1
      %p494 = scmp.eq.s32.totalorder %s42, 1
      %p495 = scmp.ne.s32.totalorder %s490, %s492
      %p496 = scmp.eq.s32.totalorder %s42, 0
      %p497 = por %p495, %p496
      %p498 = scmp.ne.s32.totalorder %s490, %s492
      %p499 = scmp.eq.s32.totalorder %s47, 1
      %p500 = por %p498, %p499
      %p501 = scmp.ne.s32.totalorder %s492, %s493
      %p502 = scmp.eq.s32.totalorder %s47, 0
      %p503 = por %p501, %p502
      %p504 = scmp.ne.s32.totalorder %s492, %s493
      %p505 = scmp.eq.s32.totalorder %s48, 1
      %p506 = por %p504, %p505
      %p508 = scmp.ne.s32.totalorder %s493, %s507
      %p509 = scmp.eq.s32.totalorder %s48, 0
      %p510 = por %p508, %p509
      %s512 = sadd.s32 %s511, 1
      %p515 = scmp.eq.s32.totalorder %s42, 1
      %p516 = scmp.ne.s32.totalorder %s511, %s513
      %p517 = scmp.eq.s32.totalorder %s42, 0
      %p518 = por %p516, %p517
      %p519 = scmp.ne.s32.totalorder %s511, %s513
      %p520 = scmp.eq.s32.totalorder %s47, 1
      %p521 = por %p519, %p520
      %p522 = scmp.ne.s32.totalorder %s513, %s514
      %p523 = scmp.eq.s32.totalorder %s47, 0
      %p524 = por %p522, %p523
      %p525 = scmp.ne.s32.totalorder %s513, %s514
      %p526 = scmp.eq.s32.totalorder %s48, 1
      %p527 = por %p525, %p526
      %p529 = scmp.ne.s32.totalorder %s514, %s528
      %p530 = scmp.eq.s32.totalorder %s48, 0
      %p531 = por %p529, %p530
      %s532 = ssub.s32 %s42, %s49
      %p533 = scmp.eq.s32.totalorder %s532, 0
      %s535 = sadd.s32 %s534, 1
      %s536 = scalar_select %p533, %s534, %s535
      %p539 = pneg %p533
      %p540 = scmp.eq.s32.totalorder %s42, 1
      %p541 = por %p539, %p540
      %p542 = scmp.ne.s32.totalorder %s534, %s537
      %p543 = scmp.eq.s32.totalorder %s42, 0
      %p544 = por %p542, %p543
      %p545 = scmp.ne.s32.totalorder %s534, %s537
      %p546 = scmp.eq.s32.totalorder %s47, 1
      %p547 = por %p545, %p546
      %p548 = scmp.ne.s32.totalorder %s537, %s538
      %p549 = scmp.eq.s32.totalorder %s47, 0
      %p550 = por %p548, %p549
      %p551 = scmp.ne.s32.totalorder %s537, %s538
      %p552 = scmp.eq.s32.totalorder %s48, 1
      %p553 = por %p551, %p552
      %p555 = scmp.ne.s32.totalorder %s538, %s554
      %p556 = scmp.eq.s32.totalorder %s48, 0
      %p557 = por %p555, %p556
      %p558 = scmp.le.s32.totalorder 1, %s42
      %p559 = scmp.lt.s32.totalorder %s42, 3
      %p560 = pnand %p558, %p559
      %p561 = pneg %p560
      // Predicated region
      $region9: #{decoder_forward.6} parent=5 // pred_check
        _
      $region10: #{decoder_forward.6} parent=5 // pred_check_branch
        %563 = sbr.rel (%p560) target = $region12
      $region11: #{decoder_forward.6} parent=5 // pred_region
        %s564 = ssub.s32 %s42, 1
        // Predicated region
        $region13: #{decoder_forward.6} parent=11 // pred_check
          %p565 = pneg %p167
        $region14: #{decoder_forward.6} parent=11 // pred_check_branch
          %567 = sbr.rel (%p565) target = $region16
        $region15: #{decoder_forward.6} parent=11 // pred_region
          _
        $region16: #{decoder_forward.6} parent=11 // pred_fallthru
          _
        // Predicated region
        $region17: #{decoder_forward.6} parent=11 // pred_check
          %p568 = pneg %p188
        $region18: #{decoder_forward.6} parent=11 // pred_check_branch
          %570 = sbr.rel (%p568) target = $region20
        $region19: #{decoder_forward.6} parent=11 // pred_region
          %572 = vsyncadd [#allocation8], 0
          %s574 = sshll.u32 %s5, 4
          %s575 = int_to_ptr.hbm [resolvable:$true] %s574
          %s576 = sshll.u32 [#allocation7], 4
          %s577 = int_to_ptr.vmem [resolvable:$true] %s576
          %579 = dma.hbm_to_vmem [thread:$0]  %s575, 16, %s577, [#allocation8]
        $region20: #{decoder_forward.6} parent=11 // pred_fallthru
          _
        // Predicated region
        $region21: #{decoder_forward.6} parent=11 // pred_check
          %p580 = pneg %p209
        $region22: #{decoder_forward.6} parent=11 // pred_check_branch
          %582 = sbr.rel (%p580) target = $region24
        $region23: #{decoder_forward.6} parent=11 // pred_region
          _
        $region24: #{decoder_forward.6} parent=11 // pred_fallthru
          _
        // Predicated region
        $region25: #{decoder_forward.6} parent=11 // pred_check
          %p583 = pneg %p230
        $region26: #{decoder_forward.6} parent=11 // pred_check_branch
          %585 = sbr.rel (%p583) target = $region28
        $region27: #{decoder_forward.6} parent=11 // pred_region
          %587 = vsyncadd [#allocation8], 0
          %s589 = sshll.u32 %s7, 4
          %s590 = int_to_ptr.hbm [resolvable:$true] %s589
          %s591 = sshll.u32 [#allocation9], 4
          %s592 = int_to_ptr.vmem [resolvable:$true] %s591
          %594 = dma.hbm_to_vmem [thread:$0]  %s590, 16, %s592, [#allocation8]
        $region28: #{decoder_forward.6} parent=11 // pred_fallthru
          _
        // Predicated region
        $region29: #{decoder_forward.6} parent=11 // pred_check
          %p595 = pneg %p251
        $region30: #{decoder_forward.6} parent=11 // pred_check_branch
          %597 = sbr.rel (%p595) target = $region32
        $region31: #{decoder_forward.6} parent=11 // pred_region
          %599 = vsyncadd [#allocation11], 0
          %s601 = sshll.u32 %s8, 4
          %s602 = int_to_ptr.hbm [resolvable:$true] %s601
          %s603 = sshll.u32 [#allocation10], 4
          %s604 = int_to_ptr.vmem [resolvable:$true] %s603
          %606 = dma.hbm_to_vmem [thread:$0]  %s602, 16, %s604, [#allocation11]
        $region32: #{decoder_forward.6} parent=11 // pred_fallthru
          _
        // Predicated region
        $region33: #{decoder_forward.6} parent=11 // pred_check
          %p607 = pneg %p272
        $region34: #{decoder_forward.6} parent=11 // pred_check_branch
          %609 = sbr.rel (%p607) target = $region36
        $region35: #{decoder_forward.6} parent=11 // pred_region
          %611 = vsyncadd [#allocation11], 0
          %s613 = sshll.u32 %s9, 4
          %s614 = int_to_ptr.hbm [resolvable:$true] %s613
          %s615 = sshll.u32 [#allocation12], 4
          %s616 = int_to_ptr.vmem [resolvable:$true] %s615
          %618 = dma.hbm_to_vmem [thread:$0]  %s614, 16, %s616, [#allocation11]
        $region36: #{decoder_forward.6} parent=11 // pred_fallthru
          _
        // Predicated region
        $region37: #{decoder_forward.6} parent=11 // pred_check
          %p619 = pneg %p293
        $region38: #{decoder_forward.6} parent=11 // pred_check_branch
          %621 = sbr.rel (%p619) target = $region40
        $region39: #{decoder_forward.6} parent=11 // pred_region
          %623 = vsyncadd [#allocation14], 0
          %s624 = sshll.u32 %s10, 4
          %s625 = int_to_ptr.hbm [resolvable:$true] %s624
          %s626 = sshll.u32 [#allocation13], 4
          %s627 = int_to_ptr.vmem [resolvable:$true] %s626
          %632 = dma.hbm_to_vmem [thread:$0]  %s625, 512, %s627, [#allocation14], 128, 128, 8
        $region40: #{decoder_forward.6} parent=11 // pred_fallthru
          _
        // Predicated region
        $region41: #{decoder_forward.6} parent=11 // pred_check
          %p633 = pneg %p314
        $region42: #{decoder_forward.6} parent=11 // pred_check_branch
          %635 = sbr.rel (%p633) target = $region44
        $region43: #{decoder_forward.6} parent=11 // pred_region
          %637 = vsyncadd [#allocation14], 0
          %s639 = sshll.u32 %s11, 4
          %s640 = int_to_ptr.hbm [resolvable:$true] %s639
          %s641 = sshll.u32 [#allocation15], 4
          %s642 = int_to_ptr.vmem [resolvable:$true] %s641
          %644 = dma.hbm_to_vmem [thread:$0]  %s640, 16, %s642, [#allocation14]
        $region44: #{decoder_forward.6} parent=11 // pred_fallthru
          _
        // Predicated region
        $region45: #{decoder_forward.6} parent=11 // pred_check
          %p645 = pneg %p335
        $region46: #{decoder_forward.6} parent=11 // pred_check_branch
          %647 = sbr.rel (%p645) target = $region48
        $region47: #{decoder_forward.6} parent=11 // pred_region
          %649 = vsyncadd [#allocation17], 0
          %s650 = sshll.u32 %s12, 4
          %s651 = int_to_ptr.hbm [resolvable:$true] %s650
          %s652 = sshll.u32 [#allocation16], 4
          %s653 = int_to_ptr.vmem [resolvable:$true] %s652
          %658 = dma.hbm_to_vmem [thread:$0]  %s651, 512, %s653, [#allocation17], 128, 128, 8
        $region48: #{decoder_forward.6} parent=11 // pred_fallthru
          _
        // Predicated region
        $region49: #{decoder_forward.6} parent=11 // pred_check
          %p659 = pneg %p356
        $region50: #{decoder_forward.6} parent=11 // pred_check_branch
          %661 = sbr.rel (%p659) target = $region52
        $region51: #{decoder_forward.6} parent=11 // pred_region
          %663 = vsyncadd [#allocation17], 0
          %s665 = sshll.u32 %s13, 4
          %s666 = int_to_ptr.hbm [resolvable:$true] %s665
          %s667 = sshll.u32 [#allocation18], 4
          %s668 = int_to_ptr.vmem [resolvable:$true] %s667
          %670 = dma.hbm_to_vmem [thread:$0]  %s666, 16, %s668, [#allocation17]
        $region52: #{decoder_forward.6} parent=11 // pred_fallthru
          _
        // Predicated region
        $region53: #{decoder_forward.6} parent=11 // pred_check
          %p671 = pneg %p377
        $region54: #{decoder_forward.6} parent=11 // pred_check_branch
          %673 = sbr.rel (%p671) target = $region56
        $region55: #{decoder_forward.6} parent=11 // pred_region
          %675 = vsyncadd [#allocation20], 0
          %s676 = sshll.u32 %s14, 4
          %s677 = int_to_ptr.hbm [resolvable:$true] %s676
          %s678 = sshll.u32 [#allocation19], 4
          %s679 = int_to_ptr.vmem [resolvable:$true] %s678
          %684 = dma.hbm_to_vmem [thread:$0]  %s677, 512, %s679, [#allocation20], 128, 128, 8
        $region56: #{decoder_forward.6} parent=11 // pred_fallthru
          _
        // Predicated region
        $region57: #{decoder_forward.6} parent=11 // pred_check
          %p685 = pneg %p398
        $region58: #{decoder_forward.6} parent=11 // pred_check_branch
          %687 = sbr.rel (%p685) target = $region60
        $region59: #{decoder_forward.6} parent=11 // pred_region
          %689 = vsyncadd [#allocation20], 0
          %s691 = sshll.u32 %s15, 4
          %s692 = int_to_ptr.hbm [resolvable:$true] %s691
          %s693 = sshll.u32 [#allocation21], 4
          %s694 = int_to_ptr.vmem [resolvable:$true] %s693
          %696 = dma.hbm_to_vmem [thread:$0]  %s692, 16, %s694, [#allocation20]
        $region60: #{decoder_forward.6} parent=11 // pred_fallthru
          _
        // Predicated region
        $region61: #{decoder_forward.6} parent=11 // pred_check
          %p697 = pneg %p419
        $region62: #{decoder_forward.6} parent=11 // pred_check_branch
          %699 = sbr.rel (%p697) target = $region64
        $region63: #{decoder_forward.6} parent=11 // pred_region
          %701 = vsyncadd [#allocation23], 0
          %s703 = sshll.u32 %s16, 4
          %s704 = int_to_ptr.hbm [resolvable:$true] %s703
          %s705 = sshll.u32 [#allocation22], 4
          %s706 = int_to_ptr.vmem [resolvable:$true] %s705
          %708 = dma.hbm_to_vmem [thread:$0]  %s704, 16, %s706, [#allocation23]
        $region64: #{decoder_forward.6} parent=11 // pred_fallthru
          _
        // Predicated region
        $region65: #{decoder_forward.6} parent=11 // pred_check
          %p709 = pneg %p440
        $region66: #{decoder_forward.6} parent=11 // pred_check_branch
          %711 = sbr.rel (%p709) target = $region68
        $region67: #{decoder_forward.6} parent=11 // pred_region
          %713 = vsyncadd [#allocation23], 0
          %s715 = sshll.u32 %s17, 4
          %s716 = int_to_ptr.hbm [resolvable:$true] %s715
          %s717 = sshll.u32 [#allocation24], 4
          %s718 = int_to_ptr.vmem [resolvable:$true] %s717
          %720 = dma.hbm_to_vmem [thread:$0]  %s716, 16, %s718, [#allocation23]
        $region68: #{decoder_forward.6} parent=11 // pred_fallthru
          _
        // Predicated region
        $region69: #{decoder_forward.6} parent=11 // pred_check
          %p721 = pneg %p461
        $region70: #{decoder_forward.6} parent=11 // pred_check_branch
          %723 = sbr.rel (%p721) target = $region72
        $region71: #{decoder_forward.6} parent=11 // pred_region
          %725 = vsyncadd [#allocation26], 0
          %s726 = sshll.u32 %s18, 4
          %s727 = int_to_ptr.hbm [resolvable:$true] %s726
          %s728 = sshll.u32 [#allocation25], 4
          %s729 = int_to_ptr.vmem [resolvable:$true] %s728
          %734 = dma.hbm_to_vmem [thread:$0]  %s727, 512, %s729, [#allocation26], 128, 128, 8
        $region72: #{decoder_forward.6} parent=11 // pred_fallthru
          _
        // Predicated region
        $region73: #{decoder_forward.6} parent=11 // pred_check
          %p735 = pneg %p482
        $region74: #{decoder_forward.6} parent=11 // pred_check_branch
          %737 = sbr.rel (%p735) target = $region76
        $region75: #{decoder_forward.6} parent=11 // pred_region
          %739 = vsyncadd [#allocation26], 0
          %s741 = sshll.u32 %s19, 4
          %s742 = int_to_ptr.hbm [resolvable:$true] %s741
          %s743 = sshll.u32 [#allocation27], 4
          %s744 = int_to_ptr.vmem [resolvable:$true] %s743
          %746 = dma.hbm_to_vmem [thread:$0]  %s742, 16, %s744, [#allocation26]
        $region76: #{decoder_forward.6} parent=11 // pred_fallthru
          _
        // Predicated region
        $region77: #{decoder_forward.6} parent=11 // pred_check
          %p747 = pneg %p503
        $region78: #{decoder_forward.6} parent=11 // pred_check_branch
          %749 = sbr.rel (%p747) target = $region80
        $region79: #{decoder_forward.6} parent=11 // pred_region
          _
        $region80: #{decoder_forward.6} parent=11 // pred_fallthru
          _
        // Predicated region
        $region81: #{decoder_forward.6} parent=11 // pred_check
          %p750 = pneg %p524
        $region82: #{decoder_forward.6} parent=11 // pred_check_branch
          %752 = sbr.rel (%p750) target = $region84
        $region83: #{decoder_forward.6} parent=11 // pred_region
          %754 = vsyncadd [#allocation29], 0
          %s756 = sshll.u32 %s21, 4
          %s757 = int_to_ptr.hbm [resolvable:$true] %s756
          %s758 = sshll.u32 [#allocation28], 4
          %s759 = int_to_ptr.vmem [resolvable:$true] %s758
          %761 = dma.hbm_to_vmem [thread:$0]  %s757, 16, %s759, [#allocation29]
        $region84: #{decoder_forward.6} parent=11 // pred_fallthru
          _
      $region12: #{decoder_forward.6} parent=5 // pred_fallthru
        _
      %p762 = scmp.lt.s32.totalorder %s42, 2
      // Predicated region
      $region85: #{decoder_forward.6} parent=5 // pred_check
        %p763 = pneg %p762
      $region86: #{decoder_forward.6} parent=5 // pred_check_branch
        %765 = sbr.rel (%p763) target = $region88
      $region87: #{decoder_forward.6} parent=5 // pred_region
        // Predicated region
        $region89: #{decoder_forward.6} parent=87 // pred_check
          %p766 = pneg %p62
        $region90: #{decoder_forward.6} parent=87 // pred_check_branch
          %768 = sbr.rel (%p766) target = $region92
        $region91: #{decoder_forward.6} parent=87 // pred_region
          %p769 = scmp.lt.s32.totalorder %s42, 1
          %s770 = scalar_select %p769, %s42, 1
          %s771 = smul.addr %s770, 8
          %s772 = scalar_lea.vmem %s0, %s771
        $region92: #{decoder_forward.6} parent=87 // pred_fallthru
          _
        // Predicated region
        $region93: #{decoder_forward.6} parent=87 // pred_check
          %p773 = pneg %p88
        $region94: #{decoder_forward.6} parent=87 // pred_check_branch
          %775 = sbr.rel (%p773) target = $region96
        $region95: #{decoder_forward.6} parent=87 // pred_region
          %s776 = sand.u32 %s78, 1
          %s777 = scalar_lea.sflag [#allocation3], %s776
          %s778 = sand.u32 %s78, 1
          %s779 = smul.addr %s778, 8
          %s780 = scalar_lea.vmem [#allocation2], %s779
          %782 = vsyncadd %s777, 0
          %s783 = smul.addr %s42, 8
          %s784 = scalar_lea.hbm %s1, %s783
          %s786 = sshll.u32 %s784, 4
          %s787 = int_to_ptr.hbm [resolvable:$true] %s786
          %s788 = sshll.u32 %s780, 4
          %s789 = int_to_ptr.vmem [resolvable:$true] %s788
          %791 = dma.hbm_to_vmem [thread:$0]  %s787, 128, %s789, %s777
        $region96: #{decoder_forward.6} parent=87 // pred_fallthru
          _
        // Predicated region
        $region97: #{decoder_forward.6} parent=87 // pred_check
          %p792 = pneg %p114
        $region98: #{decoder_forward.6} parent=87 // pred_check_branch
          %794 = sbr.rel (%p792) target = $region100
        $region99: #{decoder_forward.6} parent=87 // pred_region
          %s795 = sand.u32 %s42, 1
          %s796 = scalar_lea.sflag [#allocation5], %s795
          %s797 = sand.u32 %s104, 1
          %s798 = smul.addr %s797, 8
          %s799 = scalar_lea.vmem [#allocation4], %s798
          %801 = vsyncadd %s796, 0
          %s802 = smul.addr %s42, 8
          %s803 = scalar_lea.hbm %s2, %s802
          %s805 = sshll.u32 %s803, 4
          %s806 = int_to_ptr.hbm [resolvable:$true] %s805
          %s807 = sshll.u32 %s799, 4
          %s808 = int_to_ptr.vmem [resolvable:$true] %s807
          %810 = dma.hbm_to_vmem [thread:$0]  %s806, 128, %s808, %s796
        $region100: #{decoder_forward.6} parent=87 // pred_fallthru
          _
        // Predicated region
        $region101: #{decoder_forward.6} parent=87 // pred_check
          %p811 = pneg %p140
        $region102: #{decoder_forward.6} parent=87 // pred_check_branch
          %813 = sbr.rel (%p811) target = $region104
        $region103: #{decoder_forward.6} parent=87 // pred_region
          %s814 = sand.u32 %s42, 1
          %s815 = scalar_lea.sflag [#allocation5], %s814
          %s816 = sand.u32 %s130, 1
          %s817 = smul.addr %s816, 8
          %s818 = scalar_lea.vmem [#allocation6], %s817
          %820 = vsyncadd %s815, 0
          %s821 = smul.addr %s42, 8
          %s822 = scalar_lea.hbm %s3, %s821
          %s824 = sshll.u32 %s822, 4
          %s825 = int_to_ptr.hbm [resolvable:$true] %s824
          %s826 = sshll.u32 %s818, 4
          %s827 = int_to_ptr.vmem [resolvable:$true] %s826
          %829 = dma.hbm_to_vmem [thread:$0]  %s825, 128, %s827, %s815
        $region104: #{decoder_forward.6} parent=87 // pred_fallthru
          _
      $region88: #{decoder_forward.6} parent=5 // pred_fallthru
        _
      %p830 = scmp.le.s32.totalorder 1, %s42
      %p831 = scmp.lt.s32.totalorder %s42, 3
      %p832 = pnand %p830, %p831
      %p833 = pneg %p832
      // Predicated region
      $region105: #{decoder_forward.6} parent=5 // pred_check
        _
      $region106: #{decoder_forward.6} parent=5 // pred_check_branch
        %835 = sbr.rel (%p832) target = $region108
      $region107: #{decoder_forward.6} parent=5 // pred_region
        %s836 = ssub.s32 %s42, 1
        %s837 = sand.u32 %s81, 1
        %s838 = scalar_lea.sflag [#allocation3], %s837
        %s839 = sand.u32 %s81, 1
        %s840 = smul.addr %s839, 8
        %s841 = scalar_lea.vmem [#allocation2], %s840
        // Predicated region
        $region109: #{decoder_forward.6} parent=107 // pred_check
          %p842 = pneg %p94
        $region110: #{decoder_forward.6} parent=107 // pred_check_branch
          %844 = sbr.rel (%p842) target = $region112
        $region111: #{decoder_forward.6} parent=107 // pred_region
          %846 = dma.done %s838, 128
        $region112: #{decoder_forward.6} parent=107 // pred_fallthru
          _
        %s847 = sand.u32 %s47, 1
        %s848 = scalar_lea.sflag [#allocation5], %s847
        %s849 = sand.u32 %s107, 1
        %s850 = smul.addr %s849, 8
        %s851 = scalar_lea.vmem [#allocation4], %s850
        // Predicated region
        $region113: #{decoder_forward.6} parent=107 // pred_check
          %p852 = pneg %p120
        $region114: #{decoder_forward.6} parent=107 // pred_check_branch
          %854 = sbr.rel (%p852) target = $region116
        $region115: #{decoder_forward.6} parent=107 // pred_region
          %856 = dma.done %s848, 128
        $region116: #{decoder_forward.6} parent=107 // pred_fallthru
          _
        %s857 = sand.u32 %s47, 1
        %s858 = scalar_lea.sflag [#allocation5], %s857
        %s859 = sand.u32 %s133, 1
        %s860 = smul.addr %s859, 8
        %s861 = scalar_lea.vmem [#allocation6], %s860
        // Predicated region
        $region117: #{decoder_forward.6} parent=107 // pred_check
          %p862 = pneg %p146
        $region118: #{decoder_forward.6} parent=107 // pred_check_branch
          %864 = sbr.rel (%p862) target = $region120
        $region119: #{decoder_forward.6} parent=107 // pred_region
          %866 = dma.done %s858, 128
        $region120: #{decoder_forward.6} parent=107 // pred_fallthru
          _
        // Predicated region
        $region121: #{decoder_forward.6} parent=107 // pred_check
          %p867 = pneg %p188
        $region122: #{decoder_forward.6} parent=107 // pred_check_branch
          %869 = sbr.rel (%p867) target = $region124
        $region123: #{decoder_forward.6} parent=107 // pred_region
          %871 = dma.done [#allocation8], 16
        $region124: #{decoder_forward.6} parent=107 // pred_fallthru
          _
        // Predicated region
        $region125: #{decoder_forward.6} parent=107 // pred_check
          %p872 = pneg %p230
        $region126: #{decoder_forward.6} parent=107 // pred_check_branch
          %874 = sbr.rel (%p872) target = $region128
        $region127: #{decoder_forward.6} parent=107 // pred_region
          %876 = dma.done [#allocation8], 16
        $region128: #{decoder_forward.6} parent=107 // pred_fallthru
          _
        // Predicated region
        $region129: #{decoder_forward.6} parent=107 // pred_check
          %p877 = pneg %p251
        $region130: #{decoder_forward.6} parent=107 // pred_check_branch
          %879 = sbr.rel (%p877) target = $region132
        $region131: #{decoder_forward.6} parent=107 // pred_region
          %881 = dma.done [#allocation11], 16
        $region132: #{decoder_forward.6} parent=107 // pred_fallthru
          _
        // Predicated region
        $region133: #{decoder_forward.6} parent=107 // pred_check
          %p882 = pneg %p272
        $region134: #{decoder_forward.6} parent=107 // pred_check_branch
          %884 = sbr.rel (%p882) target = $region136
        $region135: #{decoder_forward.6} parent=107 // pred_region
          %886 = dma.done [#allocation11], 16
        $region136: #{decoder_forward.6} parent=107 // pred_fallthru
          _
        // Predicated region
        $region137: #{decoder_forward.6} parent=107 // pred_check
          %p887 = pneg %p293
        $region138: #{decoder_forward.6} parent=107 // pred_check_branch
          %889 = sbr.rel (%p887) target = $region140
        $region139: #{decoder_forward.6} parent=107 // pred_region
          %891 = dma.done [#allocation14], 512
        $region140: #{decoder_forward.6} parent=107 // pred_fallthru
          _
        // Predicated region
        $region141: #{decoder_forward.6} parent=107 // pred_check
          %p892 = pneg %p314
        $region142: #{decoder_forward.6} parent=107 // pred_check_branch
          %894 = sbr.rel (%p892) target = $region144
        $region143: #{decoder_forward.6} parent=107 // pred_region
          %896 = dma.done [#allocation14], 16
        $region144: #{decoder_forward.6} parent=107 // pred_fallthru
          _
        // Predicated region
        $region145: #{decoder_forward.6} parent=107 // pred_check
          %p897 = pneg %p335
        $region146: #{decoder_forward.6} parent=107 // pred_check_branch
          %899 = sbr.rel (%p897) target = $region148
        $region147: #{decoder_forward.6} parent=107 // pred_region
          %901 = dma.done [#allocation17], 512
        $region148: #{decoder_forward.6} parent=107 // pred_fallthru
          _
        // Predicated region
        $region149: #{decoder_forward.6} parent=107 // pred_check
          %p902 = pneg %p356
        $region150: #{decoder_forward.6} parent=107 // pred_check_branch
          %904 = sbr.rel (%p902) target = $region152
        $region151: #{decoder_forward.6} parent=107 // pred_region
          %906 = dma.done [#allocation17], 16
        $region152: #{decoder_forward.6} parent=107 // pred_fallthru
          _
        // Predicated region
        $region153: #{decoder_forward.6} parent=107 // pred_check
          %p907 = pneg %p377
        $region154: #{decoder_forward.6} parent=107 // pred_check_branch
          %909 = sbr.rel (%p907) target = $region156
        $region155: #{decoder_forward.6} parent=107 // pred_region
          %911 = dma.done [#allocation20], 512
        $region156: #{decoder_forward.6} parent=107 // pred_fallthru
          _
        // Predicated region
        $region157: #{decoder_forward.6} parent=107 // pred_check
          %p912 = pneg %p398
        $region158: #{decoder_forward.6} parent=107 // pred_check_branch
          %914 = sbr.rel (%p912) target = $region160
        $region159: #{decoder_forward.6} parent=107 // pred_region
          %916 = dma.done [#allocation20], 16
        $region160: #{decoder_forward.6} parent=107 // pred_fallthru
          _
        // Predicated region
        $region161: #{decoder_forward.6} parent=107 // pred_check
          %p917 = pneg %p419
        $region162: #{decoder_forward.6} parent=107 // pred_check_branch
          %919 = sbr.rel (%p917) target = $region164
        $region163: #{decoder_forward.6} parent=107 // pred_region
          %921 = dma.done [#allocation23], 16
        $region164: #{decoder_forward.6} parent=107 // pred_fallthru
          _
        // Predicated region
        $region165: #{decoder_forward.6} parent=107 // pred_check
          %p922 = pneg %p440
        $region166: #{decoder_forward.6} parent=107 // pred_check_branch
          %924 = sbr.rel (%p922) target = $region168
        $region167: #{decoder_forward.6} parent=107 // pred_region
          %926 = dma.done [#allocation23], 16
        $region168: #{decoder_forward.6} parent=107 // pred_fallthru
          _
        // Predicated region
        $region169: #{decoder_forward.6} parent=107 // pred_check
          %p927 = pneg %p461
        $region170: #{decoder_forward.6} parent=107 // pred_check_branch
          %929 = sbr.rel (%p927) target = $region172
        $region171: #{decoder_forward.6} parent=107 // pred_region
          %931 = dma.done [#allocation26], 512
        $region172: #{decoder_forward.6} parent=107 // pred_fallthru
          _
        // Predicated region
        $region173: #{decoder_forward.6} parent=107 // pred_check
          %p932 = pneg %p482
        $region174: #{decoder_forward.6} parent=107 // pred_check_branch
          %934 = sbr.rel (%p932) target = $region176
        $region175: #{decoder_forward.6} parent=107 // pred_region
          %936 = dma.done [#allocation26], 16
        $region176: #{decoder_forward.6} parent=107 // pred_fallthru
          _
        // Predicated region
        $region177: #{decoder_forward.6} parent=107 // pred_check
          %p937 = pneg %p524
        $region178: #{decoder_forward.6} parent=107 // pred_check_branch
          %939 = sbr.rel (%p937) target = $region180
        $region179: #{decoder_forward.6} parent=107 // pred_region
          %941 = dma.done [#allocation29], 16
        $region180: #{decoder_forward.6} parent=107 // pred_fallthru
          _
        %p942 = scmp.lt.s32.totalorder %s47, 1
        %s943 = scalar_select %p942, %s47, 1
        %s944 = smul.addr %s943, 8
        %s945 = scalar_lea.vmem %s0, %s944
        %p946 = pneg %p68
        %p947 = pneg %p65
        %s948 = sand.u32 %s81, 1
        %s949 = scalar_lea.sflag [#allocation3], %s948
        %s950 = sand.u32 %s81, 1
        %s951 = smul.addr %s950, 8
        %s952 = scalar_lea.vmem [#allocation2], %s951
        %p953 = pneg %p94
        %p954 = pneg %p91
        %s955 = sand.u32 %s47, 1
        %s956 = scalar_lea.sflag [#allocation5], %s955
        %s957 = sand.u32 %s107, 1
        %s958 = smul.addr %s957, 8
        %s959 = scalar_lea.vmem [#allocation4], %s958
        %p960 = pneg %p120
        %p961 = pneg %p117
        %s962 = sand.u32 %s47, 1
        %s963 = scalar_lea.sflag [#allocation5], %s962
        %s964 = sand.u32 %s133, 1
        %s965 = smul.addr %s964, 8
        %s966 = scalar_lea.vmem [#allocation6], %s965
        %p967 = pneg %p146
        %p968 = pneg %p143
        %p969 = pneg %p167
        %p970 = pneg %p164
        %p971 = pneg %p188
        %p972 = pneg %p185
        %p973 = pneg %p209
        %p974 = pneg %p206
        %p975 = pneg %p230
        %p976 = pneg %p227
        %p977 = pneg %p251
        %p978 = pneg %p248
        %p979 = pneg %p272
        %p980 = pneg %p269
        %p981 = pneg %p293
        %p982 = pneg %p290
        %p983 = pneg %p314
        %p984 = pneg %p311
        %p985 = pneg %p335
        %p986 = pneg %p332
        %p987 = pneg %p356
        %p988 = pneg %p353
        %p989 = pneg %p377
        %p990 = pneg %p374
        %p991 = pneg %p398
        %p992 = pneg %p395
        %p993 = pneg %p419
        %p994 = pneg %p416
        %p995 = pneg %p440
        %p996 = pneg %p437
        %p997 = pneg %p461
        %p998 = pneg %p458
        %p999 = pneg %p482
        %p1000 = pneg %p479
        %p1001 = pneg %p503
        %p1002 = pneg %p500
        %p1003 = pneg %p524
        %p1004 = pneg %p521
        %p1005 = pneg %p550
        %p1006 = pneg %p547
        %p1007 = scmp.lt.s32.totalorder %s47, 1
        %s1008 = scalar_select %p1007, %s47, 1
        %s1009 = smul.addr %s1008, 8
        %s1010 = scalar_lea.vmem %s22, %s1009
        %p1011 = scmp.lt.s32.totalorder %s47, 1
        %s1012 = scalar_select %p1011, %s47, 1
        %s1013 = smul.addr %s1012, 8
        %s1014 = scalar_lea.vmem %s0, %s1013
        %p1015 = scmp.lt.s32.totalorder %s47, 1
        %s1016 = scalar_select %p1015, %s47, 1
        %s1017 = smul.addr %s1016, 8
        %s1018 = scalar_lea.vmem %s22, %s1017
        %v1019 = vld [vmem:[%s1014] sm:$0xff]
        %v1020 = vld [vmem:[%s851] sm:$0xff]
        %v1021 = vld [vmem:[%s4] sm:$0xff]
        %v1022 = vld [vmem:[%s4 + $0x8] sm:$0xff]
        %v1023 = vld [vmem:[%s4 + $0x10] sm:$0xff]
        %v1024 = vld [vmem:[%s4 + $0x18] sm:$0xff]
        %v1025 = vld [vmem:[#allocation7] sm:$0x1]
        %v1027 = vperm.slane %v1025, 0
        %vm1029 = vcmask 261120
        %v1031 = vsel %vm1029, %v1019, 0
        %1033 = vmatpush.msra.mxu0 0.0
        %1034 = vmatpush.msra.mxu0 0.0
        %1035 = vmatpush.msra.mxu0 0.0
        %1036 = vmatpush.msra.mxu0 0.0
        %1037 = vmatpush.msra.mxu0 0.0
        %1038 = vmatpush.msra.mxu0 0.0
        %1039 = vmatpush.msra.mxu0 0.0
        %1040 = vmatpush.msra.mxu0 0.0
        %1041 = vmatpush.msra.mxu0 0.0
        %1042 = vmatpush.msra.mxu0 0.0
        %1043 = vmatpush.msra.mxu0 0.0
        %1044 = vmatpush.msra.mxu0 0.0
        %1045 = vmatpush.msra.mxu0 %v1024
        %1046 = vmatpush.msra.mxu0 %v1023
        %1047 = vmatpush.msra.mxu0 %v1022
        %1048 = vmatpush.msra.mxu0 %v1021
        %1049 = vmatmul.f32.gmra.mxu0 %v1031
        %v1050 = vpop.f32.mrf.mxu0
        %v1051 = vadd.f32 %v1027, %v1050
        %1052 = vdwg.mxu0
        %v1053 = vld [vmem:[%s6] sm:$0xff]
        %v1054 = vld [vmem:[%s6 + $0x8] sm:$0xff]
        %v1055 = vld [vmem:[%s6 + $0x10] sm:$0xff]
        %v1056 = vld [vmem:[%s6 + $0x18] sm:$0xff]
        %1058 = vrot.lane.b32.xlu0 %v1051, 96
        %v1059 = vpop.permute.xlu0 %1058
        %vm1060 = vcmask 64512
        %v1061 = vsel %vm1060, %v1051, 0
        %v1063 = vsel %vm1060, %v1059, 0
        %1065 = vmatpush.xpose.msra.mxu0 0.0
        %1066 = vmatpush.xpose.msra.mxu0 0.0
        %1067 = vmatpush.xpose.msra.mxu0 0.0
        %1068 = vmatpush.xpose.msra.mxu0 0.0
        %1069 = vmatpush.xpose.msra.mxu0 0.0
        %1070 = vmatpush.xpose.msra.mxu0 0.0
        %1071 = vmatpush.xpose.msra.mxu0 0.0
        %1072 = vmatpush.xpose.msra.mxu0 0.0
        %1073 = vmatpush.xpose.msra.mxu0 0.0
        %1074 = vmatpush.xpose.msra.mxu0 0.0
        %1075 = vmatpush.xpose.msra.mxu0 0.0
        %1076 = vmatpush.xpose.msra.mxu0 0.0
        %1077 = vmatpush.xpose.msra.mxu0 0.0
        %1078 = vmatpush.xpose.msra.mxu0 0.0
        %1079 = vmatpush.xpose.msra.mxu0 0.0
        %1080 = vmatpush.xpose.msra.mxu0 %v1063
        %1081 = vmatmul.f32.gmra.mxu0 %v1061
        %v1082 = vpop.f32.mrf.mxu0
        %v1083 = vadd.f32 0.0, %v1082
        %1084 = vdwg.mxu0
        %v1085 = vmul.f32 %v1083, 0.35355338
        %vm1086 = vcmp.eq.f32.partialorder %v1020, 0.0
        %v1087 = vsel %vm1086, -1e+09, %v1085
        %v1088 = vsel %vm1060, %v1087, -inf
        %1089 = vmax.xlane.f32.xlu0 %v1088
        %v1090 = vpop.xlane.xlu0 %1089
        %v1091 = vsub.f32 %v1087, %v1090
        %v1092 = vmul.f32 %v1091, 1.442695
        %v1093 = vpow.pop %v1092
        %v1094 = vsel %vm1060, %v1093, 0.0
        %1095 = vadd.xlane.f32.xlu0 %v1094
        %v1096 = vpop.xlane.xlu0 %1095
        %v1097 = vrcp.pop %v1096
        %v1098 = vmul.f32 %v1093, %v1097
        %1099 = vrot.lane.b32.xlu0 %v1051, 64
        %v1100 = vpop.permute.xlu0 %1099
        %v1103 = vsel %vm1060, %v1098, 0
        %1105 = vmatpush.msra.mxu0 0.0
        %1106 = vmatpush.msra.mxu0 0.0
        %1107 = vmatpush.msra.mxu0 0.0
        %1108 = vmatpush.msra.mxu0 0.0
        %1109 = vmatpush.msra.mxu0 0.0
        %1110 = vmatpush.msra.mxu0 0.0
        %1111 = vmatpush.msra.mxu0 0.0
        %1112 = vmatpush.msra.mxu0 0.0
        %1113 = vmatpush.msra.mxu0 0.0
        %1114 = vmatpush.msra.mxu0 0.0
        %1115 = vmatpush.msra.mxu0 0.0
        %1116 = vmatpush.msra.mxu0 0.0
        %1117 = vmatpush.msra.mxu0 0.0
        %1118 = vmatpush.msra.mxu0 0.0
        %1119 = vmatpush.msra.mxu0 0.0
        %1120 = vmatpush.msra.mxu0 %v1100
        %1121 = vmatmul.f32.gmra.mxu0 %v1103
        %v1122 = vpop.f32.mrf.mxu0
        %v1123 = vadd.f32 0.0, %v1122
        %1124 = vdwg.mxu0
        %1125 = vrot.lane.b32.xlu0 %v1051, 120
        %v1126 = vpop.permute.xlu0 %1125
        %1127 = vrot.lane.b32.xlu0 %v1051, 88
        %v1128 = vpop.permute.xlu0 %1127
        %v1129 = vsel %vm1060, %v1126, 0
        %v1131 = vsel %vm1060, %v1128, 0
        %1133 = vmatpush.xpose.msra.mxu0 0.0
        %1134 = vmatpush.xpose.msra.mxu0 0.0
        %1135 = vmatpush.xpose.msra.mxu0 0.0
        %1136 = vmatpush.xpose.msra.mxu0 0.0
        %1137 = vmatpush.xpose.msra.mxu0 0.0
        %1138 = vmatpush.xpose.msra.mxu0 0.0
        %1139 = vmatpush.xpose.msra.mxu0 0.0
        %1140 = vmatpush.xpose.msra.mxu0 0.0
        %1141 = vmatpush.xpose.msra.mxu0 0.0
        %1142 = vmatpush.xpose.msra.mxu0 0.0
        %1143 = vmatpush.xpose.msra.mxu0 0.0
        %1144 = vmatpush.xpose.msra.mxu0 0.0
        %1145 = vmatpush.xpose.msra.mxu0 0.0
        %1146 = vmatpush.xpose.msra.mxu0 0.0
        %1147 = vmatpush.xpose.msra.mxu0 0.0
        %1148 = vmatpush.xpose.msra.mxu0 %v1131
        %1149 = vmatmul.f32.gmra.mxu0 %v1129
        %v1150 = vpop.f32.mrf.mxu0
        %v1151 = vadd.f32 0.0, %v1150
        %1152 = vdwg.mxu0
        %v1153 = vmul.f32 %v1151, 0.35355338
        %v1154 = vsel %vm1086, -1e+09, %v1153
        %v1155 = vsel %vm1060, %v1154, -inf
        %1156 = vmax.xlane.f32.xlu0 %v1155
        %v1157 = vpop.xlane.xlu0 %1156
        %v1158 = vsub.f32 %v1154, %v1157
        %v1159 = vmul.f32 %v1158, 1.442695
        %v1160 = vpow.pop %v1159
        %v1161 = vsel %vm1060, %v1160, 0.0
        %1162 = vadd.xlane.f32.xlu0 %v1161
        %v1163 = vpop.xlane.xlu0 %1162
        %v1164 = vrcp.pop %v1163
        %v1165 = vmul.f32 %v1160, %v1164
        %1166 = vrot.lane.b32.xlu0 %v1051, 56
        %v1167 = vpop.permute.xlu0 %1166
        %v1170 = vsel %vm1060, %v1165, 0
        %1172 = vmatpush.msra.mxu0 0.0
        %1173 = vmatpush.msra.mxu0 0.0
        %1174 = vmatpush.msra.mxu0 0.0
        %1175 = vmatpush.msra.mxu0 0.0
        %1176 = vmatpush.msra.mxu0 0.0
        %1177 = vmatpush.msra.mxu0 0.0
        %1178 = vmatpush.msra.mxu0 0.0
        %1179 = vmatpush.msra.mxu0 0.0
        %1180 = vmatpush.msra.mxu0 0.0
        %1181 = vmatpush.msra.mxu0 0.0
        %1182 = vmatpush.msra.mxu0 0.0
        %1183 = vmatpush.msra.mxu0 0.0
        %1184 = vmatpush.msra.mxu0 0.0
        %1185 = vmatpush.msra.mxu0 0.0
        %1186 = vmatpush.msra.mxu0 0.0
        %1187 = vmatpush.msra.mxu0 %v1167
        %1188 = vmatmul.f32.gmra.mxu0 %v1170
        %v1189 = vpop.f32.mrf.mxu0
        %v1190 = vadd.f32 0.0, %v1189
        %1191 = vdwg.mxu0
        %v1193 = vsel %vm1060, %v1190, 0
        %1195 = vmatpush.msra.mxu0 0.0
        %1196 = vmatpush.msra.mxu0 0.0
        %1197 = vmatpush.msra.mxu0 0.0
        %1198 = vmatpush.msra.mxu0 0.0
        %1199 = vmatpush.msra.mxu0 0.0
        %1200 = vmatpush.msra.mxu0 0.0
        %1201 = vmatpush.msra.mxu0 0.0
        %1202 = vmatpush.msra.mxu0 0.0
        %1203 = vmatpush.msra.mxu0 0.0
        %1204 = vmatpush.msra.mxu0 0.0
        %1205 = vmatpush.msra.mxu0 0.0
        %1206 = vmatpush.msra.mxu0 0.0
        %1207 = vmatpush.msra.mxu0 0.0
        %1208 = vmatpush.msra.mxu0 0.0
        %1209 = vmatpush.msra.mxu0 0.0
        %1210 = vmatpush.msra.mxu0 %v1054
        %1211 = vmatmul.f32.gmra.mxu0 %v1193
        %v1212 = vpop.f32.mrf.mxu0
        %v1213 = vadd.f32 0.0, %v1212
        %1214 = vdwg.mxu0
        %v1216 = vsel %vm1060, %v1123, 0
        %1218 = vmatpush.msra.mxu0 0.0
        %1219 = vmatpush.msra.mxu0 0.0
        %1220 = vmatpush.msra.mxu0 0.0
        %1221 = vmatpush.msra.mxu0 0.0
        %1222 = vmatpush.msra.mxu0 0.0
        %1223 = vmatpush.msra.mxu0 0.0
        %1224 = vmatpush.msra.mxu0 0.0
        %1225 = vmatpush.msra.mxu0 0.0
        %1226 = vmatpush.msra.mxu0 0.0
        %1227 = vmatpush.msra.mxu0 0.0
        %1228 = vmatpush.msra.mxu0 0.0
        %1229 = vmatpush.msra.mxu0 0.0
        %1230 = vmatpush.msra.mxu0 0.0
        %1231 = vmatpush.msra.mxu0 0.0
        %1232 = vmatpush.msra.mxu0 0.0
        %1233 = vmatpush.msra.mxu0 %v1053
        %1234 = vmatmul.f32.gmra.mxu0 %v1216
        %v1235 = vpop.f32.mrf.mxu0
        %v1236 = vadd.f32 %v1213, %v1235
        %1237 = vdwg.mxu0
        %1238 = vrot.lane.b32.xlu0 %v1051, 112
        %v1239 = vpop.permute.xlu0 %1238
        %1240 = vrot.lane.b32.xlu0 %v1051, 80
        %v1241 = vpop.permute.xlu0 %1240
        %v1242 = vsel %vm1060, %v1239, 0
        %v1244 = vsel %vm1060, %v1241, 0
        %1246 = vmatpush.xpose.msra.mxu0 0.0
        %1247 = vmatpush.xpose.msra.mxu0 0.0
        %1248 = vmatpush.xpose.msra.mxu0 0.0
        %1249 = vmatpush.xpose.msra.mxu0 0.0
        %1250 = vmatpush.xpose.msra.mxu0 0.0
        %1251 = vmatpush.xpose.msra.mxu0 0.0
        %1252 = vmatpush.xpose.msra.mxu0 0.0
        %1253 = vmatpush.xpose.msra.mxu0 0.0
        %1254 = vmatpush.xpose.msra.mxu0 0.0
        %1255 = vmatpush.xpose.msra.mxu0 0.0
        %1256 = vmatpush.xpose.msra.mxu0 0.0
        %1257 = vmatpush.xpose.msra.mxu0 0.0
        %1258 = vmatpush.xpose.msra.mxu0 0.0
        %1259 = vmatpush.xpose.msra.mxu0 0.0
        %1260 = vmatpush.xpose.msra.mxu0 0.0
        %1261 = vmatpush.xpose.msra.mxu0 %v1244
        %1262 = vmatmul.f32.gmra.mxu0 %v1242
        %v1263 = vpop.f32.mrf.mxu0
        %v1264 = vadd.f32 0.0, %v1263
        %1265 = vdwg.mxu0
        %v1266 = vmul.f32 %v1264, 0.35355338
        %v1267 = vsel %vm1086, -1e+09, %v1266
        %v1268 = vsel %vm1060, %v1267, -inf
        %1269 = vmax.xlane.f32.xlu0 %v1268
        %v1270 = vpop.xlane.xlu0 %1269
        %v1271 = vsub.f32 %v1267, %v1270
        %v1272 = vmul.f32 %v1271, 1.442695
        %v1273 = vpow.pop %v1272
        %v1274 = vsel %vm1060, %v1273, 0.0
        %1275 = vadd.xlane.f32.xlu0 %v1274
        %v1276 = vpop.xlane.xlu0 %1275
        %v1277 = vrcp.pop %v1276
        %v1278 = vmul.f32 %v1273, %v1277
        %1279 = vrot.lane.b32.xlu0 %v1051, 48
        %v1280 = vpop.permute.xlu0 %1279
        %v1283 = vsel %vm1060, %v1278, 0
        %1285 = vmatpush.msra.mxu0 0.0
        %1286 = vmatpush.msra.mxu0 0.0
        %1287 = vmatpush.msra.mxu0 0.0
        %1288 = vmatpush.msra.mxu0 0.0
        %1289 = vmatpush.msra.mxu0 0.0
        %1290 = vmatpush.msra.mxu0 0.0
        %1291 = vmatpush.msra.mxu0 0.0
        %1292 = vmatpush.msra.mxu0 0.0
        %1293 = vmatpush.msra.mxu0 0.0
        %1294 = vmatpush.msra.mxu0 0.0
        %1295 = vmatpush.msra.mxu0 0.0
        %1296 = vmatpush.msra.mxu0 0.0
        %1297 = vmatpush.msra.mxu0 0.0
        %1298 = vmatpush.msra.mxu0 0.0
        %1299 = vmatpush.msra.mxu0 0.0
        %1300 = vmatpush.msra.mxu0 %v1280
        %1301 = vmatmul.f32.gmra.mxu0 %v1283
        %v1302 = vpop.f32.mrf.mxu0
        %v1303 = vadd.f32 0.0, %v1302
        %1304 = vdwg.mxu0
        %v1306 = vsel %vm1060, %v1303, 0
        %1308 = vmatpush.msra.mxu0 0.0
        %1309 = vmatpush.msra.mxu0 0.0
        %1310 = vmatpush.msra.mxu0 0.0
        %1311 = vmatpush.msra.mxu0 0.0
        %1312 = vmatpush.msra.mxu0 0.0
        %1313 = vmatpush.msra.mxu0 0.0
        %1314 = vmatpush.msra.mxu0 0.0
        %1315 = vmatpush.msra.mxu0 0.0
        %1316 = vmatpush.msra.mxu0 0.0
        %1317 = vmatpush.msra.mxu0 0.0
        %1318 = vmatpush.msra.mxu0 0.0
        %1319 = vmatpush.msra.mxu0 0.0
        %1320 = vmatpush.msra.mxu0 0.0
        %1321 = vmatpush.msra.mxu0 0.0
        %1322 = vmatpush.msra.mxu0 0.0
        %1323 = vmatpush.msra.mxu0 %v1055
        %1324 = vmatmul.f32.gmra.mxu0 %v1306
        %v1325 = vpop.f32.mrf.mxu0
        %v1326 = vadd.f32 0.0, %v1325
        %1327 = vdwg.mxu0
        %v1328 = vadd.f32 %v1236, %v1326
        %1329 = vrot.lane.b32.xlu0 %v1051, 104
        %v1330 = vpop.permute.xlu0 %1329
        %1331 = vrot.lane.b32.xlu0 %v1051, 72
        %v1332 = vpop.permute.xlu0 %1331
        %v1333 = vsel %vm1060, %v1330, 0
        %v1335 = vsel %vm1060, %v1332, 0
        %1337 = vmatpush.xpose.msra.mxu0 0.0
        %1338 = vmatpush.xpose.msra.mxu0 0.0
        %1339 = vmatpush.xpose.msra.mxu0 0.0
        %1340 = vmatpush.xpose.msra.mxu0 0.0
        %1341 = vmatpush.xpose.msra.mxu0 0.0
        %1342 = vmatpush.xpose.msra.mxu0 0.0
        %1343 = vmatpush.xpose.msra.mxu0 0.0
        %1344 = vmatpush.xpose.msra.mxu0 0.0
        %1345 = vmatpush.xpose.msra.mxu0 0.0
        %1346 = vmatpush.xpose.msra.mxu0 0.0
        %1347 = vmatpush.xpose.msra.mxu0 0.0
        %1348 = vmatpush.xpose.msra.mxu0 0.0
        %1349 = vmatpush.xpose.msra.mxu0 0.0
        %1350 = vmatpush.xpose.msra.mxu0 0.0
        %1351 = vmatpush.xpose.msra.mxu0 0.0
        %1352 = vmatpush.xpose.msra.mxu0 %v1335
        %1353 = vmatmul.f32.gmra.mxu0 %v1333
        %v1354 = vpop.f32.mrf.mxu0
        %v1355 = vadd.f32 0.0, %v1354
        %1356 = vdwg.mxu0
        %v1357 = vmul.f32 %v1355, 0.35355338
        %v1358 = vsel %vm1086, -1e+09, %v1357
        %v1359 = vsel %vm1060, %v1358, -inf
        %1360 = vmax.xlane.f32.xlu0 %v1359
        %v1361 = vpop.xlane.xlu0 %1360
        %v1362 = vsub.f32 %v1358, %v1361
        %v1363 = vmul.f32 %v1362, 1.442695
        %v1364 = vpow.pop %v1363
        %v1365 = vsel %vm1060, %v1364, 0.0
        %1366 = vadd.xlane.f32.xlu0 %v1365
        %v1367 = vpop.xlane.xlu0 %1366
        %v1368 = vrcp.pop %v1367
        %v1369 = vmul.f32 %v1364, %v1368
        %1370 = vrot.lane.b32.xlu0 %v1051, 40
        %v1371 = vpop.permute.xlu0 %1370
        %v1374 = vsel %vm1060, %v1369, 0
        %1376 = vmatpush.msra.mxu0 0.0
        %1377 = vmatpush.msra.mxu0 0.0
        %1378 = vmatpush.msra.mxu0 0.0
        %1379 = vmatpush.msra.mxu0 0.0
        %1380 = vmatpush.msra.mxu0 0.0
        %1381 = vmatpush.msra.mxu0 0.0
        %1382 = vmatpush.msra.mxu0 0.0
        %1383 = vmatpush.msra.mxu0 0.0
        %1384 = vmatpush.msra.mxu0 0.0
        %1385 = vmatpush.msra.mxu0 0.0
        %1386 = vmatpush.msra.mxu0 0.0
        %1387 = vmatpush.msra.mxu0 0.0
        %1388 = vmatpush.msra.mxu0 0.0
        %1389 = vmatpush.msra.mxu0 0.0
        %1390 = vmatpush.msra.mxu0 0.0
        %1391 = vmatpush.msra.mxu0 %v1371
        %1392 = vmatmul.f32.gmra.mxu0 %v1374
        %v1393 = vpop.f32.mrf.mxu0
        %v1394 = vadd.f32 0.0, %v1393
        %1395 = vdwg.mxu0
        %v1397 = vsel %vm1060, %v1394, 0
        %1399 = vmatpush.msra.mxu0 0.0
        %1400 = vmatpush.msra.mxu0 0.0
        %1401 = vmatpush.msra.mxu0 0.0
        %1402 = vmatpush.msra.mxu0 0.0
        %1403 = vmatpush.msra.mxu0 0.0
        %1404 = vmatpush.msra.mxu0 0.0
        %1405 = vmatpush.msra.mxu0 0.0
        %1406 = vmatpush.msra.mxu0 0.0
        %1407 = vmatpush.msra.mxu0 0.0
        %1408 = vmatpush.msra.mxu0 0.0
        %1409 = vmatpush.msra.mxu0 0.0
        %1410 = vmatpush.msra.mxu0 0.0
        %1411 = vmatpush.msra.mxu0 0.0
        %1412 = vmatpush.msra.mxu0 0.0
        %1413 = vmatpush.msra.mxu0 0.0
        %1414 = vmatpush.msra.mxu0 %v1056
        %1415 = vmatmul.f32.gmra.mxu0 %v1397
        %v1416 = vpop.f32.mrf.mxu0
        %v1417 = vadd.f32 0.0, %v1416
        %1418 = vdwg.mxu0
        %v1419 = vadd.f32 %v1328, %v1417
        %v1420 = vld [vmem:[#allocation9] sm:$0x1]
        %v1422 = vperm.slane %v1420, 0
        %v1424 = vadd.f32 %v1419, %v1422
        %v1425 = vadd.f32 %v1424, %v1019
        %v1426 = vsel %vm1029, %v1425, 0.0
        %1427 = vadd.xlane.f32.xlu0 %v1426
        %v1428 = vpop.xlane.xlu0 %1427
        %v1429 = vrcp.pop 32.0
        %v1430 = vmul.f32 32.0, %v1429
        %v1431 = vsub.f32 1.0, %v1430
        %v1432 = vmul.f32 %v1429, %v1431
        %v1433 = vadd.f32 %v1429, %v1432
        %vm1434 = vweird.f32 %v1429
        %v1435 = vsel %vm1434, %v1429, %v1433
        %v1436 = vmul.f32 %v1428, %v1435
        %v1437 = vsub.f32 %v1425, %v1436
        %v1438 = vmul.f32 %v1437, %v1437
        %v1439 = vsel %vm1029, %v1438, 0.0
        %1440 = vadd.xlane.f32.xlu0 %v1439
        %v1441 = vpop.xlane.xlu0 %1440
        %v1442 = vmul.f32 %v1441, %v1435
        %v1443 = vadd.f32 %v1442, 1e-05
        %v1444 = vrsqrt.pop %v1443
        %v1445 = vmul.f32 %v1444, %v1443
        %v1446 = vmul.f32 %v1445, %v1444
        %v1447 = vmul.f32 0.5, %v1446
        %v1448 = vsub.f32 1.5, %v1447
        %v1449 = vmul.f32 %v1444, %v1448
        %vm1450 = vweird.f32 %v1443
        %vm1451 = vweird.f32 %v1444
        %vm1452 = vmor %vm1450, %vm1451
        %v1453 = vsel %vm1452, %v1444, %v1449
        %v1454 = vmul.f32 %v1437, %v1453
        %v1455 = vld [vmem:[#allocation10] sm:$0x1]
        %v1457 = vperm.slane %v1455, 0
        %v1459 = vmul.f32 %v1454, %v1457
        %v1460 = vld [vmem:[#allocation12] sm:$0x1]
        %v1462 = vperm.slane %v1460, 0
        %v1464 = vadd.f32 %v1459, %v1462
        %v1465 = vld [vmem:[%s841] sm:$0xff]
        %v1466 = vld [vmem:[%s861] sm:$0xff]
        %v1467 = vld [vmem:[#allocation13] sm:$0xff]
        %v1468 = vld [vmem:[#allocation13 + $0x8] sm:$0xff]
        %v1469 = vld [vmem:[#allocation13 + $0x10] sm:$0xff]
        %v1470 = vld [vmem:[#allocation13 + $0x18] sm:$0xff]
        %v1471 = vld [vmem:[#allocation15] sm:$0x1]
        %v1473 = vperm.slane %v1471, 0
        %v1476 = vsel %vm1029, %v1464, 0
        %1478 = vmatpush.msra.mxu0 0.0
        %1479 = vmatpush.msra.mxu0 0.0
        %1480 = vmatpush.msra.mxu0 0.0
        %1481 = vmatpush.msra.mxu0 0.0
        %1482 = vmatpush.msra.mxu0 0.0
        %1483 = vmatpush.msra.mxu0 0.0
        %1484 = vmatpush.msra.mxu0 0.0
        %1485 = vmatpush.msra.mxu0 0.0
        %1486 = vmatpush.msra.mxu0 0.0
        %1487 = vmatpush.msra.mxu0 0.0
        %1488 = vmatpush.msra.mxu0 0.0
        %1489 = vmatpush.msra.mxu0 0.0
        %1490 = vmatpush.msra.mxu0 %v1470
        %1491 = vmatpush.msra.mxu0 %v1469
        %1492 = vmatpush.msra.mxu0 %v1468
        %1493 = vmatpush.msra.mxu0 %v1467
        %1494 = vmatmul.f32.gmra.mxu0 %v1476
        %v1495 = vpop.f32.mrf.mxu0
        %v1496 = vadd.f32 %v1473, %v1495
        %1497 = vdwg.mxu0
        %v1498 = vld [vmem:[#allocation16] sm:$0xff]
        %v1499 = vld [vmem:[#allocation16 + $0x8] sm:$0xff]
        %v1500 = vld [vmem:[#allocation16 + $0x10] sm:$0xff]
        %v1501 = vld [vmem:[#allocation16 + $0x18] sm:$0xff]
        %v1502 = vld [vmem:[#allocation18] sm:$0x1]
        %v1504 = vperm.slane %v1502, 0
        %v1507 = vsel %vm1029, %v1465, 0
        %1509 = vmatpush.msra.mxu0 0.0
        %1510 = vmatpush.msra.mxu0 0.0
        %1511 = vmatpush.msra.mxu0 0.0
        %1512 = vmatpush.msra.mxu0 0.0
        %1513 = vmatpush.msra.mxu0 0.0
        %1514 = vmatpush.msra.mxu0 0.0
        %1515 = vmatpush.msra.mxu0 0.0
        %1516 = vmatpush.msra.mxu0 0.0
        %1517 = vmatpush.msra.mxu0 0.0
        %1518 = vmatpush.msra.mxu0 0.0
        %1519 = vmatpush.msra.mxu0 0.0
        %1520 = vmatpush.msra.mxu0 0.0
        %1521 = vmatpush.msra.mxu0 %v1501
        %1522 = vmatpush.msra.mxu0 %v1500
        %1523 = vmatpush.msra.mxu0 %v1499
        %1524 = vmatpush.msra.mxu0 %v1498
        %1525 = vmatmul.f32.gmra.mxu0 %v1507
        %v1526 = vpop.f32.mrf.mxu0
        %v1527 = vadd.f32 %v1504, %v1526
        %1528 = vdwg.mxu0
        %v1529 = vld [vmem:[#allocation19] sm:$0xff]
        %v1530 = vld [vmem:[#allocation19 + $0x8] sm:$0xff]
        %v1531 = vld [vmem:[#allocation19 + $0x10] sm:$0xff]
        %v1532 = vld [vmem:[#allocation19 + $0x18] sm:$0xff]
        %v1534 = vsel %vm1060, %v1496, 0
        %v1537 = vsel %vm1060, %v1527, 0
        %1539 = vmatpush.xpose.msra.mxu0 0.0
        %1540 = vmatpush.xpose.msra.mxu0 0.0
        %1541 = vmatpush.xpose.msra.mxu0 0.0
        %1542 = vmatpush.xpose.msra.mxu0 0.0
        %1543 = vmatpush.xpose.msra.mxu0 0.0
        %1544 = vmatpush.xpose.msra.mxu0 0.0
        %1545 = vmatpush.xpose.msra.mxu0 0.0
        %1546 = vmatpush.xpose.msra.mxu0 0.0
        %1547 = vmatpush.xpose.msra.mxu0 0.0
        %1548 = vmatpush.xpose.msra.mxu0 0.0
        %1549 = vmatpush.xpose.msra.mxu0 0.0
        %1550 = vmatpush.xpose.msra.mxu0 0.0
        %1551 = vmatpush.xpose.msra.mxu0 0.0
        %1552 = vmatpush.xpose.msra.mxu0 0.0
        %1553 = vmatpush.xpose.msra.mxu0 0.0
        %1554 = vmatpush.xpose.msra.mxu0 %v1537
        %1555 = vmatmul.f32.gmra.mxu0 %v1534
        %v1556 = vpop.f32.mrf.mxu0
        %v1557 = vadd.f32 0.0, %v1556
        %1558 = vdwg.mxu0
        %v1559 = vmul.f32 %v1557, 0.35355338
        %vm1560 = vcmp.eq.f32.partialorder %v1466, 0.0
        %v1561 = vsel %vm1560, -1e+09, %v1559
        %v1562 = vsel %vm1060, %v1561, -inf
        %1563 = vmax.xlane.f32.xlu0 %v1562
        %v1564 = vpop.xlane.xlu0 %1563
        %v1565 = vsub.f32 %v1561, %v1564
        %v1566 = vmul.f32 %v1565, 1.442695
        %v1567 = vpow.pop %v1566
        %v1568 = vsel %vm1060, %v1567, 0.0
        %1569 = vadd.xlane.f32.xlu0 %v1568
        %v1570 = vpop.xlane.xlu0 %1569
        %v1571 = vrcp.pop %v1570
        %v1572 = vmul.f32 %v1567, %v1571
        %1573 = vrot.lane.b32.xlu0 %v1527, 96
        %v1574 = vpop.permute.xlu0 %1573
        %v1577 = vsel %vm1060, %v1572, 0
        %1579 = vmatpush.msra.mxu0 0.0
        %1580 = vmatpush.msra.mxu0 0.0
        %1581 = vmatpush.msra.mxu0 0.0
        %1582 = vmatpush.msra.mxu0 0.0
        %1583 = vmatpush.msra.mxu0 0.0
        %1584 = vmatpush.msra.mxu0 0.0
        %1585 = vmatpush.msra.mxu0 0.0
        %1586 = vmatpush.msra.mxu0 0.0
        %1587 = vmatpush.msra.mxu0 0.0
        %1588 = vmatpush.msra.mxu0 0.0
        %1589 = vmatpush.msra.mxu0 0.0
        %1590 = vmatpush.msra.mxu0 0.0
        %1591 = vmatpush.msra.mxu0 0.0
        %1592 = vmatpush.msra.mxu0 0.0
        %1593 = vmatpush.msra.mxu0 0.0
        %1594 = vmatpush.msra.mxu0 %v1574
        %1595 = vmatmul.f32.gmra.mxu0 %v1577
        %v1596 = vpop.f32.mrf.mxu0
        %v1597 = vadd.f32 0.0, %v1596
        %1598 = vdwg.mxu0
        %1599 = vrot.lane.b32.xlu0 %v1496, 120
        %v1600 = vpop.permute.xlu0 %1599
        %1601 = vrot.lane.b32.xlu0 %v1527, 120
        %v1602 = vpop.permute.xlu0 %1601
        %v1603 = vsel %vm1060, %v1600, 0
        %v1605 = vsel %vm1060, %v1602, 0
        %1607 = vmatpush.xpose.msra.mxu0 0.0
        %1608 = vmatpush.xpose.msra.mxu0 0.0
        %1609 = vmatpush.xpose.msra.mxu0 0.0
        %1610 = vmatpush.xpose.msra.mxu0 0.0
        %1611 = vmatpush.xpose.msra.mxu0 0.0
        %1612 = vmatpush.xpose.msra.mxu0 0.0
        %1613 = vmatpush.xpose.msra.mxu0 0.0
        %1614 = vmatpush.xpose.msra.mxu0 0.0
        %1615 = vmatpush.xpose.msra.mxu0 0.0
        %1616 = vmatpush.xpose.msra.mxu0 0.0
        %1617 = vmatpush.xpose.msra.mxu0 0.0
        %1618 = vmatpush.xpose.msra.mxu0 0.0
        %1619 = vmatpush.xpose.msra.mxu0 0.0
        %1620 = vmatpush.xpose.msra.mxu0 0.0
        %1621 = vmatpush.xpose.msra.mxu0 0.0
        %1622 = vmatpush.xpose.msra.mxu0 %v1605
        %1623 = vmatmul.f32.gmra.mxu0 %v1603
        %v1624 = vpop.f32.mrf.mxu0
        %v1625 = vadd.f32 0.0, %v1624
        %1626 = vdwg.mxu0
        %v1627 = vmul.f32 %v1625, 0.35355338
        %v1628 = vsel %vm1560, -1e+09, %v1627
        %v1629 = vsel %vm1060, %v1628, -inf
        %1630 = vmax.xlane.f32.xlu0 %v1629
        %v1631 = vpop.xlane.xlu0 %1630
        %v1632 = vsub.f32 %v1628, %v1631
        %v1633 = vmul.f32 %v1632, 1.442695
        %v1634 = vpow.pop %v1633
        %v1635 = vsel %vm1060, %v1634, 0.0
        %1636 = vadd.xlane.f32.xlu0 %v1635
        %v1637 = vpop.xlane.xlu0 %1636
        %v1638 = vrcp.pop %v1637
        %v1639 = vmul.f32 %v1634, %v1638
        %1640 = vrot.lane.b32.xlu0 %v1527, 88
        %v1641 = vpop.permute.xlu0 %1640
        %v1644 = vsel %vm1060, %v1639, 0
        %1646 = vmatpush.msra.mxu0 0.0
        %1647 = vmatpush.msra.mxu0 0.0
        %1648 = vmatpush.msra.mxu0 0.0
        %1649 = vmatpush.msra.mxu0 0.0
        %1650 = vmatpush.msra.mxu0 0.0
        %1651 = vmatpush.msra.mxu0 0.0
        %1652 = vmatpush.msra.mxu0 0.0
        %1653 = vmatpush.msra.mxu0 0.0
        %1654 = vmatpush.msra.mxu0 0.0
        %1655 = vmatpush.msra.mxu0 0.0
        %1656 = vmatpush.msra.mxu0 0.0
        %1657 = vmatpush.msra.mxu0 0.0
        %1658 = vmatpush.msra.mxu0 0.0
        %1659 = vmatpush.msra.mxu0 0.0
        %1660 = vmatpush.msra.mxu0 0.0
        %1661 = vmatpush.msra.mxu0 %v1641
        %1662 = vmatmul.f32.gmra.mxu0 %v1644
        %v1663 = vpop.f32.mrf.mxu0
        %v1664 = vadd.f32 0.0, %v1663
        %1665 = vdwg.mxu0
        %v1667 = vsel %vm1060, %v1664, 0
        %1669 = vmatpush.msra.mxu0 0.0
        %1670 = vmatpush.msra.mxu0 0.0
        %1671 = vmatpush.msra.mxu0 0.0
        %1672 = vmatpush.msra.mxu0 0.0
        %1673 = vmatpush.msra.mxu0 0.0
        %1674 = vmatpush.msra.mxu0 0.0
        %1675 = vmatpush.msra.mxu0 0.0
        %1676 = vmatpush.msra.mxu0 0.0
        %1677 = vmatpush.msra.mxu0 0.0
        %1678 = vmatpush.msra.mxu0 0.0
        %1679 = vmatpush.msra.mxu0 0.0
        %1680 = vmatpush.msra.mxu0 0.0
        %1681 = vmatpush.msra.mxu0 0.0
        %1682 = vmatpush.msra.mxu0 0.0
        %1683 = vmatpush.msra.mxu0 0.0
        %1684 = vmatpush.msra.mxu0 %v1530
        %1685 = vmatmul.f32.gmra.mxu0 %v1667
        %v1686 = vpop.f32.mrf.mxu0
        %v1687 = vadd.f32 0.0, %v1686
        %1688 = vdwg.mxu0
        %v1690 = vsel %vm1060, %v1597, 0
        %1692 = vmatpush.msra.mxu0 0.0
        %1693 = vmatpush.msra.mxu0 0.0
        %1694 = vmatpush.msra.mxu0 0.0
        %1695 = vmatpush.msra.mxu0 0.0
        %1696 = vmatpush.msra.mxu0 0.0
        %1697 = vmatpush.msra.mxu0 0.0
        %1698 = vmatpush.msra.mxu0 0.0
        %1699 = vmatpush.msra.mxu0 0.0
        %1700 = vmatpush.msra.mxu0 0.0
        %1701 = vmatpush.msra.mxu0 0.0
        %1702 = vmatpush.msra.mxu0 0.0
        %1703 = vmatpush.msra.mxu0 0.0
        %1704 = vmatpush.msra.mxu0 0.0
        %1705 = vmatpush.msra.mxu0 0.0
        %1706 = vmatpush.msra.mxu0 0.0
        %1707 = vmatpush.msra.mxu0 %v1529
        %1708 = vmatmul.f32.gmra.mxu0 %v1690
        %v1709 = vpop.f32.mrf.mxu0
        %v1710 = vadd.f32 %v1687, %v1709
        %1711 = vdwg.mxu0
        %1712 = vrot.lane.b32.xlu0 %v1496, 112
        %v1713 = vpop.permute.xlu0 %1712
        %1714 = vrot.lane.b32.xlu0 %v1527, 112
        %v1715 = vpop.permute.xlu0 %1714
        %v1716 = vsel %vm1060, %v1713, 0
        %v1718 = vsel %vm1060, %v1715, 0
        %1720 = vmatpush.xpose.msra.mxu0 0.0
        %1721 = vmatpush.xpose.msra.mxu0 0.0
        %1722 = vmatpush.xpose.msra.mxu0 0.0
        %1723 = vmatpush.xpose.msra.mxu0 0.0
        %1724 = vmatpush.xpose.msra.mxu0 0.0
        %1725 = vmatpush.xpose.msra.mxu0 0.0
        %1726 = vmatpush.xpose.msra.mxu0 0.0
        %1727 = vmatpush.xpose.msra.mxu0 0.0
        %1728 = vmatpush.xpose.msra.mxu0 0.0
        %1729 = vmatpush.xpose.msra.mxu0 0.0
        %1730 = vmatpush.xpose.msra.mxu0 0.0
        %1731 = vmatpush.xpose.msra.mxu0 0.0
        %1732 = vmatpush.xpose.msra.mxu0 0.0
        %1733 = vmatpush.xpose.msra.mxu0 0.0
        %1734 = vmatpush.xpose.msra.mxu0 0.0
        %1735 = vmatpush.xpose.msra.mxu0 %v1718
        %1736 = vmatmul.f32.gmra.mxu0 %v1716
        %v1737 = vpop.f32.mrf.mxu0
        %v1738 = vadd.f32 0.0, %v1737
        %1739 = vdwg.mxu0
        %v1740 = vmul.f32 %v1738, 0.35355338
        %v1741 = vsel %vm1560, -1e+09, %v1740
        %v1742 = vsel %vm1060, %v1741, -inf
        %1743 = vmax.xlane.f32.xlu0 %v1742
        %v1744 = vpop.xlane.xlu0 %1743
        %v1745 = vsub.f32 %v1741, %v1744
        %v1746 = vmul.f32 %v1745, 1.442695
        %v1747 = vpow.pop %v1746
        %v1748 = vsel %vm1060, %v1747, 0.0
        %1749 = vadd.xlane.f32.xlu0 %v1748
        %v1750 = vpop.xlane.xlu0 %1749
        %v1751 = vrcp.pop %v1750
        %v1752 = vmul.f32 %v1747, %v1751
        %1753 = vrot.lane.b32.xlu0 %v1527, 80
        %v1754 = vpop.permute.xlu0 %1753
        %v1757 = vsel %vm1060, %v1752, 0
        %1759 = vmatpush.msra.mxu0 0.0
        %1760 = vmatpush.msra.mxu0 0.0
        %1761 = vmatpush.msra.mxu0 0.0
        %1762 = vmatpush.msra.mxu0 0.0
        %1763 = vmatpush.msra.mxu0 0.0
        %1764 = vmatpush.msra.mxu0 0.0
        %1765 = vmatpush.msra.mxu0 0.0
        %1766 = vmatpush.msra.mxu0 0.0
        %1767 = vmatpush.msra.mxu0 0.0
        %1768 = vmatpush.msra.mxu0 0.0
        %1769 = vmatpush.msra.mxu0 0.0
        %1770 = vmatpush.msra.mxu0 0.0
        %1771 = vmatpush.msra.mxu0 0.0
        %1772 = vmatpush.msra.mxu0 0.0
        %1773 = vmatpush.msra.mxu0 0.0
        %1774 = vmatpush.msra.mxu0 %v1754
        %1775 = vmatmul.f32.gmra.mxu0 %v1757
        %v1776 = vpop.f32.mrf.mxu0
        %v1777 = vadd.f32 0.0, %v1776
        %1778 = vdwg.mxu0
        %v1780 = vsel %vm1060, %v1777, 0
        %1782 = vmatpush.msra.mxu0 0.0
        %1783 = vmatpush.msra.mxu0 0.0
        %1784 = vmatpush.msra.mxu0 0.0
        %1785 = vmatpush.msra.mxu0 0.0
        %1786 = vmatpush.msra.mxu0 0.0
        %1787 = vmatpush.msra.mxu0 0.0
        %1788 = vmatpush.msra.mxu0 0.0
        %1789 = vmatpush.msra.mxu0 0.0
        %1790 = vmatpush.msra.mxu0 0.0
        %1791 = vmatpush.msra.mxu0 0.0
        %1792 = vmatpush.msra.mxu0 0.0
        %1793 = vmatpush.msra.mxu0 0.0
        %1794 = vmatpush.msra.mxu0 0.0
        %1795 = vmatpush.msra.mxu0 0.0
        %1796 = vmatpush.msra.mxu0 0.0
        %1797 = vmatpush.msra.mxu0 %v1531
        %1798 = vmatmul.f32.gmra.mxu0 %v1780
        %v1799 = vpop.f32.mrf.mxu0
        %v1800 = vadd.f32 0.0, %v1799
        %1801 = vdwg.mxu0
        %v1802 = vadd.f32 %v1710, %v1800
        %1803 = vrot.lane.b32.xlu0 %v1496, 104
        %v1804 = vpop.permute.xlu0 %1803
        %1805 = vrot.lane.b32.xlu0 %v1527, 104
        %v1806 = vpop.permute.xlu0 %1805
        %v1807 = vsel %vm1060, %v1804, 0
        %v1809 = vsel %vm1060, %v1806, 0
        %1811 = vmatpush.xpose.msra.mxu0 0.0
        %1812 = vmatpush.xpose.msra.mxu0 0.0
        %1813 = vmatpush.xpose.msra.mxu0 0.0
        %1814 = vmatpush.xpose.msra.mxu0 0.0
        %1815 = vmatpush.xpose.msra.mxu0 0.0
        %1816 = vmatpush.xpose.msra.mxu0 0.0
        %1817 = vmatpush.xpose.msra.mxu0 0.0
        %1818 = vmatpush.xpose.msra.mxu0 0.0
        %1819 = vmatpush.xpose.msra.mxu0 0.0
        %1820 = vmatpush.xpose.msra.mxu0 0.0
        %1821 = vmatpush.xpose.msra.mxu0 0.0
        %1822 = vmatpush.xpose.msra.mxu0 0.0
        %1823 = vmatpush.xpose.msra.mxu0 0.0
        %1824 = vmatpush.xpose.msra.mxu0 0.0
        %1825 = vmatpush.xpose.msra.mxu0 0.0
        %1826 = vmatpush.xpose.msra.mxu0 %v1809
        %1827 = vmatmul.f32.gmra.mxu0 %v1807
        %v1828 = vpop.f32.mrf.mxu0
        %v1829 = vadd.f32 0.0, %v1828
        %1830 = vdwg.mxu0
        %v1831 = vmul.f32 %v1829, 0.35355338
        %v1832 = vsel %vm1560, -1e+09, %v1831
        %v1833 = vsel %vm1060, %v1832, -inf
        %1834 = vmax.xlane.f32.xlu0 %v1833
        %v1835 = vpop.xlane.xlu0 %1834
        %v1836 = vsub.f32 %v1832, %v1835
        %v1837 = vmul.f32 %v1836, 1.442695
        %v1838 = vpow.pop %v1837
        %v1839 = vsel %vm1060, %v1838, 0.0
        %1840 = vadd.xlane.f32.xlu0 %v1839
        %v1841 = vpop.xlane.xlu0 %1840
        %v1842 = vrcp.pop %v1841
        %v1843 = vmul.f32 %v1838, %v1842
        %1844 = vrot.lane.b32.xlu0 %v1527, 72
        %v1845 = vpop.permute.xlu0 %1844
        %v1848 = vsel %vm1060, %v1843, 0
        %1850 = vmatpush.msra.mxu0 0.0
        %1851 = vmatpush.msra.mxu0 0.0
        %1852 = vmatpush.msra.mxu0 0.0
        %1853 = vmatpush.msra.mxu0 0.0
        %1854 = vmatpush.msra.mxu0 0.0
        %1855 = vmatpush.msra.mxu0 0.0
        %1856 = vmatpush.msra.mxu0 0.0
        %1857 = vmatpush.msra.mxu0 0.0
        %1858 = vmatpush.msra.mxu0 0.0
        %1859 = vmatpush.msra.mxu0 0.0
        %1860 = vmatpush.msra.mxu0 0.0
        %1861 = vmatpush.msra.mxu0 0.0
        %1862 = vmatpush.msra.mxu0 0.0
        %1863 = vmatpush.msra.mxu0 0.0
        %1864 = vmatpush.msra.mxu0 0.0
        %1865 = vmatpush.msra.mxu0 %v1845
        %1866 = vmatmul.f32.gmra.mxu0 %v1848
        %v1867 = vpop.f32.mrf.mxu0
        %v1868 = vadd.f32 0.0, %v1867
        %1869 = vdwg.mxu0
        %v1871 = vsel %vm1060, %v1868, 0
        %1873 = vmatpush.msra.mxu0 0.0
        %1874 = vmatpush.msra.mxu0 0.0
        %1875 = vmatpush.msra.mxu0 0.0
        %1876 = vmatpush.msra.mxu0 0.0
        %1877 = vmatpush.msra.mxu0 0.0
        %1878 = vmatpush.msra.mxu0 0.0
        %1879 = vmatpush.msra.mxu0 0.0
        %1880 = vmatpush.msra.mxu0 0.0
        %1881 = vmatpush.msra.mxu0 0.0
        %1882 = vmatpush.msra.mxu0 0.0
        %1883 = vmatpush.msra.mxu0 0.0
        %1884 = vmatpush.msra.mxu0 0.0
        %1885 = vmatpush.msra.mxu0 0.0
        %1886 = vmatpush.msra.mxu0 0.0
        %1887 = vmatpush.msra.mxu0 0.0
        %1888 = vmatpush.msra.mxu0 %v1532
        %1889 = vmatmul.f32.gmra.mxu0 %v1871
        %v1890 = vpop.f32.mrf.mxu0
        %v1891 = vadd.f32 0.0, %v1890
        %1892 = vdwg.mxu0
        %v1893 = vadd.f32 %v1802, %v1891
        %v1894 = vld [vmem:[#allocation21] sm:$0x1]
        %v1896 = vperm.slane %v1894, 0
        %v1898 = vadd.f32 %v1893, %v1896
        %v1899 = vadd.f32 %v1898, %v1464
        %v1900 = vsel %vm1029, %v1899, 0.0
        %1901 = vadd.xlane.f32.xlu0 %v1900
        %v1902 = vpop.xlane.xlu0 %1901
        %v1903 = vmul.f32 %v1902, %v1435
        %v1904 = vsub.f32 %v1899, %v1903
        %v1905 = vmul.f32 %v1904, %v1904
        %v1906 = vsel %vm1029, %v1905, 0.0
        %1907 = vadd.xlane.f32.xlu0 %v1906
        %v1908 = vpop.xlane.xlu0 %1907
        %v1909 = vmul.f32 %v1908, %v1435
        %v1910 = vadd.f32 %v1909, 1e-05
        %v1911 = vrsqrt.pop %v1910
        %v1912 = vmul.f32 %v1911, %v1910
        %v1913 = vmul.f32 %v1912, %v1911
        %v1914 = vmul.f32 0.5, %v1913
        %v1915 = vsub.f32 1.5, %v1914
        %v1916 = vmul.f32 %v1911, %v1915
        %vm1917 = vweird.f32 %v1910
        %vm1918 = vweird.f32 %v1911
        %vm1919 = vmor %vm1917, %vm1918
        %v1920 = vsel %vm1919, %v1911, %v1916
        %v1921 = vmul.f32 %v1904, %v1920
        %v1922 = vld [vmem:[#allocation22] sm:$0x1]
        %v1924 = vperm.slane %v1922, 0
        %v1926 = vmul.f32 %v1921, %v1924
        %v1927 = vld [vmem:[#allocation24] sm:$0x1]
        %v1929 = vperm.slane %v1927, 0
        %v1931 = vadd.f32 %v1926, %v1929
        %v1932 = vld [vmem:[#allocation25] sm:$0xff]
        %v1933 = vld [vmem:[#allocation25 + $0x8] sm:$0xff]
        %v1934 = vld [vmem:[#allocation25 + $0x10] sm:$0xff]
        %v1935 = vld [vmem:[#allocation25 + $0x18] sm:$0xff]
        %v1936 = vld [vmem:[#allocation27] sm:$0x1]
        %v1938 = vperm.slane %v1936, 0
        %v1941 = vsel %vm1029, %v1931, 0
        %1943 = vmatpush.msra.mxu0 0.0
        %1944 = vmatpush.msra.mxu0 0.0
        %1945 = vmatpush.msra.mxu0 0.0
        %1946 = vmatpush.msra.mxu0 0.0
        %1947 = vmatpush.msra.mxu0 0.0
        %1948 = vmatpush.msra.mxu0 0.0
        %1949 = vmatpush.msra.mxu0 0.0
        %1950 = vmatpush.msra.mxu0 0.0
        %1951 = vmatpush.msra.mxu0 0.0
        %1952 = vmatpush.msra.mxu0 0.0
        %1953 = vmatpush.msra.mxu0 0.0
        %1954 = vmatpush.msra.mxu0 0.0
        %1955 = vmatpush.msra.mxu0 %v1935
        %1956 = vmatpush.msra.mxu0 %v1934
        %1957 = vmatpush.msra.mxu0 %v1933
        %1958 = vmatpush.msra.mxu0 %v1932
        %1959 = vmatmul.f32.gmra.mxu0 %v1941
        %v1960 = vpop.f32.mrf.mxu0
        %v1961 = vadd.f32 %v1938, %v1960
        %1962 = vdwg.mxu0
        %v1963 = vmax.f32 %v1961, 0.0
        %v1964 = vld [vmem:[%s20] sm:$0xff]
        %v1965 = vld [vmem:[%s20 + $0x8] sm:$0xff]
        %v1966 = vld [vmem:[%s20 + $0x10] sm:$0xff]
        %v1967 = vld [vmem:[%s20 + $0x18] sm:$0xff]
        %v1968 = vld [vmem:[%s20 + $0x20] sm:$0xff]
        %v1969 = vld [vmem:[%s20 + $0x28] sm:$0xff]
        %v1970 = vld [vmem:[%s20 + $0x30] sm:$0xff]
        %v1971 = vld [vmem:[%s20 + $0x38] sm:$0xff]
        %v1972 = vld [vmem:[#allocation28] sm:$0x1]
        %v1974 = vperm.slane %v1972, 0
        %vm1976 = vcmask 523264
        %v1978 = vsel %vm1976, %v1963, 0
        %1980 = vmatpush.msra.mxu0 0.0
        %1981 = vmatpush.msra.mxu0 0.0
        %1982 = vmatpush.msra.mxu0 0.0
        %1983 = vmatpush.msra.mxu0 0.0
        %1984 = vmatpush.msra.mxu0 0.0
        %1985 = vmatpush.msra.mxu0 0.0
        %1986 = vmatpush.msra.mxu0 0.0
        %1987 = vmatpush.msra.mxu0 0.0
        %1988 = vmatpush.msra.mxu0 %v1971
        %1989 = vmatpush.msra.mxu0 %v1970
        %1990 = vmatpush.msra.mxu0 %v1969
        %1991 = vmatpush.msra.mxu0 %v1968
        %1992 = vmatpush.msra.mxu0 %v1967
        %1993 = vmatpush.msra.mxu0 %v1966
        %1994 = vmatpush.msra.mxu0 %v1965
        %1995 = vmatpush.msra.mxu0 %v1964
        %1996 = vmatmul.f32.gmra.mxu0 %v1978
        %v1997 = vpop.f32.mrf.mxu0
        %v1998 = vadd.f32 %v1974, %v1997
        %1999 = vdwg.mxu0
        %2000 = vst.msk [vmem:[%s1018] sm:$0xff] %vm1029, %v1998
        %p2001 = scmp.lt.s32.totalorder %s47, 1
        %s2002 = scalar_select %p2001, %s47, 1
        %s2003 = smul.addr %s2002, 8
        %s2004 = scalar_lea.vmem %s22, %s2003
        // Predicated region
        $region181: #{decoder_forward.6} parent=107 // pred_check
          %p2005 = pneg %p547
        $region182: #{decoder_forward.6} parent=107 // pred_check_branch
          %2007 = sbr.rel (%p2005) target = $region184
        $region183: #{decoder_forward.6} parent=107 // pred_region
          _
        $region184: #{decoder_forward.6} parent=107 // pred_fallthru
          _
      $region108: #{decoder_forward.6} parent=5 // pred_fallthru
        _
      %p2008 = scmp.le.s32.totalorder 2, %s42
      // Predicated region
      $region185: #{decoder_forward.6} parent=5 // pred_check
        %p2009 = pneg %p2008
      $region186: #{decoder_forward.6} parent=5 // pred_check_branch
        %2011 = sbr.rel (%p2009) target = $region188
      $region187: #{decoder_forward.6} parent=5 // pred_region
        %s2012 = ssub.s32 %s42, 2
        // Predicated region
        $region189: #{decoder_forward.6} parent=187 // pred_check
          %p2013 = pneg %p553
        $region190: #{decoder_forward.6} parent=187 // pred_check_branch
          %2015 = sbr.rel (%p2013) target = $region192
        $region191: #{decoder_forward.6} parent=187 // pred_region
          %p2016 = scmp.lt.s32.totalorder %s48, 1
          %s2017 = scalar_select %p2016, %s48, 1
          %s2018 = smul.addr %s2017, 8
          %s2019 = scalar_lea.vmem %s22, %s2018
        $region192: #{decoder_forward.6} parent=187 // pred_fallthru
          _
      $region188: #{decoder_forward.6} parent=5 // pred_fallthru
        _
    $region6: #{decoder_forward.6} parent=1 // loop_footer
      %s46 = sadd.s32 1, %s42
    $region7: #{decoder_forward.6} parent=1 // loop_footer_branch
      %41 = sbr.rel target = $region3
    $region8: #{decoder_forward.6} parent=1 // loop_exit
      _
    %2020 = vsyncpa [#allocation3], 1
    %s2021 = scalar_lea.sflag [#allocation3], 1
    %2022 = vsyncpa %s2021, 1
    %2023 = vsyncpa [#allocation5], 1
    %s2024 = scalar_lea.sflag [#allocation5], 1
    %2025 = vsyncpa %s2024, 1
    %2026 = vsyncpa [#allocation8], 1
    %2027 = vsyncpa [#allocation11], 1
    %2028 = vsyncpa [#allocation14], 1
    %2029 = vsyncpa [#allocation17], 1
    %2030 = vsyncpa [#allocation20], 1
    %2031 = vsyncpa [#allocation23], 1
    %2032 = vsyncpa [#allocation26], 1
    %2033 = vsyncpa [#allocation29], 1

</llo_original>
